<compile_context>
chip_gen: v6e
topology: v6e:2x2x1
jax: 0.10.0
libtpu: 0.0.40
codegen_flags: <defaults>
</compile_context>

<pallas_src>
import numpy as np
import jax
import jax.numpy as jnp
from jax import lax
from jax.experimental import pallas as pl
from jax.experimental.pallas import tpu as pltpu

PAD = 4          # spatial zero padding baked into the padded, flattened input
K7, P7 = 7, 3    # 7x7 conv on cat[avg, max]
K9, P9 = 9, 4    # depthwise 9x9 conv
BN_EPS = 1e-5


def _round_up(v, m):
    return (v + m - 1) // m * m


def _vmem_estimate(nb, C, SE, WL):
    """Rough per-grid-step VMEM footprint in bytes (f32, blocks double-buffered)."""
    rows = C * nb
    blocks = (rows * SE            # input block
              + rows * WL          # output block
              + 2 * nb * K7 * K7 * WL
              + rows * K9 * K9 * WL
              + rows * SE          # sh1m
              + rows * WL          # sh2
              + rows * rows)       # block-diag 1x1 weights
    scratch = (2 * nb + rows) * SE
    return 4 * (2 * blocks + scratch)


def _pick_nb(N, C, SE, WL, budget=24 << 20):
    """Batch-block size: prefer >=2 grid steps (v7x 2 TCs) with aligned blocks,
    capped by a VMEM budget sized for v7x's 64 MiB physical VMEM."""
    cands = [d for d in range(1, N) if N % d == 0 and (C * d) % 8 == 0]
    cands.append(N)
    fits = [d for d in cands if _vmem_estimate(d, C, SE, WL) <= budget] or [cands[0]]
    multi = [d for d in fits if N // d >= 2]
    return max(multi) if multi else max(fits)


def _make_kernel(nb, C, Wp, WL, P0):
    """Kernel for a batch block of `nb` images.

    Layout: 2D, lanes = flattened zero-padded spatial (SE lanes), sublanes =
    image-major (image, channel) rows (row = n*C + c).  A conv tap (dy, dx) is
    a static lane window of width WL at offset P0 + (dy-P)*Wp + (dx-P) read
    from a VMEM-staged map; the spatial halo (PAD=4) absorbs all offsets.
    """
    def kernel(xp_ref, w7_ref, wdw_ref, w1blk_ref, sh1m_ref, sh2_ref, b7_ref,
               o_ref, amap_scr, y1_scr):
        # ---- branch 1 inputs: per-image channel mean / max -> VMEM scratch --
        for n in range(nb):
            blk = xp_ref[n * C:(n + 1) * C, :]                     # (C, SE)
            amap_scr[n:n + 1, :] = jnp.sum(blk, axis=0, keepdims=True) * (1.0 / C)
            amap_scr[nb + n:nb + n + 1, :] = jnp.max(blk, axis=0, keepdims=True)

        # ---- branch 2a: 1x1 conv + folded BN1 + ReLU on the MXU -------------
        # block-diagonal (C*nb, C*nb) weights keep rows image-major; sh1m is
        # pre-masked host-side so the halo of y1 is exactly zero.
        x = xp_ref[...]                                            # (C*nb, SE)
        y1 = jnp.dot(w1blk_ref[...], x, preferred_element_type=jnp.float32)
        y1_scr[...] = jnp.maximum(y1 + sh1m_ref[...], 0.0)

        # ---- branch 1: 7x7 conv over [avg; max] + bias + sigmoid -------------
        acc7 = jnp.zeros((2 * nb, WL), jnp.float32)
        for t in range(K7 * K7):
            dy, dx = divmod(t, K7)
            off = P0 + (dy - P7) * Wp + (dx - P7)
            acc7 = acc7 + amap_scr[:, off:off + WL] * w7_ref[:, t * WL:(t + 1) * WL]
        sa = jax.nn.sigmoid(acc7[:nb] + acc7[nb:] + b7_ref[0])     # (nb, WL)

        # ---- branch 2b: depthwise 9x9 conv + folded BN2 + ReLU + sigmoid -----
        acc = sh2_ref[...]                                         # (C*nb, WL)
        for t in range(K9 * K9):
            dy, dx = divmod(t, K9)
            off = P0 + (dy - P9) * Wp + (dx - P9)
            acc = acc + y1_scr[:, off:off + WL] * wdw_ref[:, t * WL:(t + 1) * WL]
        out_prm = jax.nn.sigmoid(jnp.maximum(acc, 0.0))            # (C*nb, WL)

        # ---- combine: (sa + out_prm) / 3, sa broadcast over the C rows -------
        inv3 = 1.0 / 3.0
        for n in range(nb):
            o_ref[n * C:(n + 1) * C, :] = (
                (sa[n:n + 1, :] + out_prm[n * C:(n + 1) * C, :]) * inv3
            ).astype(o_ref.dtype)

    return kernel


def spatial_attention_forward(x_nchw, params, x_unused=None):
    """NCHW in -> NCHW out, matching the PyTorch module (eval-mode BN).
    The PyTorch forward's second argument x_ is unused."""
    N, C, H, W = x_nchw.shape
    Hp, Wp = H + 2 * PAD, W + 2 * PAD
    S = Hp * Wp
    P0 = PAD * Wp + PAD                       # flat offset of the first core pixel
    WL = _round_up(H * Wp, 128)               # lane-dense output window width
    SE = _round_up(max(S, 2 * P0 + WL), 128)  # lane extent (multiple of 128)
    NB = _pick_nb(N, C, SE, WL)
    rows = C * NB

    # ---- input: NCHW -> image-major padded flattened rows (NO transpose) ----
    x = x_nchw.astype(jnp.float32)
    xp = jnp.pad(x, ((0, 0), (0, 0), (PAD, PAD), (PAD, PAD))).reshape(N * C, S)
    xp = jnp.pad(xp, ((0, 0), (0, SE - S)))                        # (N*C, SE)
    # TODO(synk): for HBM-bound production sizes, carry xp as bf16 (upcast in
    # kernel) and/or build the padded layout in-kernel from the raw NCHW input
    # (memory_space=pl.ANY + make_async_copy) to drop the host pad round trip.

    # ---- fold conv biases + BN into weights / shifts (host-side) ------------
    # TODO(synk): the PyTorch module declares self.conv2d with in_channels=4
    # but applies it to the 2-channel cat([avg, max]) (would raise in torch);
    # we implement the standard 2-channel CBAM spatial-attention conv.
    w7 = params["conv2d_w"].reshape(2, K7 * K7).astype(jnp.float32)
    w7_bc = jnp.repeat(
        jnp.broadcast_to(w7[:, :, None], (2, K7 * K7, WL)).reshape(2, K7 * K7 * WL),
        NB, axis=0)                                                # (2*NB, 49*WL)
    b7 = params["conv2d_b"].reshape(1).astype(jnp.float32)         # SMEM scalar

    s1 = params["bn1_gamma"] / jnp.sqrt(params["bn1_var"] + BN_EPS)
    w1s = (params["conv1_w"].reshape(C, C) * s1[:, None]).astype(jnp.float32)
    sh1 = (params["conv1_b"] * s1 + params["bn1_beta"]
           - params["bn1_mean"] * s1).astype(jnp.float32)          # (C,)
    w1blk = jnp.zeros((rows, rows), jnp.float32)                   # block-diag 1x1
    for n in range(NB):
        w1blk = w1blk.at[n * C:(n + 1) * C, n * C:(n + 1) * C].set(w1s)

    # halo mask over the padded flattened lane axis, folded into the BN1 shift
    p = np.arange(SE)
    core = ((p < S) & (p // Wp >= PAD) & (p // Wp < PAD + H)
            & (p % Wp >= PAD) & (p % Wp < PAD + W)).astype(np.float32)
    sh1m_bc = jnp.tile(sh1[:, None] * jnp.asarray(core)[None, :], (NB, 1))  # (rows, SE)

    s2 = params["bn2_gamma"] / jnp.sqrt(params["bn2_var"] + BN_EPS)
    wdw = (params["convdw_w"].reshape(C, K9 * K9) * s2[:, None]).astype(jnp.float32)
    wdw_bc = jnp.tile(
        jnp.broadcast_to(wdw[:, :, None], (C, K9 * K9, WL)).reshape(C, K9 * K9 * WL),
        (NB, 1))                                                   # (rows, 81*WL)
    sh2 = (params["convdw_b"] * s2 + params["bn2_beta"]
           - params["bn2_mean"] * s2).astype(jnp.float32)
    sh2_bc = jnp.tile(jnp.broadcast_to(sh2[:, None], (C, WL)), (NB, 1))     # (rows, WL)

    vmem_limit = int(min(48 << 20, max(32 << 20, 2 * _vmem_estimate(NB, C, SE, WL))))

    kernel = _make_kernel(NB, C, Wp, WL, P0)
    out2d = pl.pallas_call(
        kernel,
        out_shape=jax.ShapeDtypeStruct((N * C, WL), jnp.float32),
        grid_spec=pltpu.PrefetchScalarGridSpec(
            num_scalar_prefetch=0,
            grid=(N // NB,),
            in_specs=[
                pl.BlockSpec((rows, SE), lambda i: (i, 0)),                 # xp (NB images)
                pl.BlockSpec((2 * NB, K7 * K7 * WL), lambda i: (0, 0)),     # 7x7 tap stripes
                pl.BlockSpec((rows, K9 * K9 * WL), lambda i: (0, 0)),       # dw tap stripes
                pl.BlockSpec((rows, rows), lambda i: (0, 0)),               # block-diag 1x1 w
                pl.BlockSpec((rows, SE), lambda i: (0, 0)),                 # masked BN1 shift
                pl.BlockSpec((rows, WL), lambda i: (0, 0)),                 # BN2 shift
                pl.BlockSpec(memory_space=pltpu.MemorySpace.SMEM),          # conv2d bias
            ],
            out_specs=pl.BlockSpec((rows, WL), lambda i: (i, 0)),
            scratch_shapes=[pltpu.VMEM((2 * NB, SE), jnp.float32),          # amap
                            pltpu.VMEM((rows, SE), jnp.float32)],           # y1
        ),
        compiler_params=pltpu.CompilerParams(
            dimension_semantics=("parallel",),
            vmem_limit_bytes=vmem_limit),
    )(xp, w7_bc, wdw_bc, w1blk, sh1m_bc, sh2_bc, b7)

    # (N*C, WL) -> drop padded lanes/columns -> NCHW (no transpose needed)
    out = out2d[:, :H * Wp].reshape(N, C, H, Wp)[:, :, :, :W]
    return out


def reference_forward(x, params):
    """Pure-JAX reference mirroring the PyTorch forward (eval-mode BN)."""
    x = x.astype(jnp.float32)
    N, C, H, W = x.shape
    avgout = jnp.mean(x, axis=1, keepdims=True)
    maxout = jnp.max(x, axis=1, keepdims=True)
    out = jnp.concatenate([avgout, maxout], axis=1)
    out = lax.conv_general_dilated(out, params["conv2d_w"], (1, 1),
                                   [(P7, P7), (P7, P7)],
                                   dimension_numbers=("NCHW", "OIHW", "NCHW"))
    out = jax.nn.sigmoid(out + params["conv2d_b"].reshape(1, 1, 1, 1))

    y = lax.conv_general_dilated(x, params["conv1_w"], (1, 1),
                                 [(0, 0), (0, 0)],
                                 dimension_numbers=("NCHW", "OIHW", "NCHW"))
    y = y + params["conv1_b"].reshape(1, C, 1, 1)
    s1 = params["bn1_gamma"] / jnp.sqrt(params["bn1_var"] + BN_EPS)
    y = y * s1.reshape(1, C, 1, 1) + (
        params["bn1_beta"] - params["bn1_mean"] * s1).reshape(1, C, 1, 1)
    y = jnp.maximum(y, 0.0)

    y = lax.conv_general_dilated(y, params["convdw_w"], (1, 1),
                                 [(P9, P9), (P9, P9)],
                                 dimension_numbers=("NCHW", "OIHW", "NCHW"),
                                 feature_group_count=C)
    y = y + params["convdw_b"].reshape(1, C, 1, 1)
    s2 = params["bn2_gamma"] / jnp.sqrt(params["bn2_var"] + BN_EPS)
    y = y * s2.reshape(1, C, 1, 1) + (
        params["bn2_beta"] - params["bn2_mean"] * s2).reshape(1, C, 1, 1)
    y = jnp.maximum(y, 0.0)
    out_prm = jax.nn.sigmoid(y)
    return (out + out_prm) / 3.0


if __name__ == "__main__":
    key = jax.random.PRNGKey(0)
    N, C, H, W = 2, 4, 16, 16
    keys = jax.random.split(key, 16)
    params = {
        "conv2d_w": 0.05 * jax.random.normal(keys[0], (1, 2, K7, K7), jnp.float32),
        "conv2d_b": 0.05 * jax.random.normal(keys[1], (1,), jnp.float32),
        "conv1_w": 0.2 * jax.random.normal(keys[2], (C, C, 1, 1), jnp.float32),
        "conv1_b": 0.1 * jax.random.normal(keys[3], (C,), jnp.float32),
        "bn1_gamma": 1.0 + 0.1 * jax.random.normal(keys[4], (C,), jnp.float32),
        "bn1_beta": 0.1 * jax.random.normal(keys[5], (C,), jnp.float32),
        "bn1_mean": 0.1 * jax.random.normal(keys[6], (C,), jnp.float32),
        "bn1_var": jax.random.uniform(keys[7], (C,), jnp.float32, 0.5, 1.5),
        "convdw_w": 0.05 * jax.random.normal(keys[8], (C, 1, K9, K9), jnp.float32),
        "convdw_b": 0.1 * jax.random.normal(keys[9], (C,), jnp.float32),
        "bn2_gamma": 1.0 + 0.1 * jax.random.normal(keys[10], (C,), jnp.float32),
        "bn2_beta": 0.1 * jax.random.normal(keys[11], (C,), jnp.float32),
        "bn2_mean": 0.1 * jax.random.normal(keys[12], (C,), jnp.float32),
        "bn2_var": jax.random.uniform(keys[13], (C,), jnp.float32, 0.5, 1.5),
    }
    x = jax.random.normal(keys[14], (N, C, H, W), jnp.float32)
    x_unused = jax.random.normal(keys[15], (N, C, H, W), jnp.float32)  # x_ is unused

    out = spatial_attention_forward(x, params, x_unused)
    out = jax.block_until_ready(out)
    assert out.shape == (N, C, H, W)

    ref = reference_forward(x, params)
    np.testing.assert_allclose(np.asarray(out), np.asarray(ref),
                               rtol=2e-3, atol=2e-3)
    print("KERNEL_OK")
</pallas_src>

<mosaic_0001>
module attributes {stable_mosaic.version = 11 : i64} {
  func.func @kernel(%arg0: i32, %arg1: memref<8x640xf32, #tpu.memory_space<vmem>>, %arg2: memref<4x18816xf32, #tpu.memory_space<vmem>>, %arg3: memref<8x31104xf32, #tpu.memory_space<vmem>>, %arg4: memref<8x8xf32, #tpu.memory_space<vmem>>, %arg5: memref<8x640xf32, #tpu.memory_space<vmem>>, %arg6: memref<8x384xf32, #tpu.memory_space<vmem>>, %arg7: memref<1xf32, #tpu.memory_space<smem>>, %arg8: memref<8x384xf32, #tpu.memory_space<vmem>>, %arg9: memref<4x640xf32, #tpu.memory_space<vmem>>, %arg10: memref<8x640xf32, #tpu.memory_space<vmem>>) attributes {dimension_semantics = [#tpu.dimension_semantics<parallel>], iteration_bounds = array<i64: 1>, scalar_prefetch = 0 : i64, scratch_operands = 2 : i64, tpu.core_type = #tpu.core_type<tc>, window_params = [{transform_indices = @transform_0, window_bounds = array<i64: 8, 640>}, {pipeline_mode = #tpu.pipeline_mode<synchronous>, transform_indices = @transform_1, window_bounds = array<i64: 4, 18816>}, {pipeline_mode = #tpu.pipeline_mode<synchronous>, transform_indices = @transform_2, window_bounds = array<i64: 8, 31104>}, {pipeline_mode = #tpu.pipeline_mode<synchronous>, transform_indices = @transform_3, window_bounds = array<i64: 8, 8>}, {pipeline_mode = #tpu.pipeline_mode<synchronous>, transform_indices = @transform_4, window_bounds = array<i64: 8, 640>}, {pipeline_mode = #tpu.pipeline_mode<synchronous>, transform_indices = @transform_5, window_bounds = array<i64: 8, 384>}, {transform_indices = @transform_6, window_bounds = array<i64: 1>}, {transform_indices = @transform_7, window_bounds = array<i64: 8, 384>}]} {
    %c0 = arith.constant 0 : index
    %c0_0 = arith.constant 0 : index
    %0 = vector.load %arg1[%c0, %c0_0] : memref<8x640xf32, #tpu.memory_space<vmem>>, vector<4x640xf32>
    %cst = arith.constant dense<0.000000e+00> : vector<640xf32>
    %1 = vector.multi_reduction <add>, %0, %cst [0] : vector<4x640xf32> to vector<640xf32>
    %2 = vector.shape_cast %1 : vector<640xf32> to vector<1x640xf32>
    %cst_1 = arith.constant 2.500000e-01 : f32
    %3 = vector.broadcast %cst_1 : f32 to vector<1x640xf32>
    %4 = arith.mulf %2, %3 : vector<1x640xf32>
    %c0_2 = arith.constant 0 : index
    %c0_3 = arith.constant 0 : index
    %5 = vector.load %arg9[%c0_2, %c0_3] : memref<4x640xf32, #tpu.memory_space<vmem>>, vector<1x640xf32>
    tpu.vector_store %arg9[%c0_2, %c0_3], %4 {strides = array<i32>} : memref<4x640xf32, #tpu.memory_space<vmem>>, vector<1x640xf32>,
    %cst_4 = arith.constant dense<0xFF800000> : vector<640xf32>
    %6 = vector.multi_reduction <maximumf>, %0, %cst_4 [0] : vector<4x640xf32> to vector<640xf32>
    %7 = vector.shape_cast %6 : vector<640xf32> to vector<1x640xf32>
    %c2 = arith.constant 2 : index
    %c0_5 = arith.constant 0 : index
    %8 = vector.load %arg9[%c2, %c0_5] : memref<4x640xf32, #tpu.memory_space<vmem>>, vector<1x640xf32>
    tpu.vector_store %arg9[%c2, %c0_5], %7 {strides = array<i32>} : memref<4x640xf32, #tpu.memory_space<vmem>>, vector<1x640xf32>,
    %c4 = arith.constant 4 : index
    %c0_6 = arith.constant 0 : index
    %9 = vector.load %arg1[%c4, %c0_6] : memref<8x640xf32, #tpu.memory_space<vmem>>, vector<4x640xf32>
    %cst_7 = arith.constant dense<0.000000e+00> : vector<640xf32>
    %10 = vector.multi_reduction <add>, %9, %cst_7 [0] : vector<4x640xf32> to vector<640xf32>
    %11 = vector.shape_cast %10 : vector<640xf32> to vector<1x640xf32>
    %cst_8 = arith.constant 2.500000e-01 : f32
    %12 = vector.broadcast %cst_8 : f32 to vector<1x640xf32>
    %13 = arith.mulf %11, %12 : vector<1x640xf32>
    %c1 = arith.constant 1 : index
    %c0_9 = arith.constant 0 : index
    %14 = vector.load %arg9[%c1, %c0_9] : memref<4x640xf32, #tpu.memory_space<vmem>>, vector<1x640xf32>
    tpu.vector_store %arg9[%c1, %c0_9], %13 {strides = array<i32>} : memref<4x640xf32, #tpu.memory_space<vmem>>, vector<1x640xf32>,
    %cst_10 = arith.constant dense<0xFF800000> : vector<640xf32>
    %15 = vector.multi_reduction <maximumf>, %9, %cst_10 [0] : vector<4x640xf32> to vector<640xf32>
    %16 = vector.shape_cast %15 : vector<640xf32> to vector<1x640xf32>
    %c3 = arith.constant 3 : index
    %c0_11 = arith.constant 0 : index
    %17 = vector.load %arg9[%c3, %c0_11] : memref<4x640xf32, #tpu.memory_space<vmem>>, vector<1x640xf32>
    tpu.vector_store %arg9[%c3, %c0_11], %16 {strides = array<i32>} : memref<4x640xf32, #tpu.memory_space<vmem>>, vector<1x640xf32>,
    %c0_12 = arith.constant 0 : index
    %c0_13 = arith.constant 0 : index
    %18 = vector.load %arg1[%c0_12, %c0_13] : memref<8x640xf32, #tpu.memory_space<vmem>>, vector<8x640xf32>
    %c0_14 = arith.constant 0 : index
    %c0_15 = arith.constant 0 : index
    %19 = vector.load %arg4[%c0_14, %c0_15] : memref<8x8xf32, #tpu.memory_space<vmem>>, vector<8x8xf32>
    %cst_16 = arith.constant dense<0.000000e+00> : vector<8x640xf32>
    %20 = tpu.matmul %19, %18, %cst_16 {dimension_numbers = #tpu.dot_dimension_numbers<[1], [0], [0], [1], [0, 0, 1, 1], [], []>} : vector<8x8xf32>, vector<8x640xf32>, vector<8x640xf32> -> vector<8x640xf32>
    %c0_17 = arith.constant 0 : index
    %c0_18 = arith.constant 0 : index
    %21 = vector.load %arg5[%c0_17, %c0_18] : memref<8x640xf32, #tpu.memory_space<vmem>>, vector<8x640xf32>
    %22 = arith.addf %20, %21 : vector<8x640xf32>
    %cst_19 = arith.constant 0.000000e+00 : f32
    %23 = vector.broadcast %cst_19 : f32 to vector<8x640xf32>
    %24 = arith.maximumf %22, %23 : vector<8x640xf32>
    %c0_20 = arith.constant 0 : index
    %c0_21 = arith.constant 0 : index
    %25 = vector.load %arg10[%c0_20, %c0_21] : memref<8x640xf32, #tpu.memory_space<vmem>>, vector<8x640xf32>
    tpu.vector_store %arg10[%c0_20, %c0_21], %24 {strides = array<i32>} : memref<8x640xf32, #tpu.memory_space<vmem>>, vector<8x640xf32>,
    %cst_22 = arith.constant 0.000000e+00 : f32
    %26 = vector.broadcast %cst_22 : f32 to vector<4x384xf32>
    %c0_23 = arith.constant 0 : index
    %c25 = arith.constant 25 : index
    %27 = vector.load %arg9[%c0_23, %c25] : memref<4x640xf32, #tpu.memory_space<vmem>>, vector<4x384xf32>
    %c0_24 = arith.constant 0 : index
    %c0_25 = arith.constant 0 : index
    %28 = vector.load %arg2[%c0_24, %c0_25] : memref<4x18816xf32, #tpu.memory_space<vmem>>, vector<4x384xf32>
    %29 = arith.mulf %27, %28 : vector<4x384xf32>
    %30 = arith.addf %26, %29 : vector<4x384xf32>
    %c0_26 = arith.constant 0 : index
    %c26 = arith.constant 26 : index
    %31 = vector.load %arg9[%c0_26, %c26] : memref<4x640xf32, #tpu.memory_space<vmem>>, vector<4x384xf32>
    %c0_27 = arith.constant 0 : index
    %c384 = arith.constant 384 : index
    %32 = vector.load %arg2[%c0_27, %c384] : memref<4x18816xf32, #tpu.memory_space<vmem>>, vector<4x384xf32>
    %33 = arith.mulf %31, %32 : vector<4x384xf32>
    %34 = arith.addf %30, %33 : vector<4x384xf32>
    %c0_28 = arith.constant 0 : index
    %c27 = arith.constant 27 : index
    %35 = vector.load %arg9[%c0_28, %c27] : memref<4x640xf32, #tpu.memory_space<vmem>>, vector<4x384xf32>
    %c0_29 = arith.constant 0 : index
    %c768 = arith.constant 768 : index
    %36 = vector.load %arg2[%c0_29, %c768] : memref<4x18816xf32, #tpu.memory_space<vmem>>, vector<4x384xf32>
    %37 = arith.mulf %35, %36 : vector<4x384xf32>
    %38 = arith.addf %34, %37 : vector<4x384xf32>
    %c0_30 = arith.constant 0 : index
    %c28 = arith.constant 28 : index
    %39 = vector.load %arg9[%c0_30, %c28] : memref<4x640xf32, #tpu.memory_space<vmem>>, vector<4x384xf32>
    %c0_31 = arith.constant 0 : index
    %c1152 = arith.constant 1152 : index
    %40 = vector.load %arg2[%c0_31, %c1152] : memref<4x18816xf32, #tpu.memory_space<vmem>>, vector<4x384xf32>
    %41 = arith.mulf %39, %40 : vector<4x384xf32>
    %42 = arith.addf %38, %41 : vector<4x384xf32>
    %c0_32 = arith.constant 0 : index
    %c29 = arith.constant 29 : index
    %43 = vector.load %arg9[%c0_32, %c29] : memref<4x640xf32, #tpu.memory_space<vmem>>, vector<4x384xf32>
    %c0_33 = arith.constant 0 : index
    %c1536 = arith.constant 1536 : index
    %44 = vector.load %arg2[%c0_33, %c1536] : memref<4x18816xf32, #tpu.memory_space<vmem>>, vector<4x384xf32>
    %45 = arith.mulf %43, %44 : vector<4x384xf32>
    %46 = arith.addf %42, %45 : vector<4x384xf32>
    %c0_34 = arith.constant 0 : index
    %c30 = arith.constant 30 : index
    %47 = vector.load %arg9[%c0_34, %c30] : memref<4x640xf32, #tpu.memory_space<vmem>>, vector<4x384xf32>
    %c0_35 = arith.constant 0 : index
    %c1920 = arith.constant 1920 : index
    %48 = vector.load %arg2[%c0_35, %c1920] : memref<4x18816xf32, #tpu.memory_space<vmem>>, vector<4x384xf32>
    %49 = arith.mulf %47, %48 : vector<4x384xf32>
    %50 = arith.addf %46, %49 : vector<4x384xf32>
    %c0_36 = arith.constant 0 : index
    %c31 = arith.constant 31 : index
    %51 = vector.load %arg9[%c0_36, %c31] : memref<4x640xf32, #tpu.memory_space<vmem>>, vector<4x384xf32>
    %c0_37 = arith.constant 0 : index
    %c2304 = arith.constant 2304 : index
    %52 = vector.load %arg2[%c0_37, %c2304] : memref<4x18816xf32, #tpu.memory_space<vmem>>, vector<4x384xf32>
    %53 = arith.mulf %51, %52 : vector<4x384xf32>
    %54 = arith.addf %50, %53 : vector<4x384xf32>
    %c0_38 = arith.constant 0 : index
    %c49 = arith.constant 49 : index
    %55 = vector.load %arg9[%c0_38, %c49] : memref<4x640xf32, #tpu.memory_space<vmem>>, vector<4x384xf32>
    %c0_39 = arith.constant 0 : index
    %c2688 = arith.constant 2688 : index
    %56 = vector.load %arg2[%c0_39, %c2688] : memref<4x18816xf32, #tpu.memory_space<vmem>>, vector<4x384xf32>
    %57 = arith.mulf %55, %56 : vector<4x384xf32>
    %58 = arith.addf %54, %57 : vector<4x384xf32>
    %c0_40 = arith.constant 0 : index
    %c50 = arith.constant 50 : index
    %59 = vector.load %arg9[%c0_40, %c50] : memref<4x640xf32, #tpu.memory_space<vmem>>, vector<4x384xf32>
    %c0_41 = arith.constant 0 : index
    %c3072 = arith.constant 3072 : index
    %60 = vector.load %arg2[%c0_41, %c3072] : memref<4x18816xf32, #tpu.memory_space<vmem>>, vector<4x384xf32>
    %61 = arith.mulf %59, %60 : vector<4x384xf32>
    %62 = arith.addf %58, %61 : vector<4x384xf32>
    %c0_42 = arith.constant 0 : index
    %c51 = arith.constant 51 : index
    %63 = vector.load %arg9[%c0_42, %c51] : memref<4x640xf32, #tpu.memory_space<vmem>>, vector<4x384xf32>
    %c0_43 = arith.constant 0 : index
    %c3456 = arith.constant 3456 : index
    %64 = vector.load %arg2[%c0_43, %c3456] : memref<4x18816xf32, #tpu.memory_space<vmem>>, vector<4x384xf32>
    %65 = arith.mulf %63, %64 : vector<4x384xf32>
    %66 = arith.addf %62, %65 : vector<4x384xf32>
    %c0_44 = arith.constant 0 : index
    %c52 = arith.constant 52 : index
    %67 = vector.load %arg9[%c0_44, %c52] : memref<4x640xf32, #tpu.memory_space<vmem>>, vector<4x384xf32>
    %c0_45 = arith.constant 0 : index
    %c3840 = arith.constant 3840 : index
    %68 = vector.load %arg2[%c0_45, %c3840] : memref<4x18816xf32, #tpu.memory_space<vmem>>, vector<4x384xf32>
    %69 = arith.mulf %67, %68 : vector<4x384xf32>
    %70 = arith.addf %66, %69 : vector<4x384xf32>
    %c0_46 = arith.constant 0 : index
    %c53 = arith.constant 53 : index
    %71 = vector.load %arg9[%c0_46, %c53] : memref<4x640xf32, #tpu.memory_space<vmem>>, vector<4x384xf32>
    %c0_47 = arith.constant 0 : index
    %c4224 = arith.constant 4224 : index
    %72 = vector.load %arg2[%c0_47, %c4224] : memref<4x18816xf32, #tpu.memory_space<vmem>>, vector<4x384xf32>
    %73 = arith.mulf %71, %72 : vector<4x384xf32>
    %74 = arith.addf %70, %73 : vector<4x384xf32>
    %c0_48 = arith.constant 0 : index
    %c54 = arith.constant 54 : index
    %75 = vector.load %arg9[%c0_48, %c54] : memref<4x640xf32, #tpu.memory_space<vmem>>, vector<4x384xf32>
    %c0_49 = arith.constant 0 : index
    %c4608 = arith.constant 4608 : index
    %76 = vector.load %arg2[%c0_49, %c4608] : memref<4x18816xf32, #tpu.memory_space<vmem>>, vector<4x384xf32>
    %77 = arith.mulf %75, %76 : vector<4x384xf32>
    %78 = arith.addf %74, %77 : vector<4x384xf32>
    %c0_50 = arith.constant 0 : index
    %c55 = arith.constant 55 : index
    %79 = vector.load %arg9[%c0_50, %c55] : memref<4x640xf32, #tpu.memory_space<vmem>>, vector<4x384xf32>
    %c0_51 = arith.constant 0 : index
    %c4992 = arith.constant 4992 : index
    %80 = vector.load %arg2[%c0_51, %c4992] : memref<4x18816xf32, #tpu.memory_space<vmem>>, vector<4x384xf32>
    %81 = arith.mulf %79, %80 : vector<4x384xf32>
    %82 = arith.addf %78, %81 : vector<4x384xf32>
    %c0_52 = arith.constant 0 : index
    %c73 = arith.constant 73 : index
    %83 = vector.load %arg9[%c0_52, %c73] : memref<4x640xf32, #tpu.memory_space<vmem>>, vector<4x384xf32>
    %c0_53 = arith.constant 0 : index
    %c5376 = arith.constant 5376 : index
    %84 = vector.load %arg2[%c0_53, %c5376] : memref<4x18816xf32, #tpu.memory_space<vmem>>, vector<4x384xf32>
    %85 = arith.mulf %83, %84 : vector<4x384xf32>
    %86 = arith.addf %82, %85 : vector<4x384xf32>
    %c0_54 = arith.constant 0 : index
    %c74 = arith.constant 74 : index
    %87 = vector.load %arg9[%c0_54, %c74] : memref<4x640xf32, #tpu.memory_space<vmem>>, vector<4x384xf32>
    %c0_55 = arith.constant 0 : index
    %c5760 = arith.constant 5760 : index
    %88 = vector.load %arg2[%c0_55, %c5760] : memref<4x18816xf32, #tpu.memory_space<vmem>>, vector<4x384xf32>
    %89 = arith.mulf %87, %88 : vector<4x384xf32>
    %90 = arith.addf %86, %89 : vector<4x384xf32>
    %c0_56 = arith.constant 0 : index
    %c75 = arith.constant 75 : index
    %91 = vector.load %arg9[%c0_56, %c75] : memref<4x640xf32, #tpu.memory_space<vmem>>, vector<4x384xf32>
    %c0_57 = arith.constant 0 : index
    %c6144 = arith.constant 6144 : index
    %92 = vector.load %arg2[%c0_57, %c6144] : memref<4x18816xf32, #tpu.memory_space<vmem>>, vector<4x384xf32>
    %93 = arith.mulf %91, %92 : vector<4x384xf32>
    %94 = arith.addf %90, %93 : vector<4x384xf32>
    %c0_58 = arith.constant 0 : index
    %c76 = arith.constant 76 : index
    %95 = vector.load %arg9[%c0_58, %c76] : memref<4x640xf32, #tpu.memory_space<vmem>>, vector<4x384xf32>
    %c0_59 = arith.constant 0 : index
    %c6528 = arith.constant 6528 : index
    %96 = vector.load %arg2[%c0_59, %c6528] : memref<4x18816xf32, #tpu.memory_space<vmem>>, vector<4x384xf32>
    %97 = arith.mulf %95, %96 : vector<4x384xf32>
    %98 = arith.addf %94, %97 : vector<4x384xf32>
    %c0_60 = arith.constant 0 : index
    %c77 = arith.constant 77 : index
    %99 = vector.load %arg9[%c0_60, %c77] : memref<4x640xf32, #tpu.memory_space<vmem>>, vector<4x384xf32>
    %c0_61 = arith.constant 0 : index
    %c6912 = arith.constant 6912 : index
    %100 = vector.load %arg2[%c0_61, %c6912] : memref<4x18816xf32, #tpu.memory_space<vmem>>, vector<4x384xf32>
    %101 = arith.mulf %99, %100 : vector<4x384xf32>
    %102 = arith.addf %98, %101 : vector<4x384xf32>
    %c0_62 = arith.constant 0 : index
    %c78 = arith.constant 78 : index
    %103 = vector.load %arg9[%c0_62, %c78] : memref<4x640xf32, #tpu.memory_space<vmem>>, vector<4x384xf32>
    %c0_63 = arith.constant 0 : index
    %c7296 = arith.constant 7296 : index
    %104 = vector.load %arg2[%c0_63, %c7296] : memref<4x18816xf32, #tpu.memory_space<vmem>>, vector<4x384xf32>
    %105 = arith.mulf %103, %104 : vector<4x384xf32>
    %106 = arith.addf %102, %105 : vector<4x384xf32>
    %c0_64 = arith.constant 0 : index
    %c79 = arith.constant 79 : index
    %107 = vector.load %arg9[%c0_64, %c79] : memref<4x640xf32, #tpu.memory_space<vmem>>, vector<4x384xf32>
    %c0_65 = arith.constant 0 : index
    %c7680 = arith.constant 7680 : index
    %108 = vector.load %arg2[%c0_65, %c7680] : memref<4x18816xf32, #tpu.memory_space<vmem>>, vector<4x384xf32>
    %109 = arith.mulf %107, %108 : vector<4x384xf32>
    %110 = arith.addf %106, %109 : vector<4x384xf32>
    %c0_66 = arith.constant 0 : index
    %c97 = arith.constant 97 : index
    %111 = vector.load %arg9[%c0_66, %c97] : memref<4x640xf32, #tpu.memory_space<vmem>>, vector<4x384xf32>
    %c0_67 = arith.constant 0 : index
    %c8064 = arith.constant 8064 : index
    %112 = vector.load %arg2[%c0_67, %c8064] : memref<4x18816xf32, #tpu.memory_space<vmem>>, vector<4x384xf32>
    %113 = arith.mulf %111, %112 : vector<4x384xf32>
    %114 = arith.addf %110, %113 : vector<4x384xf32>
    %c0_68 = arith.constant 0 : index
    %c98 = arith.constant 98 : index
    %115 = vector.load %arg9[%c0_68, %c98] : memref<4x640xf32, #tpu.memory_space<vmem>>, vector<4x384xf32>
    %c0_69 = arith.constant 0 : index
    %c8448 = arith.constant 8448 : index
    %116 = vector.load %arg2[%c0_69, %c8448] : memref<4x18816xf32, #tpu.memory_space<vmem>>, vector<4x384xf32>
    %117 = arith.mulf %115, %116 : vector<4x384xf32>
    %118 = arith.addf %114, %117 : vector<4x384xf32>
    %c0_70 = arith.constant 0 : index
    %c99 = arith.constant 99 : index
    %119 = vector.load %arg9[%c0_70, %c99] : memref<4x640xf32, #tpu.memory_space<vmem>>, vector<4x384xf32>
    %c0_71 = arith.constant 0 : index
    %c8832 = arith.constant 8832 : index
    %120 = vector.load %arg2[%c0_71, %c8832] : memref<4x18816xf32, #tpu.memory_space<vmem>>, vector<4x384xf32>
    %121 = arith.mulf %119, %120 : vector<4x384xf32>
    %122 = arith.addf %118, %121 : vector<4x384xf32>
    %c0_72 = arith.constant 0 : index
    %c100 = arith.constant 100 : index
    %123 = vector.load %arg9[%c0_72, %c100] : memref<4x640xf32, #tpu.memory_space<vmem>>, vector<4x384xf32>
    %c0_73 = arith.constant 0 : index
    %c9216 = arith.constant 9216 : index
    %124 = vector.load %arg2[%c0_73, %c9216] : memref<4x18816xf32, #tpu.memory_space<vmem>>, vector<4x384xf32>
    %125 = arith.mulf %123, %124 : vector<4x384xf32>
    %126 = arith.addf %122, %125 : vector<4x384xf32>
    %c0_74 = arith.constant 0 : index
    %c101 = arith.constant 101 : index
    %127 = vector.load %arg9[%c0_74, %c101] : memref<4x640xf32, #tpu.memory_space<vmem>>, vector<4x384xf32>
    %c0_75 = arith.constant 0 : index
    %c9600 = arith.constant 9600 : index
    %128 = vector.load %arg2[%c0_75, %c9600] : memref<4x18816xf32, #tpu.memory_space<vmem>>, vector<4x384xf32>
    %129 = arith.mulf %127, %128 : vector<4x384xf32>
    %130 = arith.addf %126, %129 : vector<4x384xf32>
    %c0_76 = arith.constant 0 : index
    %c102 = arith.constant 102 : index
    %131 = vector.load %arg9[%c0_76, %c102] : memref<4x640xf32, #tpu.memory_space<vmem>>, vector<4x384xf32>
    %c0_77 = arith.constant 0 : index
    %c9984 = arith.constant 9984 : index
    %132 = vector.load %arg2[%c0_77, %c9984] : memref<4x18816xf32, #tpu.memory_space<vmem>>, vector<4x384xf32>
    %133 = arith.mulf %131, %132 : vector<4x384xf32>
    %134 = arith.addf %130, %133 : vector<4x384xf32>
    %c0_78 = arith.constant 0 : index
    %c103 = arith.constant 103 : index
    %135 = vector.load %arg9[%c0_78, %c103] : memref<4x640xf32, #tpu.memory_space<vmem>>, vector<4x384xf32>
    %c0_79 = arith.constant 0 : index
    %c10368 = arith.constant 10368 : index
    %136 = vector.load %arg2[%c0_79, %c10368] : memref<4x18816xf32, #tpu.memory_space<vmem>>, vector<4x384xf32>
    %137 = arith.mulf %135, %136 : vector<4x384xf32>
    %138 = arith.addf %134, %137 : vector<4x384xf32>
    %c0_80 = arith.constant 0 : index
    %c121 = arith.constant 121 : index
    %139 = vector.load %arg9[%c0_80, %c121] : memref<4x640xf32, #tpu.memory_space<vmem>>, vector<4x384xf32>
    %c0_81 = arith.constant 0 : index
    %c10752 = arith.constant 10752 : index
    %140 = vector.load %arg2[%c0_81, %c10752] : memref<4x18816xf32, #tpu.memory_space<vmem>>, vector<4x384xf32>
    %141 = arith.mulf %139, %140 : vector<4x384xf32>
    %142 = arith.addf %138, %141 : vector<4x384xf32>
    %c0_82 = arith.constant 0 : index
    %c122 = arith.constant 122 : index
    %143 = vector.load %arg9[%c0_82, %c122] : memref<4x640xf32, #tpu.memory_space<vmem>>, vector<4x384xf32>
    %c0_83 = arith.constant 0 : index
    %c11136 = arith.constant 11136 : index
    %144 = vector.load %arg2[%c0_83, %c11136] : memref<4x18816xf32, #tpu.memory_space<vmem>>, vector<4x384xf32>
    %145 = arith.mulf %143, %144 : vector<4x384xf32>
    %146 = arith.addf %142, %145 : vector<4x384xf32>
    %c0_84 = arith.constant 0 : index
    %c123 = arith.constant 123 : index
    %147 = vector.load %arg9[%c0_84, %c123] : memref<4x640xf32, #tpu.memory_space<vmem>>, vector<4x384xf32>
    %c0_85 = arith.constant 0 : index
    %c11520 = arith.constant 11520 : index
    %148 = vector.load %arg2[%c0_85, %c11520] : memref<4x18816xf32, #tpu.memory_space<vmem>>, vector<4x384xf32>
    %149 = arith.mulf %147, %148 : vector<4x384xf32>
    %150 = arith.addf %146, %149 : vector<4x384xf32>
    %c0_86 = arith.constant 0 : index
    %c124 = arith.constant 124 : index
    %151 = vector.load %arg9[%c0_86, %c124] : memref<4x640xf32, #tpu.memory_space<vmem>>, vector<4x384xf32>
    %c0_87 = arith.constant 0 : index
    %c11904 = arith.constant 11904 : index
    %152 = vector.load %arg2[%c0_87, %c11904] : memref<4x18816xf32, #tpu.memory_space<vmem>>, vector<4x384xf32>
    %153 = arith.mulf %151, %152 : vector<4x384xf32>
    %154 = arith.addf %150, %153 : vector<4x384xf32>
    %c0_88 = arith.constant 0 : index
    %c125 = arith.constant 125 : index
    %155 = vector.load %arg9[%c0_88, %c125] : memref<4x640xf32, #tpu.memory_space<vmem>>, vector<4x384xf32>
    %c0_89 = arith.constant 0 : index
    %c12288 = arith.constant 12288 : index
    %156 = vector.load %arg2[%c0_89, %c12288] : memref<4x18816xf32, #tpu.memory_space<vmem>>, vector<4x384xf32>
    %157 = arith.mulf %155, %156 : vector<4x384xf32>
    %158 = arith.addf %154, %157 : vector<4x384xf32>
    %c0_90 = arith.constant 0 : index
    %c126 = arith.constant 126 : index
    %159 = vector.load %arg9[%c0_90, %c126] : memref<4x640xf32, #tpu.memory_space<vmem>>, vector<4x384xf32>
    %c0_91 = arith.constant 0 : index
    %c12672 = arith.constant 12672 : index
    %160 = vector.load %arg2[%c0_91, %c12672] : memref<4x18816xf32, #tpu.memory_space<vmem>>, vector<4x384xf32>
    %161 = arith.mulf %159, %160 : vector<4x384xf32>
    %162 = arith.addf %158, %161 : vector<4x384xf32>
    %c0_92 = arith.constant 0 : index
    %c127 = arith.constant 127 : index
    %163 = vector.load %arg9[%c0_92, %c127] : memref<4x640xf32, #tpu.memory_space<vmem>>, vector<4x384xf32>
    %c0_93 = arith.constant 0 : index
    %c13056 = arith.constant 13056 : index
    %164 = vector.load %arg2[%c0_93, %c13056] : memref<4x18816xf32, #tpu.memory_space<vmem>>, vector<4x384xf32>
    %165 = arith.mulf %163, %164 : vector<4x384xf32>
    %166 = arith.addf %162, %165 : vector<4x384xf32>
    %c0_94 = arith.constant 0 : index
    %c145 = arith.constant 145 : index
    %167 = vector.load %arg9[%c0_94, %c145] : memref<4x640xf32, #tpu.memory_space<vmem>>, vector<4x384xf32>
    %c0_95 = arith.constant 0 : index
    %c13440 = arith.constant 13440 : index
    %168 = vector.load %arg2[%c0_95, %c13440] : memref<4x18816xf32, #tpu.memory_space<vmem>>, vector<4x384xf32>
    %169 = arith.mulf %167, %168 : vector<4x384xf32>
    %170 = arith.addf %166, %169 : vector<4x384xf32>
    %c0_96 = arith.constant 0 : index
    %c146 = arith.constant 146 : index
    %171 = vector.load %arg9[%c0_96, %c146] : memref<4x640xf32, #tpu.memory_space<vmem>>, vector<4x384xf32>
    %c0_97 = arith.constant 0 : index
    %c13824 = arith.constant 13824 : index
    %172 = vector.load %arg2[%c0_97, %c13824] : memref<4x18816xf32, #tpu.memory_space<vmem>>, vector<4x384xf32>
    %173 = arith.mulf %171, %172 : vector<4x384xf32>
    %174 = arith.addf %170, %173 : vector<4x384xf32>
    %c0_98 = arith.constant 0 : index
    %c147 = arith.constant 147 : index
    %175 = vector.load %arg9[%c0_98, %c147] : memref<4x640xf32, #tpu.memory_space<vmem>>, vector<4x384xf32>
    %c0_99 = arith.constant 0 : index
    %c14208 = arith.constant 14208 : index
    %176 = vector.load %arg2[%c0_99, %c14208] : memref<4x18816xf32, #tpu.memory_space<vmem>>, vector<4x384xf32>
    %177 = arith.mulf %175, %176 : vector<4x384xf32>
    %178 = arith.addf %174, %177 : vector<4x384xf32>
    %c0_100 = arith.constant 0 : index
    %c148 = arith.constant 148 : index
    %179 = vector.load %arg9[%c0_100, %c148] : memref<4x640xf32, #tpu.memory_space<vmem>>, vector<4x384xf32>
    %c0_101 = arith.constant 0 : index
    %c14592 = arith.constant 14592 : index
    %180 = vector.load %arg2[%c0_101, %c14592] : memref<4x18816xf32, #tpu.memory_space<vmem>>, vector<4x384xf32>
    %181 = arith.mulf %179, %180 : vector<4x384xf32>
    %182 = arith.addf %178, %181 : vector<4x384xf32>
    %c0_102 = arith.constant 0 : index
    %c149 = arith.constant 149 : index
    %183 = vector.load %arg9[%c0_102, %c149] : memref<4x640xf32, #tpu.memory_space<vmem>>, vector<4x384xf32>
    %c0_103 = arith.constant 0 : index
    %c14976 = arith.constant 14976 : index
    %184 = vector.load %arg2[%c0_103, %c14976] : memref<4x18816xf32, #tpu.memory_space<vmem>>, vector<4x384xf32>
    %185 = arith.mulf %183, %184 : vector<4x384xf32>
    %186 = arith.addf %182, %185 : vector<4x384xf32>
    %c0_104 = arith.constant 0 : index
    %c150 = arith.constant 150 : index
    %187 = vector.load %arg9[%c0_104, %c150] : memref<4x640xf32, #tpu.memory_space<vmem>>, vector<4x384xf32>
    %c0_105 = arith.constant 0 : index
    %c15360 = arith.constant 15360 : index
    %188 = vector.load %arg2[%c0_105, %c15360] : memref<4x18816xf32, #tpu.memory_space<vmem>>, vector<4x384xf32>
    %189 = arith.mulf %187, %188 : vector<4x384xf32>
    %190 = arith.addf %186, %189 : vector<4x384xf32>
    %c0_106 = arith.constant 0 : index
    %c151 = arith.constant 151 : index
    %191 = vector.load %arg9[%c0_106, %c151] : memref<4x640xf32, #tpu.memory_space<vmem>>, vector<4x384xf32>
    %c0_107 = arith.constant 0 : index
    %c15744 = arith.constant 15744 : index
    %192 = vector.load %arg2[%c0_107, %c15744] : memref<4x18816xf32, #tpu.memory_space<vmem>>, vector<4x384xf32>
    %193 = arith.mulf %191, %192 : vector<4x384xf32>
    %194 = arith.addf %190, %193 : vector<4x384xf32>
    %c0_108 = arith.constant 0 : index
    %c169 = arith.constant 169 : index
    %195 = vector.load %arg9[%c0_108, %c169] : memref<4x640xf32, #tpu.memory_space<vmem>>, vector<4x384xf32>
    %c0_109 = arith.constant 0 : index
    %c16128 = arith.constant 16128 : index
    %196 = vector.load %arg2[%c0_109, %c16128] : memref<4x18816xf32, #tpu.memory_space<vmem>>, vector<4x384xf32>
    %197 = arith.mulf %195, %196 : vector<4x384xf32>
    %198 = arith.addf %194, %197 : vector<4x384xf32>
    %c0_110 = arith.constant 0 : index
    %c170 = arith.constant 170 : index
    %199 = vector.load %arg9[%c0_110, %c170] : memref<4x640xf32, #tpu.memory_space<vmem>>, vector<4x384xf32>
    %c0_111 = arith.constant 0 : index
    %c16512 = arith.constant 16512 : index
    %200 = vector.load %arg2[%c0_111, %c16512] : memref<4x18816xf32, #tpu.memory_space<vmem>>, vector<4x384xf32>
    %201 = arith.mulf %199, %200 : vector<4x384xf32>
    %202 = arith.addf %198, %201 : vector<4x384xf32>
    %c0_112 = arith.constant 0 : index
    %c171 = arith.constant 171 : index
    %203 = vector.load %arg9[%c0_112, %c171] : memref<4x640xf32, #tpu.memory_space<vmem>>, vector<4x384xf32>
    %c0_113 = arith.constant 0 : index
    %c16896 = arith.constant 16896 : index
    %204 = vector.load %arg2[%c0_113, %c16896] : memref<4x18816xf32, #tpu.memory_space<vmem>>, vector<4x384xf32>
    %205 = arith.mulf %203, %204 : vector<4x384xf32>
    %206 = arith.addf %202, %205 : vector<4x384xf32>
    %c0_114 = arith.constant 0 : index
    %c172 = arith.constant 172 : index
    %207 = vector.load %arg9[%c0_114, %c172] : memref<4x640xf32, #tpu.memory_space<vmem>>, vector<4x384xf32>
    %c0_115 = arith.constant 0 : index
    %c17280 = arith.constant 17280 : index
    %208 = vector.load %arg2[%c0_115, %c17280] : memref<4x18816xf32, #tpu.memory_space<vmem>>, vector<4x384xf32>
    %209 = arith.mulf %207, %208 : vector<4x384xf32>
    %210 = arith.addf %206, %209 : vector<4x384xf32>
    %c0_116 = arith.constant 0 : index
    %c173 = arith.constant 173 : index
    %211 = vector.load %arg9[%c0_116, %c173] : memref<4x640xf32, #tpu.memory_space<vmem>>, vector<4x384xf32>
    %c0_117 = arith.constant 0 : index
    %c17664 = arith.constant 17664 : index
    %212 = vector.load %arg2[%c0_117, %c17664] : memref<4x18816xf32, #tpu.memory_space<vmem>>, vector<4x384xf32>
    %213 = arith.mulf %211, %212 : vector<4x384xf32>
    %214 = arith.addf %210, %213 : vector<4x384xf32>
    %c0_118 = arith.constant 0 : index
    %c174 = arith.constant 174 : index
    %215 = vector.load %arg9[%c0_118, %c174] : memref<4x640xf32, #tpu.memory_space<vmem>>, vector<4x384xf32>
    %c0_119 = arith.constant 0 : index
    %c18048 = arith.constant 18048 : index
    %216 = vector.load %arg2[%c0_119, %c18048] : memref<4x18816xf32, #tpu.memory_space<vmem>>, vector<4x384xf32>
    %217 = arith.mulf %215, %216 : vector<4x384xf32>
    %218 = arith.addf %214, %217 : vector<4x384xf32>
    %c0_120 = arith.constant 0 : index
    %c175 = arith.constant 175 : index
    %219 = vector.load %arg9[%c0_120, %c175] : memref<4x640xf32, #tpu.memory_space<vmem>>, vector<4x384xf32>
    %c0_121 = arith.constant 0 : index
    %c18432 = arith.constant 18432 : index
    %220 = vector.load %arg2[%c0_121, %c18432] : memref<4x18816xf32, #tpu.memory_space<vmem>>, vector<4x384xf32>
    %221 = arith.mulf %219, %220 : vector<4x384xf32>
    %222 = arith.addf %218, %221 : vector<4x384xf32>
    %223 = vector.extract_strided_slice %222 {offsets = [0, 0], sizes = [2, 384], strides = [1, 1]} : vector<4x384xf32> to vector<2x384xf32>
    %224 = vector.extract_strided_slice %222 {offsets = [2, 0], sizes = [2, 384], strides = [1, 1]} : vector<4x384xf32> to vector<2x384xf32>
    %225 = arith.addf %223, %224 : vector<2x384xf32>
    %c0_122 = arith.constant 0 : index
    %226 = memref.load %arg7[%c0_122] : memref<1xf32, #tpu.memory_space<smem>>
    %227 = vector.broadcast %226 : f32 to vector<2x384xf32>
    %228 = arith.addf %225, %227 : vector<2x384xf32>
    %229 = arith.negf %228 : vector<2x384xf32>
    %230 = math.exp %229 : vector<2x384xf32>
    %cst_123 = arith.constant 1.000000e+00 : f32
    %231 = vector.broadcast %cst_123 : f32 to vector<2x384xf32>
    %232 = arith.addf %231, %230 : vector<2x384xf32>
    %233 = arith.divf %231, %232 : vector<2x384xf32>
    %c0_124 = arith.constant 0 : index
    %c0_125 = arith.constant 0 : index
    %234 = vector.load %arg6[%c0_124, %c0_125] : memref<8x384xf32, #tpu.memory_space<vmem>>, vector<8x384xf32>
    %c0_126 = arith.constant 0 : index
    %c0_127 = arith.constant 0 : index
    %235 = vector.load %arg10[%c0_126, %c0_127] : memref<8x640xf32, #tpu.memory_space<vmem>>, vector<8x384xf32>
    %c0_128 = arith.constant 0 : index
    %c0_129 = arith.constant 0 : index
    %236 = vector.load %arg3[%c0_128, %c0_129] : memref<8x31104xf32, #tpu.memory_space<vmem>>, vector<8x384xf32>
    %237 = arith.mulf %235, %236 : vector<8x384xf32>
    %238 = arith.addf %234, %237 : vector<8x384xf32>
    %c0_130 = arith.constant 0 : index
    %c1_131 = arith.constant 1 : index
    %239 = vector.load %arg10[%c0_130, %c1_131] : memref<8x640xf32, #tpu.memory_space<vmem>>, vector<8x384xf32>
    %c0_132 = arith.constant 0 : index
    %c384_133 = arith.constant 384 : index
    %240 = vector.load %arg3[%c0_132, %c384_133] : memref<8x31104xf32, #tpu.memory_space<vmem>>, vector<8x384xf32>
    %241 = arith.mulf %239, %240 : vector<8x384xf32>
    %242 = arith.addf %238, %241 : vector<8x384xf32>
    %c0_134 = arith.constant 0 : index
    %c2_135 = arith.constant 2 : index
    %243 = vector.load %arg10[%c0_134, %c2_135] : memref<8x640xf32, #tpu.memory_space<vmem>>, vector<8x384xf32>
    %c0_136 = arith.constant 0 : index
    %c768_137 = arith.constant 768 : index
    %244 = vector.load %arg3[%c0_136, %c768_137] : memref<8x31104xf32, #tpu.memory_space<vmem>>, vector<8x384xf32>
    %245 = arith.mulf %243, %244 : vector<8x384xf32>
    %246 = arith.addf %242, %245 : vector<8x384xf32>
    %c0_138 = arith.constant 0 : index
    %c3_139 = arith.constant 3 : index
    %247 = vector.load %arg10[%c0_138, %c3_139] : memref<8x640xf32, #tpu.memory_space<vmem>>, vector<8x384xf32>
    %c0_140 = arith.constant 0 : index
    %c1152_141 = arith.constant 1152 : index
    %248 = vector.load %arg3[%c0_140, %c1152_141] : memref<8x31104xf32, #tpu.memory_space<vmem>>, vector<8x384xf32>
    %249 = arith.mulf %247, %248 : vector<8x384xf32>
    %250 = arith.addf %246, %249 : vector<8x384xf32>
    %c0_142 = arith.constant 0 : index
    %c4_143 = arith.constant 4 : index
    %251 = vector.load %arg10[%c0_142, %c4_143] : memref<8x640xf32, #tpu.memory_space<vmem>>, vector<8x384xf32>
    %c0_144 = arith.constant 0 : index
    %c1536_145 = arith.constant 1536 : index
    %252 = vector.load %arg3[%c0_144, %c1536_145] : memref<8x31104xf32, #tpu.memory_space<vmem>>, vector<8x384xf32>
    %253 = arith.mulf %251, %252 : vector<8x384xf32>
    %254 = arith.addf %250, %253 : vector<8x384xf32>
    %c0_146 = arith.constant 0 : index
    %c5 = arith.constant 5 : index
    %255 = vector.load %arg10[%c0_146, %c5] : memref<8x640xf32, #tpu.memory_space<vmem>>, vector<8x384xf32>
    %c0_147 = arith.constant 0 : index
    %c1920_148 = arith.constant 1920 : index
    %256 = vector.load %arg3[%c0_147, %c1920_148] : memref<8x31104xf32, #tpu.memory_space<vmem>>, vector<8x384xf32>
    %257 = arith.mulf %255, %256 : vector<8x384xf32>
    %258 = arith.addf %254, %257 : vector<8x384xf32>
    %c0_149 = arith.constant 0 : index
    %c6 = arith.constant 6 : index
    %259 = vector.load %arg10[%c0_149, %c6] : memref<8x640xf32, #tpu.memory_space<vmem>>, vector<8x384xf32>
    %c0_150 = arith.constant 0 : index
    %c2304_151 = arith.constant 2304 : index
    %260 = vector.load %arg3[%c0_150, %c2304_151] : memref<8x31104xf32, #tpu.memory_space<vmem>>, vector<8x384xf32>
    %261 = arith.mulf %259, %260 : vector<8x384xf32>
    %262 = arith.addf %258, %261 : vector<8x384xf32>
    %c0_152 = arith.constant 0 : index
    %c7 = arith.constant 7 : index
    %263 = vector.load %arg10[%c0_152, %c7] : memref<8x640xf32, #tpu.memory_space<vmem>>, vector<8x384xf32>
    %c0_153 = arith.constant 0 : index
    %c2688_154 = arith.constant 2688 : index
    %264 = vector.load %arg3[%c0_153, %c2688_154] : memref<8x31104xf32, #tpu.memory_space<vmem>>, vector<8x384xf32>
    %265 = arith.mulf %263, %264 : vector<8x384xf32>
    %266 = arith.addf %262, %265 : vector<8x384xf32>
    %c0_155 = arith.constant 0 : index
    %c8 = arith.constant 8 : index
    %267 = vector.load %arg10[%c0_155, %c8] : memref<8x640xf32, #tpu.memory_space<vmem>>, vector<8x384xf32>
    %c0_156 = arith.constant 0 : index
    %c3072_157 = arith.constant 3072 : index
    %268 = vector.load %arg3[%c0_156, %c3072_157] : memref<8x31104xf32, #tpu.memory_space<vmem>>, vector<8x384xf32>
    %269 = arith.mulf %267, %268 : vector<8x384xf32>
    %270 = arith.addf %266, %269 : vector<8x384xf32>
    %c0_158 = arith.constant 0 : index
    %c24 = arith.constant 24 : index
    %271 = vector.load %arg10[%c0_158, %c24] : memref<8x640xf32, #tpu.memory_space<vmem>>, vector<8x384xf32>
    %c0_159 = arith.constant 0 : index
    %c3456_160 = arith.constant 3456 : index
    %272 = vector.load %arg3[%c0_159, %c3456_160] : memref<8x31104xf32, #tpu.memory_space<vmem>>, vector<8x384xf32>
    %273 = arith.mulf %271, %272 : vector<8x384xf32>
    %274 = arith.addf %270, %273 : vector<8x384xf32>
    %c0_161 = arith.constant 0 : index
    %c25_162 = arith.constant 25 : index
    %275 = vector.load %arg10[%c0_161, %c25_162] : memref<8x640xf32, #tpu.memory_space<vmem>>, vector<8x384xf32>
    %c0_163 = arith.constant 0 : index
    %c3840_164 = arith.constant 3840 : index
    %276 = vector.load %arg3[%c0_163, %c3840_164] : memref<8x31104xf32, #tpu.memory_space<vmem>>, vector<8x384xf32>
    %277 = arith.mulf %275, %276 : vector<8x384xf32>
    %278 = arith.addf %274, %277 : vector<8x384xf32>
    %c0_165 = arith.constant 0 : index
    %c26_166 = arith.constant 26 : index
    %279 = vector.load %arg10[%c0_165, %c26_166] : memref<8x640xf32, #tpu.memory_space<vmem>>, vector<8x384xf32>
    %c0_167 = arith.constant 0 : index
    %c4224_168 = arith.constant 4224 : index
    %280 = vector.load %arg3[%c0_167, %c4224_168] : memref<8x31104xf32, #tpu.memory_space<vmem>>, vector<8x384xf32>
    %281 = arith.mulf %279, %280 : vector<8x384xf32>
    %282 = arith.addf %278, %281 : vector<8x384xf32>
    %c0_169 = arith.constant 0 : index
    %c27_170 = arith.constant 27 : index
    %283 = vector.load %arg10[%c0_169, %c27_170] : memref<8x640xf32, #tpu.memory_space<vmem>>, vector<8x384xf32>
    %c0_171 = arith.constant 0 : index
    %c4608_172 = arith.constant 4608 : index
    %284 = vector.load %arg3[%c0_171, %c4608_172] : memref<8x31104xf32, #tpu.memory_space<vmem>>, vector<8x384xf32>
    %285 = arith.mulf %283, %284 : vector<8x384xf32>
    %286 = arith.addf %282, %285 : vector<8x384xf32>
    %c0_173 = arith.constant 0 : index
    %c28_174 = arith.constant 28 : index
    %287 = vector.load %arg10[%c0_173, %c28_174] : memref<8x640xf32, #tpu.memory_space<vmem>>, vector<8x384xf32>
    %c0_175 = arith.constant 0 : index
    %c4992_176 = arith.constant 4992 : index
    %288 = vector.load %arg3[%c0_175, %c4992_176] : memref<8x31104xf32, #tpu.memory_space<vmem>>, vector<8x384xf32>
    %289 = arith.mulf %287, %288 : vector<8x384xf32>
    %290 = arith.addf %286, %289 : vector<8x384xf32>
    %c0_177 = arith.constant 0 : index
    %c29_178 = arith.constant 29 : index
    %291 = vector.load %arg10[%c0_177, %c29_178] : memref<8x640xf32, #tpu.memory_space<vmem>>, vector<8x384xf32>
    %c0_179 = arith.constant 0 : index
    %c5376_180 = arith.constant 5376 : index
    %292 = vector.load %arg3[%c0_179, %c5376_180] : memref<8x31104xf32, #tpu.memory_space<vmem>>, vector<8x384xf32>
    %293 = arith.mulf %291, %292 : vector<8x384xf32>
    %294 = arith.addf %290, %293 : vector<8x384xf32>
    %c0_181 = arith.constant 0 : index
    %c30_182 = arith.constant 30 : index
    %295 = vector.load %arg10[%c0_181, %c30_182] : memref<8x640xf32, #tpu.memory_space<vmem>>, vector<8x384xf32>
    %c0_183 = arith.constant 0 : index
    %c5760_184 = arith.constant 5760 : index
    %296 = vector.load %arg3[%c0_183, %c5760_184] : memref<8x31104xf32, #tpu.memory_space<vmem>>, vector<8x384xf32>
    %297 = arith.mulf %295, %296 : vector<8x384xf32>
    %298 = arith.addf %294, %297 : vector<8x384xf32>
    %c0_185 = arith.constant 0 : index
    %c31_186 = arith.constant 31 : index
    %299 = vector.load %arg10[%c0_185, %c31_186] : memref<8x640xf32, #tpu.memory_space<vmem>>, vector<8x384xf32>
    %c0_187 = arith.constant 0 : index
    %c6144_188 = arith.constant 6144 : index
    %300 = vector.load %arg3[%c0_187, %c6144_188] : memref<8x31104xf32, #tpu.memory_space<vmem>>, vector<8x384xf32>
    %301 = arith.mulf %299, %300 : vector<8x384xf32>
    %302 = arith.addf %298, %301 : vector<8x384xf32>
    %c0_189 = arith.constant 0 : index
    %c32 = arith.constant 32 : index
    %303 = vector.load %arg10[%c0_189, %c32] : memref<8x640xf32, #tpu.memory_space<vmem>>, vector<8x384xf32>
    %c0_190 = arith.constant 0 : index
    %c6528_191 = arith.constant 6528 : index
    %304 = vector.load %arg3[%c0_190, %c6528_191] : memref<8x31104xf32, #tpu.memory_space<vmem>>, vector<8x384xf32>
    %305 = arith.mulf %303, %304 : vector<8x384xf32>
    %306 = arith.addf %302, %305 : vector<8x384xf32>
    %c0_192 = arith.constant 0 : index
    %c48 = arith.constant 48 : index
    %307 = vector.load %arg10[%c0_192, %c48] : memref<8x640xf32, #tpu.memory_space<vmem>>, vector<8x384xf32>
    %c0_193 = arith.constant 0 : index
    %c6912_194 = arith.constant 6912 : index
    %308 = vector.load %arg3[%c0_193, %c6912_194] : memref<8x31104xf32, #tpu.memory_space<vmem>>, vector<8x384xf32>
    %309 = arith.mulf %307, %308 : vector<8x384xf32>
    %310 = arith.addf %306, %309 : vector<8x384xf32>
    %c0_195 = arith.constant 0 : index
    %c49_196 = arith.constant 49 : index
    %311 = vector.load %arg10[%c0_195, %c49_196] : memref<8x640xf32, #tpu.memory_space<vmem>>, vector<8x384xf32>
    %c0_197 = arith.constant 0 : index
    %c7296_198 = arith.constant 7296 : index
    %312 = vector.load %arg3[%c0_197, %c7296_198] : memref<8x31104xf32, #tpu.memory_space<vmem>>, vector<8x384xf32>
    %313 = arith.mulf %311, %312 : vector<8x384xf32>
    %314 = arith.addf %310, %313 : vector<8x384xf32>
    %c0_199 = arith.constant 0 : index
    %c50_200 = arith.constant 50 : index
    %315 = vector.load %arg10[%c0_199, %c50_200] : memref<8x640xf32, #tpu.memory_space<vmem>>, vector<8x384xf32>
    %c0_201 = arith.constant 0 : index
    %c7680_202 = arith.constant 7680 : index
    %316 = vector.load %arg3[%c0_201, %c7680_202] : memref<8x31104xf32, #tpu.memory_space<vmem>>, vector<8x384xf32>
    %317 = arith.mulf %315, %316 : vector<8x384xf32>
    %318 = arith.addf %314, %317 : vector<8x384xf32>
    %c0_203 = arith.constant 0 : index
    %c51_204 = arith.constant 51 : index
    %319 = vector.load %arg10[%c0_203, %c51_204] : memref<8x640xf32, #tpu.memory_space<vmem>>, vector<8x384xf32>
    %c0_205 = arith.constant 0 : index
    %c8064_206 = arith.constant 8064 : index
    %320 = vector.load %arg3[%c0_205, %c8064_206] : memref<8x31104xf32, #tpu.memory_space<vmem>>, vector<8x384xf32>
    %321 = arith.mulf %319, %320 : vector<8x384xf32>
    %322 = arith.addf %318, %321 : vector<8x384xf32>
    %c0_207 = arith.constant 0 : index
    %c52_208 = arith.constant 52 : index
    %323 = vector.load %arg10[%c0_207, %c52_208] : memref<8x640xf32, #tpu.memory_space<vmem>>, vector<8x384xf32>
    %c0_209 = arith.constant 0 : index
    %c8448_210 = arith.constant 8448 : index
    %324 = vector.load %arg3[%c0_209, %c8448_210] : memref<8x31104xf32, #tpu.memory_space<vmem>>, vector<8x384xf32>
    %325 = arith.mulf %323, %324 : vector<8x384xf32>
    %326 = arith.addf %322, %325 : vector<8x384xf32>
    %c0_211 = arith.constant 0 : index
    %c53_212 = arith.constant 53 : index
    %327 = vector.load %arg10[%c0_211, %c53_212] : memref<8x640xf32, #tpu.memory_space<vmem>>, vector<8x384xf32>
    %c0_213 = arith.constant 0 : index
    %c8832_214 = arith.constant 8832 : index
    %328 = vector.load %arg3[%c0_213, %c8832_214] : memref<8x31104xf32, #tpu.memory_space<vmem>>, vector<8x384xf32>
    %329 = arith.mulf %327, %328 : vector<8x384xf32>
    %330 = arith.addf %326, %329 : vector<8x384xf32>
    %c0_215 = arith.constant 0 : index
    %c54_216 = arith.constant 54 : index
    %331 = vector.load %arg10[%c0_215, %c54_216] : memref<8x640xf32, #tpu.memory_space<vmem>>, vector<8x384xf32>
    %c0_217 = arith.constant 0 : index
    %c9216_218 = arith.constant 9216 : index
    %332 = vector.load %arg3[%c0_217, %c9216_218] : memref<8x31104xf32, #tpu.memory_space<vmem>>, vector<8x384xf32>
    %333 = arith.mulf %331, %332 : vector<8x384xf32>
    %334 = arith.addf %330, %333 : vector<8x384xf32>
    %c0_219 = arith.constant 0 : index
    %c55_220 = arith.constant 55 : index
    %335 = vector.load %arg10[%c0_219, %c55_220] : memref<8x640xf32, #tpu.memory_space<vmem>>, vector<8x384xf32>
    %c0_221 = arith.constant 0 : index
    %c9600_222 = arith.constant 9600 : index
    %336 = vector.load %arg3[%c0_221, %c9600_222] : memref<8x31104xf32, #tpu.memory_space<vmem>>, vector<8x384xf32>
    %337 = arith.mulf %335, %336 : vector<8x384xf32>
    %338 = arith.addf %334, %337 : vector<8x384xf32>
    %c0_223 = arith.constant 0 : index
    %c56 = arith.constant 56 : index
    %339 = vector.load %arg10[%c0_223, %c56] : memref<8x640xf32, #tpu.memory_space<vmem>>, vector<8x384xf32>
    %c0_224 = arith.constant 0 : index
    %c9984_225 = arith.constant 9984 : index
    %340 = vector.load %arg3[%c0_224, %c9984_225] : memref<8x31104xf32, #tpu.memory_space<vmem>>, vector<8x384xf32>
    %341 = arith.mulf %339, %340 : vector<8x384xf32>
    %342 = arith.addf %338, %341 : vector<8x384xf32>
    %c0_226 = arith.constant 0 : index
    %c72 = arith.constant 72 : index
    %343 = vector.load %arg10[%c0_226, %c72] : memref<8x640xf32, #tpu.memory_space<vmem>>, vector<8x384xf32>
    %c0_227 = arith.constant 0 : index
    %c10368_228 = arith.constant 10368 : index
    %344 = vector.load %arg3[%c0_227, %c10368_228] : memref<8x31104xf32, #tpu.memory_space<vmem>>, vector<8x384xf32>
    %345 = arith.mulf %343, %344 : vector<8x384xf32>
    %346 = arith.addf %342, %345 : vector<8x384xf32>
    %c0_229 = arith.constant 0 : index
    %c73_230 = arith.constant 73 : index
    %347 = vector.load %arg10[%c0_229, %c73_230] : memref<8x640xf32, #tpu.memory_space<vmem>>, vector<8x384xf32>
    %c0_231 = arith.constant 0 : index
    %c10752_232 = arith.constant 10752 : index
    %348 = vector.load %arg3[%c0_231, %c10752_232] : memref<8x31104xf32, #tpu.memory_space<vmem>>, vector<8x384xf32>
    %349 = arith.mulf %347, %348 : vector<8x384xf32>
    %350 = arith.addf %346, %349 : vector<8x384xf32>
    %c0_233 = arith.constant 0 : index
    %c74_234 = arith.constant 74 : index
    %351 = vector.load %arg10[%c0_233, %c74_234] : memref<8x640xf32, #tpu.memory_space<vmem>>, vector<8x384xf32>
    %c0_235 = arith.constant 0 : index
    %c11136_236 = arith.constant 11136 : index
    %352 = vector.load %arg3[%c0_235, %c11136_236] : memref<8x31104xf32, #tpu.memory_space<vmem>>, vector<8x384xf32>
    %353 = arith.mulf %351, %352 : vector<8x384xf32>
    %354 = arith.addf %350, %353 : vector<8x384xf32>
    %c0_237 = arith.constant 0 : index
    %c75_238 = arith.constant 75 : index
    %355 = vector.load %arg10[%c0_237, %c75_238] : memref<8x640xf32, #tpu.memory_space<vmem>>, vector<8x384xf32>
    %c0_239 = arith.constant 0 : index
    %c11520_240 = arith.constant 11520 : index
    %356 = vector.load %arg3[%c0_239, %c11520_240] : memref<8x31104xf32, #tpu.memory_space<vmem>>, vector<8x384xf32>
    %357 = arith.mulf %355, %356 : vector<8x384xf32>
    %358 = arith.addf %354, %357 : vector<8x384xf32>
    %c0_241 = arith.constant 0 : index
    %c76_242 = arith.constant 76 : index
    %359 = vector.load %arg10[%c0_241, %c76_242] : memref<8x640xf32, #tpu.memory_space<vmem>>, vector<8x384xf32>
    %c0_243 = arith.constant 0 : index
    %c11904_244 = arith.constant 11904 : index
    %360 = vector.load %arg3[%c0_243, %c11904_244] : memref<8x31104xf32, #tpu.memory_space<vmem>>, vector<8x384xf32>
    %361 = arith.mulf %359, %360 : vector<8x384xf32>
    %362 = arith.addf %358, %361 : vector<8x384xf32>
    %c0_245 = arith.constant 0 : index
    %c77_246 = arith.constant 77 : index
    %363 = vector.load %arg10[%c0_245, %c77_246] : memref<8x640xf32, #tpu.memory_space<vmem>>, vector<8x384xf32>
    %c0_247 = arith.constant 0 : index
    %c12288_248 = arith.constant 12288 : index
    %364 = vector.load %arg3[%c0_247, %c12288_248] : memref<8x31104xf32, #tpu.memory_space<vmem>>, vector<8x384xf32>
    %365 = arith.mulf %363, %364 : vector<8x384xf32>
    %366 = arith.addf %362, %365 : vector<8x384xf32>
    %c0_249 = arith.constant 0 : index
    %c78_250 = arith.constant 78 : index
    %367 = vector.load %arg10[%c0_249, %c78_250] : memref<8x640xf32, #tpu.memory_space<vmem>>, vector<8x384xf32>
    %c0_251 = arith.constant 0 : index
    %c12672_252 = arith.constant 12672 : index
    %368 = vector.load %arg3[%c0_251, %c12672_252] : memref<8x31104xf32, #tpu.memory_space<vmem>>, vector<8x384xf32>
    %369 = arith.mulf %367, %368 : vector<8x384xf32>
    %370 = arith.addf %366, %369 : vector<8x384xf32>
    %c0_253 = arith.constant 0 : index
    %c79_254 = arith.constant 79 : index
    %371 = vector.load %arg10[%c0_253, %c79_254] : memref<8x640xf32, #tpu.memory_space<vmem>>, vector<8x384xf32>
    %c0_255 = arith.constant 0 : index
    %c13056_256 = arith.constant 13056 : index
    %372 = vector.load %arg3[%c0_255, %c13056_256] : memref<8x31104xf32, #tpu.memory_space<vmem>>, vector<8x384xf32>
    %373 = arith.mulf %371, %372 : vector<8x384xf32>
    %374 = arith.addf %370, %373 : vector<8x384xf32>
    %c0_257 = arith.constant 0 : index
    %c80 = arith.constant 80 : index
    %375 = vector.load %arg10[%c0_257, %c80] : memref<8x640xf32, #tpu.memory_space<vmem>>, vector<8x384xf32>
    %c0_258 = arith.constant 0 : index
    %c13440_259 = arith.constant 13440 : index
    %376 = vector.load %arg3[%c0_258, %c13440_259] : memref<8x31104xf32, #tpu.memory_space<vmem>>, vector<8x384xf32>
    %377 = arith.mulf %375, %376 : vector<8x384xf32>
    %378 = arith.addf %374, %377 : vector<8x384xf32>
    %c0_260 = arith.constant 0 : index
    %c96 = arith.constant 96 : index
    %379 = vector.load %arg10[%c0_260, %c96] : memref<8x640xf32, #tpu.memory_space<vmem>>, vector<8x384xf32>
    %c0_261 = arith.constant 0 : index
    %c13824_262 = arith.constant 13824 : index
    %380 = vector.load %arg3[%c0_261, %c13824_262] : memref<8x31104xf32, #tpu.memory_space<vmem>>, vector<8x384xf32>
    %381 = arith.mulf %379, %380 : vector<8x384xf32>
    %382 = arith.addf %378, %381 : vector<8x384xf32>
    %c0_263 = arith.constant 0 : index
    %c97_264 = arith.constant 97 : index
    %383 = vector.load %arg10[%c0_263, %c97_264] : memref<8x640xf32, #tpu.memory_space<vmem>>, vector<8x384xf32>
    %c0_265 = arith.constant 0 : index
    %c14208_266 = arith.constant 14208 : index
    %384 = vector.load %arg3[%c0_265, %c14208_266] : memref<8x31104xf32, #tpu.memory_space<vmem>>, vector<8x384xf32>
    %385 = arith.mulf %383, %384 : vector<8x384xf32>
    %386 = arith.addf %382, %385 : vector<8x384xf32>
    %c0_267 = arith.constant 0 : index
    %c98_268 = arith.constant 98 : index
    %387 = vector.load %arg10[%c0_267, %c98_268] : memref<8x640xf32, #tpu.memory_space<vmem>>, vector<8x384xf32>
    %c0_269 = arith.constant 0 : index
    %c14592_270 = arith.constant 14592 : index
    %388 = vector.load %arg3[%c0_269, %c14592_270] : memref<8x31104xf32, #tpu.memory_space<vmem>>, vector<8x384xf32>
    %389 = arith.mulf %387, %388 : vector<8x384xf32>
    %390 = arith.addf %386, %389 : vector<8x384xf32>
    %c0_271 = arith.constant 0 : index
    %c99_272 = arith.constant 99 : index
    %391 = vector.load %arg10[%c0_271, %c99_272] : memref<8x640xf32, #tpu.memory_space<vmem>>, vector<8x384xf32>
    %c0_273 = arith.constant 0 : index
    %c14976_274 = arith.constant 14976 : index
    %392 = vector.load %arg3[%c0_273, %c14976_274] : memref<8x31104xf32, #tpu.memory_space<vmem>>, vector<8x384xf32>
    %393 = arith.mulf %391, %392 : vector<8x384xf32>
    %394 = arith.addf %390, %393 : vector<8x384xf32>
    %c0_275 = arith.constant 0 : index
    %c100_276 = arith.constant 100 : index
    %395 = vector.load %arg10[%c0_275, %c100_276] : memref<8x640xf32, #tpu.memory_space<vmem>>, vector<8x384xf32>
    %c0_277 = arith.constant 0 : index
    %c15360_278 = arith.constant 15360 : index
    %396 = vector.load %arg3[%c0_277, %c15360_278] : memref<8x31104xf32, #tpu.memory_space<vmem>>, vector<8x384xf32>
    %397 = arith.mulf %395, %396 : vector<8x384xf32>
    %398 = arith.addf %394, %397 : vector<8x384xf32>
    %c0_279 = arith.constant 0 : index
    %c101_280 = arith.constant 101 : index
    %399 = vector.load %arg10[%c0_279, %c101_280] : memref<8x640xf32, #tpu.memory_space<vmem>>, vector<8x384xf32>
    %c0_281 = arith.constant 0 : index
    %c15744_282 = arith.constant 15744 : index
    %400 = vector.load %arg3[%c0_281, %c15744_282] : memref<8x31104xf32, #tpu.memory_space<vmem>>, vector<8x384xf32>
    %401 = arith.mulf %399, %400 : vector<8x384xf32>
    %402 = arith.addf %398, %401 : vector<8x384xf32>
    %c0_283 = arith.constant 0 : index
    %c102_284 = arith.constant 102 : index
    %403 = vector.load %arg10[%c0_283, %c102_284] : memref<8x640xf32, #tpu.memory_space<vmem>>, vector<8x384xf32>
    %c0_285 = arith.constant 0 : index
    %c16128_286 = arith.constant 16128 : index
    %404 = vector.load %arg3[%c0_285, %c16128_286] : memref<8x31104xf32, #tpu.memory_space<vmem>>, vector<8x384xf32>
    %405 = arith.mulf %403, %404 : vector<8x384xf32>
    %406 = arith.addf %402, %405 : vector<8x384xf32>
    %c0_287 = arith.constant 0 : index
    %c103_288 = arith.constant 103 : index
    %407 = vector.load %arg10[%c0_287, %c103_288] : memref<8x640xf32, #tpu.memory_space<vmem>>, vector<8x384xf32>
    %c0_289 = arith.constant 0 : index
    %c16512_290 = arith.constant 16512 : index
    %408 = vector.load %arg3[%c0_289, %c16512_290] : memref<8x31104xf32, #tpu.memory_space<vmem>>, vector<8x384xf32>
    %409 = arith.mulf %407, %408 : vector<8x384xf32>
    %410 = arith.addf %406, %409 : vector<8x384xf32>
    %c0_291 = arith.constant 0 : index
    %c104 = arith.constant 104 : index
    %411 = vector.load %arg10[%c0_291, %c104] : memref<8x640xf32, #tpu.memory_space<vmem>>, vector<8x384xf32>
    %c0_292 = arith.constant 0 : index
    %c16896_293 = arith.constant 16896 : index
    %412 = vector.load %arg3[%c0_292, %c16896_293] : memref<8x31104xf32, #tpu.memory_space<vmem>>, vector<8x384xf32>
    %413 = arith.mulf %411, %412 : vector<8x384xf32>
    %414 = arith.addf %410, %413 : vector<8x384xf32>
    %c0_294 = arith.constant 0 : index
    %c120 = arith.constant 120 : index
    %415 = vector.load %arg10[%c0_294, %c120] : memref<8x640xf32, #tpu.memory_space<vmem>>, vector<8x384xf32>
    %c0_295 = arith.constant 0 : index
    %c17280_296 = arith.constant 17280 : index
    %416 = vector.load %arg3[%c0_295, %c17280_296] : memref<8x31104xf32, #tpu.memory_space<vmem>>, vector<8x384xf32>
    %417 = arith.mulf %415, %416 : vector<8x384xf32>
    %418 = arith.addf %414, %417 : vector<8x384xf32>
    %c0_297 = arith.constant 0 : index
    %c121_298 = arith.constant 121 : index
    %419 = vector.load %arg10[%c0_297, %c121_298] : memref<8x640xf32, #tpu.memory_space<vmem>>, vector<8x384xf32>
    %c0_299 = arith.constant 0 : index
    %c17664_300 = arith.constant 17664 : index
    %420 = vector.load %arg3[%c0_299, %c17664_300] : memref<8x31104xf32, #tpu.memory_space<vmem>>, vector<8x384xf32>
    %421 = arith.mulf %419, %420 : vector<8x384xf32>
    %422 = arith.addf %418, %421 : vector<8x384xf32>
    %c0_301 = arith.constant 0 : index
    %c122_302 = arith.constant 122 : index
    %423 = vector.load %arg10[%c0_301, %c122_302] : memref<8x640xf32, #tpu.memory_space<vmem>>, vector<8x384xf32>
    %c0_303 = arith.constant 0 : index
    %c18048_304 = arith.constant 18048 : index
    %424 = vector.load %arg3[%c0_303, %c18048_304] : memref<8x31104xf32, #tpu.memory_space<vmem>>, vector<8x384xf32>
    %425 = arith.mulf %423, %424 : vector<8x384xf32>
    %426 = arith.addf %422, %425 : vector<8x384xf32>
    %c0_305 = arith.constant 0 : index
    %c123_306 = arith.constant 123 : index
    %427 = vector.load %arg10[%c0_305, %c123_306] : memref<8x640xf32, #tpu.memory_space<vmem>>, vector<8x384xf32>
    %c0_307 = arith.constant 0 : index
    %c18432_308 = arith.constant 18432 : index
    %428 = vector.load %arg3[%c0_307, %c18432_308] : memref<8x31104xf32, #tpu.memory_space<vmem>>, vector<8x384xf32>
    %429 = arith.mulf %427, %428 : vector<8x384xf32>
    %430 = arith.addf %426, %429 : vector<8x384xf32>
    %c0_309 = arith.constant 0 : index
    %c124_310 = arith.constant 124 : index
    %431 = vector.load %arg10[%c0_309, %c124_310] : memref<8x640xf32, #tpu.memory_space<vmem>>, vector<8x384xf32>
    %c0_311 = arith.constant 0 : index
    %c18816 = arith.constant 18816 : index
    %432 = vector.load %arg3[%c0_311, %c18816] : memref<8x31104xf32, #tpu.memory_space<vmem>>, vector<8x384xf32>
    %433 = arith.mulf %431, %432 : vector<8x384xf32>
    %434 = arith.addf %430, %433 : vector<8x384xf32>
    %c0_312 = arith.constant 0 : index
    %c125_313 = arith.constant 125 : index
    %435 = vector.load %arg10[%c0_312, %c125_313] : memref<8x640xf32, #tpu.memory_space<vmem>>, vector<8x384xf32>
    %c0_314 = arith.constant 0 : index
    %c19200 = arith.constant 19200 : index
    %436 = vector.load %arg3[%c0_314, %c19200] : memref<8x31104xf32, #tpu.memory_space<vmem>>, vector<8x384xf32>
    %437 = arith.mulf %435, %436 : vector<8x384xf32>
    %438 = arith.addf %434, %437 : vector<8x384xf32>
    %c0_315 = arith.constant 0 : index
    %c126_316 = arith.constant 126 : index
    %439 = vector.load %arg10[%c0_315, %c126_316] : memref<8x640xf32, #tpu.memory_space<vmem>>, vector<8x384xf32>
    %c0_317 = arith.constant 0 : index
    %c19584 = arith.constant 19584 : index
    %440 = vector.load %arg3[%c0_317, %c19584] : memref<8x31104xf32, #tpu.memory_space<vmem>>, vector<8x384xf32>
    %441 = arith.mulf %439, %440 : vector<8x384xf32>
    %442 = arith.addf %438, %441 : vector<8x384xf32>
    %c0_318 = arith.constant 0 : index
    %c127_319 = arith.constant 127 : index
    %443 = vector.load %arg10[%c0_318, %c127_319] : memref<8x640xf32, #tpu.memory_space<vmem>>, vector<8x384xf32>
    %c0_320 = arith.constant 0 : index
    %c19968 = arith.constant 19968 : index
    %444 = vector.load %arg3[%c0_320, %c19968] : memref<8x31104xf32, #tpu.memory_space<vmem>>, vector<8x384xf32>
    %445 = arith.mulf %443, %444 : vector<8x384xf32>
    %446 = arith.addf %442, %445 : vector<8x384xf32>
    %c0_321 = arith.constant 0 : index
    %c128 = arith.constant 128 : index
    %447 = vector.load %arg10[%c0_321, %c128] : memref<8x640xf32, #tpu.memory_space<vmem>>, vector<8x384xf32>
    %c0_322 = arith.constant 0 : index
    %c20352 = arith.constant 20352 : index
    %448 = vector.load %arg3[%c0_322, %c20352] : memref<8x31104xf32, #tpu.memory_space<vmem>>, vector<8x384xf32>
    %449 = arith.mulf %447, %448 : vector<8x384xf32>
    %450 = arith.addf %446, %449 : vector<8x384xf32>
    %c0_323 = arith.constant 0 : index
    %c144 = arith.constant 144 : index
    %451 = vector.load %arg10[%c0_323, %c144] : memref<8x640xf32, #tpu.memory_space<vmem>>, vector<8x384xf32>
    %c0_324 = arith.constant 0 : index
    %c20736 = arith.constant 20736 : index
    %452 = vector.load %arg3[%c0_324, %c20736] : memref<8x31104xf32, #tpu.memory_space<vmem>>, vector<8x384xf32>
    %453 = arith.mulf %451, %452 : vector<8x384xf32>
    %454 = arith.addf %450, %453 : vector<8x384xf32>
    %c0_325 = arith.constant 0 : index
    %c145_326 = arith.constant 145 : index
    %455 = vector.load %arg10[%c0_325, %c145_326] : memref<8x640xf32, #tpu.memory_space<vmem>>, vector<8x384xf32>
    %c0_327 = arith.constant 0 : index
    %c21120 = arith.constant 21120 : index
    %456 = vector.load %arg3[%c0_327, %c21120] : memref<8x31104xf32, #tpu.memory_space<vmem>>, vector<8x384xf32>
    %457 = arith.mulf %455, %456 : vector<8x384xf32>
    %458 = arith.addf %454, %457 : vector<8x384xf32>
    %c0_328 = arith.constant 0 : index
    %c146_329 = arith.constant 146 : index
    %459 = vector.load %arg10[%c0_328, %c146_329] : memref<8x640xf32, #tpu.memory_space<vmem>>, vector<8x384xf32>
    %c0_330 = arith.constant 0 : index
    %c21504 = arith.constant 21504 : index
    %460 = vector.load %arg3[%c0_330, %c21504] : memref<8x31104xf32, #tpu.memory_space<vmem>>, vector<8x384xf32>
    %461 = arith.mulf %459, %460 : vector<8x384xf32>
    %462 = arith.addf %458, %461 : vector<8x384xf32>
    %c0_331 = arith.constant 0 : index
    %c147_332 = arith.constant 147 : index
    %463 = vector.load %arg10[%c0_331, %c147_332] : memref<8x640xf32, #tpu.memory_space<vmem>>, vector<8x384xf32>
    %c0_333 = arith.constant 0 : index
    %c21888 = arith.constant 21888 : index
    %464 = vector.load %arg3[%c0_333, %c21888] : memref<8x31104xf32, #tpu.memory_space<vmem>>, vector<8x384xf32>
    %465 = arith.mulf %463, %464 : vector<8x384xf32>
    %466 = arith.addf %462, %465 : vector<8x384xf32>
    %c0_334 = arith.constant 0 : index
    %c148_335 = arith.constant 148 : index
    %467 = vector.load %arg10[%c0_334, %c148_335] : memref<8x640xf32, #tpu.memory_space<vmem>>, vector<8x384xf32>
    %c0_336 = arith.constant 0 : index
    %c22272 = arith.constant 22272 : index
    %468 = vector.load %arg3[%c0_336, %c22272] : memref<8x31104xf32, #tpu.memory_space<vmem>>, vector<8x384xf32>
    %469 = arith.mulf %467, %468 : vector<8x384xf32>
    %470 = arith.addf %466, %469 : vector<8x384xf32>
    %c0_337 = arith.constant 0 : index
    %c149_338 = arith.constant 149 : index
    %471 = vector.load %arg10[%c0_337, %c149_338] : memref<8x640xf32, #tpu.memory_space<vmem>>, vector<8x384xf32>
    %c0_339 = arith.constant 0 : index
    %c22656 = arith.constant 22656 : index
    %472 = vector.load %arg3[%c0_339, %c22656] : memref<8x31104xf32, #tpu.memory_space<vmem>>, vector<8x384xf32>
    %473 = arith.mulf %471, %472 : vector<8x384xf32>
    %474 = arith.addf %470, %473 : vector<8x384xf32>
    %c0_340 = arith.constant 0 : index
    %c150_341 = arith.constant 150 : index
    %475 = vector.load %arg10[%c0_340, %c150_341] : memref<8x640xf32, #tpu.memory_space<vmem>>, vector<8x384xf32>
    %c0_342 = arith.constant 0 : index
    %c23040 = arith.constant 23040 : index
    %476 = vector.load %arg3[%c0_342, %c23040] : memref<8x31104xf32, #tpu.memory_space<vmem>>, vector<8x384xf32>
    %477 = arith.mulf %475, %476 : vector<8x384xf32>
    %478 = arith.addf %474, %477 : vector<8x384xf32>
    %c0_343 = arith.constant 0 : index
    %c151_344 = arith.constant 151 : index
    %479 = vector.load %arg10[%c0_343, %c151_344] : memref<8x640xf32, #tpu.memory_space<vmem>>, vector<8x384xf32>
    %c0_345 = arith.constant 0 : index
    %c23424 = arith.constant 23424 : index
    %480 = vector.load %arg3[%c0_345, %c23424] : memref<8x31104xf32, #tpu.memory_space<vmem>>, vector<8x384xf32>
    %481 = arith.mulf %479, %480 : vector<8x384xf32>
    %482 = arith.addf %478, %481 : vector<8x384xf32>
    %c0_346 = arith.constant 0 : index
    %c152 = arith.constant 152 : index
    %483 = vector.load %arg10[%c0_346, %c152] : memref<8x640xf32, #tpu.memory_space<vmem>>, vector<8x384xf32>
    %c0_347 = arith.constant 0 : index
    %c23808 = arith.constant 23808 : index
    %484 = vector.load %arg3[%c0_347, %c23808] : memref<8x31104xf32, #tpu.memory_space<vmem>>, vector<8x384xf32>
    %485 = arith.mulf %483, %484 : vector<8x384xf32>
    %486 = arith.addf %482, %485 : vector<8x384xf32>
    %c0_348 = arith.constant 0 : index
    %c168 = arith.constant 168 : index
    %487 = vector.load %arg10[%c0_348, %c168] : memref<8x640xf32, #tpu.memory_space<vmem>>, vector<8x384xf32>
    %c0_349 = arith.constant 0 : index
    %c24192 = arith.constant 24192 : index
    %488 = vector.load %arg3[%c0_349, %c24192] : memref<8x31104xf32, #tpu.memory_space<vmem>>, vector<8x384xf32>
    %489 = arith.mulf %487, %488 : vector<8x384xf32>
    %490 = arith.addf %486, %489 : vector<8x384xf32>
    %c0_350 = arith.constant 0 : index
    %c169_351 = arith.constant 169 : index
    %491 = vector.load %arg10[%c0_350, %c169_351] : memref<8x640xf32, #tpu.memory_space<vmem>>, vector<8x384xf32>
    %c0_352 = arith.constant 0 : index
    %c24576 = arith.constant 24576 : index
    %492 = vector.load %arg3[%c0_352, %c24576] : memref<8x31104xf32, #tpu.memory_space<vmem>>, vector<8x384xf32>
    %493 = arith.mulf %491, %492 : vector<8x384xf32>
    %494 = arith.addf %490, %493 : vector<8x384xf32>
    %c0_353 = arith.constant 0 : index
    %c170_354 = arith.constant 170 : index
    %495 = vector.load %arg10[%c0_353, %c170_354] : memref<8x640xf32, #tpu.memory_space<vmem>>, vector<8x384xf32>
    %c0_355 = arith.constant 0 : index
    %c24960 = arith.constant 24960 : index
    %496 = vector.load %arg3[%c0_355, %c24960] : memref<8x31104xf32, #tpu.memory_space<vmem>>, vector<8x384xf32>
    %497 = arith.mulf %495, %496 : vector<8x384xf32>
    %498 = arith.addf %494, %497 : vector<8x384xf32>
    %c0_356 = arith.constant 0 : index
    %c171_357 = arith.constant 171 : index
    %499 = vector.load %arg10[%c0_356, %c171_357] : memref<8x640xf32, #tpu.memory_space<vmem>>, vector<8x384xf32>
    %c0_358 = arith.constant 0 : index
    %c25344 = arith.constant 25344 : index
    %500 = vector.load %arg3[%c0_358, %c25344] : memref<8x31104xf32, #tpu.memory_space<vmem>>, vector<8x384xf32>
    %501 = arith.mulf %499, %500 : vector<8x384xf32>
    %502 = arith.addf %498, %501 : vector<8x384xf32>
    %c0_359 = arith.constant 0 : index
    %c172_360 = arith.constant 172 : index
    %503 = vector.load %arg10[%c0_359, %c172_360] : memref<8x640xf32, #tpu.memory_space<vmem>>, vector<8x384xf32>
    %c0_361 = arith.constant 0 : index
    %c25728 = arith.constant 25728 : index
    %504 = vector.load %arg3[%c0_361, %c25728] : memref<8x31104xf32, #tpu.memory_space<vmem>>, vector<8x384xf32>
    %505 = arith.mulf %503, %504 : vector<8x384xf32>
    %506 = arith.addf %502, %505 : vector<8x384xf32>
    %c0_362 = arith.constant 0 : index
    %c173_363 = arith.constant 173 : index
    %507 = vector.load %arg10[%c0_362, %c173_363] : memref<8x640xf32, #tpu.memory_space<vmem>>, vector<8x384xf32>
    %c0_364 = arith.constant 0 : index
    %c26112 = arith.constant 26112 : index
    %508 = vector.load %arg3[%c0_364, %c26112] : memref<8x31104xf32, #tpu.memory_space<vmem>>, vector<8x384xf32>
    %509 = arith.mulf %507, %508 : vector<8x384xf32>
    %510 = arith.addf %506, %509 : vector<8x384xf32>
    %c0_365 = arith.constant 0 : index
    %c174_366 = arith.constant 174 : index
    %511 = vector.load %arg10[%c0_365, %c174_366] : memref<8x640xf32, #tpu.memory_space<vmem>>, vector<8x384xf32>
    %c0_367 = arith.constant 0 : index
    %c26496 = arith.constant 26496 : index
    %512 = vector.load %arg3[%c0_367, %c26496] : memref<8x31104xf32, #tpu.memory_space<vmem>>, vector<8x384xf32>
    %513 = arith.mulf %511, %512 : vector<8x384xf32>
    %514 = arith.addf %510, %513 : vector<8x384xf32>
    %c0_368 = arith.constant 0 : index
    %c175_369 = arith.constant 175 : index
    %515 = vector.load %arg10[%c0_368, %c175_369] : memref<8x640xf32, #tpu.memory_space<vmem>>, vector<8x384xf32>
    %c0_370 = arith.constant 0 : index
    %c26880 = arith.constant 26880 : index
    %516 = vector.load %arg3[%c0_370, %c26880] : memref<8x31104xf32, #tpu.memory_space<vmem>>, vector<8x384xf32>
    %517 = arith.mulf %515, %516 : vector<8x384xf32>
    %518 = arith.addf %514, %517 : vector<8x384xf32>
    %c0_371 = arith.constant 0 : index
    %c176 = arith.constant 176 : index
    %519 = vector.load %arg10[%c0_371, %c176] : memref<8x640xf32, #tpu.memory_space<vmem>>, vector<8x384xf32>
    %c0_372 = arith.constant 0 : index
    %c27264 = arith.constant 27264 : index
    %520 = vector.load %arg3[%c0_372, %c27264] : memref<8x31104xf32, #tpu.memory_space<vmem>>, vector<8x384xf32>
    %521 = arith.mulf %519, %520 : vector<8x384xf32>
    %522 = arith.addf %518, %521 : vector<8x384xf32>
    %c0_373 = arith.constant 0 : index
    %c192 = arith.constant 192 : index
    %523 = vector.load %arg10[%c0_373, %c192] : memref<8x640xf32, #tpu.memory_space<vmem>>, vector<8x384xf32>
    %c0_374 = arith.constant 0 : index
    %c27648 = arith.constant 27648 : index
    %524 = vector.load %arg3[%c0_374, %c27648] : memref<8x31104xf32, #tpu.memory_space<vmem>>, vector<8x384xf32>
    %525 = arith.mulf %523, %524 : vector<8x384xf32>
    %526 = arith.addf %522, %525 : vector<8x384xf32>
    %c0_375 = arith.constant 0 : index
    %c193 = arith.constant 193 : index
    %527 = vector.load %arg10[%c0_375, %c193] : memref<8x640xf32, #tpu.memory_space<vmem>>, vector<8x384xf32>
    %c0_376 = arith.constant 0 : index
    %c28032 = arith.constant 28032 : index
    %528 = vector.load %arg3[%c0_376, %c28032] : memref<8x31104xf32, #tpu.memory_space<vmem>>, vector<8x384xf32>
    %529 = arith.mulf %527, %528 : vector<8x384xf32>
    %530 = arith.addf %526, %529 : vector<8x384xf32>
    %c0_377 = arith.constant 0 : index
    %c194 = arith.constant 194 : index
    %531 = vector.load %arg10[%c0_377, %c194] : memref<8x640xf32, #tpu.memory_space<vmem>>, vector<8x384xf32>
    %c0_378 = arith.constant 0 : index
    %c28416 = arith.constant 28416 : index
    %532 = vector.load %arg3[%c0_378, %c28416] : memref<8x31104xf32, #tpu.memory_space<vmem>>, vector<8x384xf32>
    %533 = arith.mulf %531, %532 : vector<8x384xf32>
    %534 = arith.addf %530, %533 : vector<8x384xf32>
    %c0_379 = arith.constant 0 : index
    %c195 = arith.constant 195 : index
    %535 = vector.load %arg10[%c0_379, %c195] : memref<8x640xf32, #tpu.memory_space<vmem>>, vector<8x384xf32>
    %c0_380 = arith.constant 0 : index
    %c28800 = arith.constant 28800 : index
    %536 = vector.load %arg3[%c0_380, %c28800] : memref<8x31104xf32, #tpu.memory_space<vmem>>, vector<8x384xf32>
    %537 = arith.mulf %535, %536 : vector<8x384xf32>
    %538 = arith.addf %534, %537 : vector<8x384xf32>
    %c0_381 = arith.constant 0 : index
    %c196 = arith.constant 196 : index
    %539 = vector.load %arg10[%c0_381, %c196] : memref<8x640xf32, #tpu.memory_space<vmem>>, vector<8x384xf32>
    %c0_382 = arith.constant 0 : index
    %c29184 = arith.constant 29184 : index
    %540 = vector.load %arg3[%c0_382, %c29184] : memref<8x31104xf32, #tpu.memory_space<vmem>>, vector<8x384xf32>
    %541 = arith.mulf %539, %540 : vector<8x384xf32>
    %542 = arith.addf %538, %541 : vector<8x384xf32>
    %c0_383 = arith.constant 0 : index
    %c197 = arith.constant 197 : index
    %543 = vector.load %arg10[%c0_383, %c197] : memref<8x640xf32, #tpu.memory_space<vmem>>, vector<8x384xf32>
    %c0_384 = arith.constant 0 : index
    %c29568 = arith.constant 29568 : index
    %544 = vector.load %arg3[%c0_384, %c29568] : memref<8x31104xf32, #tpu.memory_space<vmem>>, vector<8x384xf32>
    %545 = arith.mulf %543, %544 : vector<8x384xf32>
    %546 = arith.addf %542, %545 : vector<8x384xf32>
    %c0_385 = arith.constant 0 : index
    %c198 = arith.constant 198 : index
    %547 = vector.load %arg10[%c0_385, %c198] : memref<8x640xf32, #tpu.memory_space<vmem>>, vector<8x384xf32>
    %c0_386 = arith.constant 0 : index
    %c29952 = arith.constant 29952 : index
    %548 = vector.load %arg3[%c0_386, %c29952] : memref<8x31104xf32, #tpu.memory_space<vmem>>, vector<8x384xf32>
    %549 = arith.mulf %547, %548 : vector<8x384xf32>
    %550 = arith.addf %546, %549 : vector<8x384xf32>
    %c0_387 = arith.constant 0 : index
    %c199 = arith.constant 199 : index
    %551 = vector.load %arg10[%c0_387, %c199] : memref<8x640xf32, #tpu.memory_space<vmem>>, vector<8x384xf32>
    %c0_388 = arith.constant 0 : index
    %c30336 = arith.constant 30336 : index
    %552 = vector.load %arg3[%c0_388, %c30336] : memref<8x31104xf32, #tpu.memory_space<vmem>>, vector<8x384xf32>
    %553 = arith.mulf %551, %552 : vector<8x384xf32>
    %554 = arith.addf %550, %553 : vector<8x384xf32>
    %c0_389 = arith.constant 0 : index
    %c200 = arith.constant 200 : index
    %555 = vector.load %arg10[%c0_389, %c200] : memref<8x640xf32, #tpu.memory_space<vmem>>, vector<8x384xf32>
    %c0_390 = arith.constant 0 : index
    %c30720 = arith.constant 30720 : index
    %556 = vector.load %arg3[%c0_390, %c30720] : memref<8x31104xf32, #tpu.memory_space<vmem>>, vector<8x384xf32>
    %557 = arith.mulf %555, %556 : vector<8x384xf32>
    %558 = arith.addf %554, %557 : vector<8x384xf32>
    %cst_391 = arith.constant 0.000000e+00 : f32
    %559 = vector.broadcast %cst_391 : f32 to vector<8x384xf32>
    %560 = arith.maximumf %558, %559 : vector<8x384xf32>
    %561 = arith.negf %560 : vector<8x384xf32>
    %562 = math.exp %561 : vector<8x384xf32>
    %cst_392 = arith.constant 1.000000e+00 : f32
    %563 = vector.broadcast %cst_392 : f32 to vector<8x384xf32>
    %564 = arith.addf %563, %562 : vector<8x384xf32>
    %565 = arith.divf %563, %564 : vector<8x384xf32>
    %566 = vector.extract_strided_slice %233 {offsets = [0, 0], sizes = [1, 384], strides = [1, 1]} : vector<2x384xf32> to vector<1x384xf32>
    %567 = vector.extract_strided_slice %565 {offsets = [0, 0], sizes = [4, 384], strides = [1, 1]} : vector<8x384xf32> to vector<4x384xf32>
    %568 = vector.broadcast %566 : vector<1x384xf32> to vector<4x384xf32>
    %569 = arith.addf %568, %567 : vector<4x384xf32>
    %cst_393 = arith.constant 0.333333343 : f32
    %570 = vector.broadcast %cst_393 : f32 to vector<4x384xf32>
    %571 = arith.mulf %569, %570 : vector<4x384xf32>
    %c0_394 = arith.constant 0 : index
    %c0_395 = arith.constant 0 : index
    %572 = vector.load %arg8[%c0_394, %c0_395] : memref<8x384xf32, #tpu.memory_space<vmem>>, vector<4x384xf32>
    tpu.vector_store %arg8[%c0_394, %c0_395], %571 {strides = array<i32>} : memref<8x384xf32, #tpu.memory_space<vmem>>, vector<4x384xf32>,
    %573 = vector.extract_strided_slice %233 {offsets = [1, 0], sizes = [1, 384], strides = [1, 1]} : vector<2x384xf32> to vector<1x384xf32>
    %574 = vector.extract_strided_slice %565 {offsets = [4, 0], sizes = [4, 384], strides = [1, 1]} : vector<8x384xf32> to vector<4x384xf32>
    %575 = vector.broadcast %573 : vector<1x384xf32> to vector<4x384xf32>
    %576 = arith.addf %575, %574 : vector<4x384xf32>
    %cst_396 = arith.constant 0.333333343 : f32
    %577 = vector.broadcast %cst_396 : f32 to vector<4x384xf32>
    %578 = arith.mulf %576, %577 : vector<4x384xf32>
    %c4_397 = arith.constant 4 : index
    %c0_398 = arith.constant 0 : index
    %579 = vector.load %arg8[%c4_397, %c0_398] : memref<8x384xf32, #tpu.memory_space<vmem>>, vector<4x384xf32>
    tpu.vector_store %arg8[%c4_397, %c0_398], %578 {strides = array<i32>} : memref<8x384xf32, #tpu.memory_space<vmem>>, vector<4x384xf32>,
    return
  }
  func.func @transform_0(%arg0: i32) -> (i32, i32) {
    %c0_i32 = arith.constant 0 : i32
    %c0_i32_0 = arith.constant 0 : i32
    return %arg0, %c0_i32 : i32, i32
  }
  func.func @transform_1(%arg0: i32) -> (i32, i32) {
    %c0_i32 = arith.constant 0 : i32
    %c0_i32_0 = arith.constant 0 : i32
    %c0_i32_1 = arith.constant 0 : i32
    return %c0_i32, %c0_i32_0 : i32, i32
  }
  func.func @transform_2(%arg0: i32) -> (i32, i32) {
    %c0_i32 = arith.constant 0 : i32
    %c0_i32_0 = arith.constant 0 : i32
    %c0_i32_1 = arith.constant 0 : i32
    return %c0_i32, %c0_i32_0 : i32, i32
  }
  func.func @transform_3(%arg0: i32) -> (i32, i32) {
    %c0_i32 = arith.constant 0 : i32
    %c0_i32_0 = arith.constant 0 : i32
    %c0_i32_1 = arith.constant 0 : i32
    return %c0_i32, %c0_i32_0 : i32, i32
  }
  func.func @transform_4(%arg0: i32) -> (i32, i32) {
    %c0_i32 = arith.constant 0 : i32
    %c0_i32_0 = arith.constant 0 : i32
    %c0_i32_1 = arith.constant 0 : i32
    return %c0_i32, %c0_i32_0 : i32, i32
  }
  func.func @transform_5(%arg0: i32) -> (i32, i32) {
    %c0_i32 = arith.constant 0 : i32
    %c0_i32_0 = arith.constant 0 : i32
    %c0_i32_1 = arith.constant 0 : i32
    return %c0_i32, %c0_i32_0 : i32, i32
  }
  func.func @transform_6(%arg0: i32) -> i32 {
    %c0_i32 = arith.constant 0 : i32
    %c0_i32_0 = arith.constant 0 : i32
    return %c0_i32 : i32
  }
  func.func @transform_7(%arg0: i32) -> (i32, i32) {
    %c0_i32 = arith.constant 0 : i32
    %c0_i32_0 = arith.constant 0 : i32
    return %arg0, %c0_i32 : i32, i32
  }
}

</mosaic_0001>

<llo_original>
// kernel: tpu_custom_call.1
$region0: #{tpu_custom_call.1}
  #allocation0 [shape = 'u32[]', space=smem, size = 0x4, offset = 0x4, fixed_abs, tag = 'smem constant byte address 0x4 - core index']
  #allocation1 [shape = 'u32[144,128]{1,0:T(1,128)}', space=vmem, size = 0x12000, scoped, tag = 'internal scratch']
  #allocation2 [shape = 'f32[4,640]{1,0:T(4,128)}', space=vmem, size = 0x2800, scoped, tag = 'scratch operand']
  #allocation3 [shape = 'f32[8,640]{1,0:T(8,128)}', space=vmem, size = 0x5000, scoped, tag = 'scratch operand']
  #allocation4 [shape = 'f32[1]{0:T(128)S(6)}', space=smem, size = 0x200, scoped, tag = 'scoped memory for tpu_custom_call.1']
  %s0 = inlined_call_operand.hbm [shape: f32[8,640], index: 0, kind: input, shape index: {}]
  %s1 = inlined_call_operand.hbm [shape: f32[4,18816], index: 1, kind: input, shape index: {}]
  %s2 = inlined_call_operand.hbm [shape: f32[8,31104], index: 2, kind: input, shape index: {}]
  %s3 = inlined_call_operand.hbm [shape: f32[8,8], index: 3, kind: input, shape index: {}]
  %s4 = inlined_call_operand.hbm [shape: f32[8,640], index: 4, kind: input, shape index: {}]
  %s5 = inlined_call_operand.hbm [shape: f32[8,384], index: 5, kind: input, shape index: {}]
  %s6 = inlined_call_operand.<no memory space> [shape: f32[1], index: 6, kind: input, shape index: {}]
  %s7 = inlined_call_operand.hbm [shape: f32[8,384], index: 7, kind: output, shape index: {}]
  %s8 = sld [smem:[#allocation0]]
  $region62: #{tpu_custom_call.1} parent=0
    _
  %s10 = ssub.s32 1, %s8
  %s11 = scalar_select 0, %s10, %s8
  %12 = sst [smem:[#allocation4]] %s6
  $region1: #{tpu_custom_call.1} parent=0
    #allocation5 [shape = 'u8[20480]{0}', space=vmem, size = 0x5000, scoped, tag = 'input window, operand 0, single buffered']
    #allocation6 [shape = 's32[1]{0}', space=sflag, size = 0x4, scoped, tag = 'scoped memory for tpu_custom_call.1']
    #allocation7 [shape = 's32[1]{0}', space=sflag, size = 0x4, scoped, tag = 'scoped memory for tpu_custom_call.1']
    #allocation8 [shape = 'u8[301056]{0}', space=vmem, size = 0x49800, scoped, tag = 'input window, operand 1, single buffered']
    #allocation9 [shape = 's32[1]{0}', space=sflag, size = 0x4, scoped, tag = 'scoped memory for tpu_custom_call.1']
    #allocation10 [shape = 'u8[995328]{0}', space=vmem, size = 0xf3000, scoped, tag = 'input window, operand 2, single buffered']
    #allocation11 [shape = 'u8[4096]{0}', space=vmem, size = 0x1000, scoped, tag = 'input window, operand 3, single buffered']
    #allocation12 [shape = 's32[1]{0}', space=sflag, size = 0x4, scoped, tag = 'scoped memory for tpu_custom_call.1']
    #allocation13 [shape = 'u8[20480]{0}', space=vmem, size = 0x5000, scoped, tag = 'input window, operand 4, single buffered']
    #allocation14 [shape = 'u8[12288]{0}', space=vmem, size = 0x3000, scoped, tag = 'input window, operand 5, single buffered']
    #allocation15 [shape = 's32[1]{0}', space=sflag, size = 0x4, scoped, tag = 'scoped memory for tpu_custom_call.1']
    #allocation16 [shape = 'u8[12288]{0}', space=vmem, size = 0x3000, scoped, tag = 'output window, operand 0, single buffered']
    %13 = vsyncpa [#allocation6], 0
    %14 = vsyncpa [#allocation9], 0
    %15 = vsyncpa [#allocation12], 0
    %16 = vsyncpa [#allocation15], 0
    %17 = vsyncpa [#allocation7], 0
    // Predicated region
    $region2: #{tpu_custom_call.1} parent=1 // pred_check
      _
    $region3: #{tpu_custom_call.1} parent=1 // pred_check_branch
      %19 = sbr.rel (0) target = $region5
    $region4: #{tpu_custom_call.1} parent=1 // pred_region
      %s21 = ssub.s32 640, 640
      %22 = vsyncadd [#allocation6], %s21
      %s24 = sshll.u32 [#allocation5], 4
      %s25 = int_to_ptr.vmem [resolvable:$true] %s24
      %27 = dma.hbm_to_vmem [thread:$0]  %s0, 640, %s25, [#allocation6]
    $region5: #{tpu_custom_call.1} parent=1 // pred_fallthru
      _
    // Predicated region
    $region6: #{tpu_custom_call.1} parent=1 // pred_check
      _
    $region7: #{tpu_custom_call.1} parent=1 // pred_check_branch
      %29 = sbr.rel (0) target = $region9
    $region8: #{tpu_custom_call.1} parent=1 // pred_region
      %s31 = ssub.s32 9408, 9408
      %32 = vsyncadd [#allocation9], %s31
      %s34 = sshll.u32 [#allocation8], 4
      %s35 = int_to_ptr.vmem [resolvable:$true] %s34
      %37 = dma.hbm_to_vmem [thread:$0]  %s1, 9408, %s35, [#allocation9]
    $region9: #{tpu_custom_call.1} parent=1 // pred_fallthru
      _
    // Predicated region
    $region10: #{tpu_custom_call.1} parent=1 // pred_check
      _
    $region11: #{tpu_custom_call.1} parent=1 // pred_check_branch
      %39 = sbr.rel (0) target = $region13
    $region12: #{tpu_custom_call.1} parent=1 // pred_region
      %s41 = ssub.s32 31104, 31104
      %42 = vsyncadd [#allocation9], %s41
      %s44 = sshll.u32 [#allocation10], 4
      %s45 = int_to_ptr.vmem [resolvable:$true] %s44
      %47 = dma.hbm_to_vmem [thread:$0]  %s2, 31104, %s45, [#allocation9]
    $region13: #{tpu_custom_call.1} parent=1 // pred_fallthru
      _
    // Predicated region
    $region14: #{tpu_custom_call.1} parent=1 // pred_check
      _
    $region15: #{tpu_custom_call.1} parent=1 // pred_check_branch
      %49 = sbr.rel (0) target = $region17
    $region16: #{tpu_custom_call.1} parent=1 // pred_region
      %s51 = ssub.s32 128, 128
      %52 = vsyncadd [#allocation12], %s51
      %s54 = sshll.u32 [#allocation11], 4
      %s55 = int_to_ptr.vmem [resolvable:$true] %s54
      %57 = dma.hbm_to_vmem [thread:$0]  %s3, 128, %s55, [#allocation12]
    $region17: #{tpu_custom_call.1} parent=1 // pred_fallthru
      _
    // Predicated region
    $region18: #{tpu_custom_call.1} parent=1 // pred_check
      _
    $region19: #{tpu_custom_call.1} parent=1 // pred_check_branch
      %59 = sbr.rel (0) target = $region21
    $region20: #{tpu_custom_call.1} parent=1 // pred_region
      %s61 = ssub.s32 640, 640
      %62 = vsyncadd [#allocation12], %s61
      %s64 = sshll.u32 [#allocation13], 4
      %s65 = int_to_ptr.vmem [resolvable:$true] %s64
      %67 = dma.hbm_to_vmem [thread:$0]  %s4, 640, %s65, [#allocation12]
    $region21: #{tpu_custom_call.1} parent=1 // pred_fallthru
      _
    // Predicated region
    $region22: #{tpu_custom_call.1} parent=1 // pred_check
      _
    $region23: #{tpu_custom_call.1} parent=1 // pred_check_branch
      %69 = sbr.rel (0) target = $region25
    $region24: #{tpu_custom_call.1} parent=1 // pred_region
      %s71 = ssub.s32 384, 384
      %72 = vsyncadd [#allocation15], %s71
      %s74 = sshll.u32 [#allocation14], 4
      %s75 = int_to_ptr.vmem [resolvable:$true] %s74
      %77 = dma.hbm_to_vmem [thread:$0]  %s5, 384, %s75, [#allocation15]
    $region25: #{tpu_custom_call.1} parent=1 // pred_fallthru
      _
    // Predicated region
    $region26: #{tpu_custom_call.1} parent=1 // pred_check
      _
    $region27: #{tpu_custom_call.1} parent=1 // pred_check_branch
      %79 = sbr.rel (0) target = $region29
    $region28: #{tpu_custom_call.1} parent=1 // pred_region
      _
    $region29: #{tpu_custom_call.1} parent=1 // pred_fallthru
      _
    // Predicated region
    $region30: #{tpu_custom_call.1} parent=1 // pred_check
      _
    $region31: #{tpu_custom_call.1} parent=1 // pred_check_branch
      %81 = sbr.rel (0) target = $region33
    $region32: #{tpu_custom_call.1} parent=1 // pred_region
      %82 = dma.done [#allocation6], 640
    $region33: #{tpu_custom_call.1} parent=1 // pred_fallthru
      _
    // Predicated region
    $region34: #{tpu_custom_call.1} parent=1 // pred_check
      _
    $region35: #{tpu_custom_call.1} parent=1 // pred_check_branch
      %84 = sbr.rel (0) target = $region37
    $region36: #{tpu_custom_call.1} parent=1 // pred_region
      %85 = dma.done [#allocation9], 9408
    $region37: #{tpu_custom_call.1} parent=1 // pred_fallthru
      _
    // Predicated region
    $region38: #{tpu_custom_call.1} parent=1 // pred_check
      _
    $region39: #{tpu_custom_call.1} parent=1 // pred_check_branch
      %87 = sbr.rel (0) target = $region41
    $region40: #{tpu_custom_call.1} parent=1 // pred_region
      %88 = dma.done [#allocation9], 31104
    $region41: #{tpu_custom_call.1} parent=1 // pred_fallthru
      _
    // Predicated region
    $region42: #{tpu_custom_call.1} parent=1 // pred_check
      _
    $region43: #{tpu_custom_call.1} parent=1 // pred_check_branch
      %90 = sbr.rel (0) target = $region45
    $region44: #{tpu_custom_call.1} parent=1 // pred_region
      %91 = dma.done [#allocation12], 128
    $region45: #{tpu_custom_call.1} parent=1 // pred_fallthru
      _
    // Predicated region
    $region46: #{tpu_custom_call.1} parent=1 // pred_check
      _
    $region47: #{tpu_custom_call.1} parent=1 // pred_check_branch
      %93 = sbr.rel (0) target = $region49
    $region48: #{tpu_custom_call.1} parent=1 // pred_region
      %94 = dma.done [#allocation12], 640
    $region49: #{tpu_custom_call.1} parent=1 // pred_fallthru
      _
    // Predicated region
    $region50: #{tpu_custom_call.1} parent=1 // pred_check
      _
    $region51: #{tpu_custom_call.1} parent=1 // pred_check_branch
      %96 = sbr.rel (0) target = $region53
    $region52: #{tpu_custom_call.1} parent=1 // pred_region
      %97 = dma.done [#allocation15], 384
    $region53: #{tpu_custom_call.1} parent=1 // pred_fallthru
      _
    %v98 = vld [vmem:[#allocation5] sm:$0xf]
    %v99 = vld [vmem:[#allocation5 + $0x8] sm:$0xf]
    %v100 = vld [vmem:[#allocation5 + $0x10] sm:$0xf]
    %v101 = vld [vmem:[#allocation5 + $0x18] sm:$0xf]
    %v102 = vld [vmem:[#allocation5 + $0x20] sm:$0xf]
    %vm103 = vcmask 1043456
    %v104 = vsel %vm103, %v98, 0.0
    %v105 = vrot.slane %v104, 4
    %v106 = vadd.f32 %v104, %v105
    %v107 = vrot.slane %v106, 2
    %v108 = vadd.f32 %v106, %v107
    %v109 = vrot.slane %v108, 1
    %v110 = vadd.f32 %v108, %v109
    %v111 = vsel %vm103, %v99, 0.0
    %v112 = vrot.slane %v111, 4
    %v113 = vadd.f32 %v111, %v112
    %v114 = vrot.slane %v113, 2
    %v115 = vadd.f32 %v113, %v114
    %v116 = vrot.slane %v115, 1
    %v117 = vadd.f32 %v115, %v116
    %v118 = vsel %vm103, %v100, 0.0
    %v119 = vrot.slane %v118, 4
    %v120 = vadd.f32 %v118, %v119
    %v121 = vrot.slane %v120, 2
    %v122 = vadd.f32 %v120, %v121
    %v123 = vrot.slane %v122, 1
    %v124 = vadd.f32 %v122, %v123
    %v125 = vsel %vm103, %v101, 0.0
    %v126 = vrot.slane %v125, 4
    %v127 = vadd.f32 %v125, %v126
    %v128 = vrot.slane %v127, 2
    %v129 = vadd.f32 %v127, %v128
    %v130 = vrot.slane %v129, 1
    %v131 = vadd.f32 %v129, %v130
    %v132 = vsel %vm103, %v102, 0.0
    %v133 = vrot.slane %v132, 4
    %v134 = vadd.f32 %v132, %v133
    %v135 = vrot.slane %v134, 2
    %v136 = vadd.f32 %v134, %v135
    %v137 = vrot.slane %v136, 1
    %v138 = vadd.f32 %v136, %v137
    %v139 = vmul.f32 %v110, 0.25
    %v140 = vmul.f32 %v117, 0.25
    %v141 = vmul.f32 %v124, 0.25
    %v142 = vmul.f32 %v131, 0.25
    %v143 = vmul.f32 %v138, 0.25
    %v149 = vcombine.low %v139, %v140
    %v150 = vcombine.low %v141, %v142
    %v152 = vunpack.c.l.s4 1966171168
    %v153 = vunpack.c.0.s8 %v152
    %v154 = vlaneseq
    %v155 = vshrl.u32 %v154, 7
    %v156 = vsub.s32 %v153, %v155
    %v157 = vrot.slane %v149, %v156
    %v159 = vunpack.c.l.s4 1966171168
    %v160 = vunpack.c.0.s8 %v159
    %v161 = vlaneseq
    %v162 = vshrl.u32 %v161, 7
    %v163 = vsub.s32 %v160, %v162
    %v164 = vrot.slane %v150, %v163
    %v166 = vunpack.c.l.s4 1966171168
    %v167 = vunpack.c.0.s8 %v166
    %v168 = vlaneseq
    %v169 = vshrl.u32 %v168, 7
    %v170 = vsub.s32 %v167, %v169
    %v171 = vrot.slane %v143, %v170
    %v172 = vcombine.low %v157, %v164
    %v174 = vunpack.c.l.s4 1966171168
    %v175 = vunpack.c.0.s8 %v174
    %v176 = vlaneseq
    %v177 = vshrl.u32 %v176, 7
    %v178 = vsub.s32 %v175, %v177
    %v179 = vrot.slane %v172, %v178
    %v181 = vunpack.c.l.s4 1966171168
    %v182 = vunpack.c.0.s8 %v181
    %v183 = vlaneseq
    %v184 = vshrl.u32 %v183, 7
    %v185 = vsub.s32 %v182, %v184
    %v186 = vrot.slane %v171, %v185
    %v187 = vcombine.low %v179, %v186
    %v189 = vlaneseq
    %vm190 = vcmp.ge.s32.totalorder %v189, 0
    %vm191 = vcmp.lt.s32.totalorder %v189, 640
    %vm192 = vmand %vm190, %vm191
    %193 = vst.msk [vmem:[#allocation2] ss:$4 sm:$0x1f] %vm192, %v187
    %v194 = vsel %vm103, %v98, -inf
    %v195 = vrot.slane %v194, 4
    %v196 = vmax.f32 %v194, %v195
    %v197 = vrot.slane %v196, 2
    %v198 = vmax.f32 %v196, %v197
    %v199 = vrot.slane %v198, 1
    %v200 = vmax.f32 %v198, %v199
    %v201 = vsel %vm103, %v99, -inf
    %v202 = vrot.slane %v201, 4
    %v203 = vmax.f32 %v201, %v202
    %v204 = vrot.slane %v203, 2
    %v205 = vmax.f32 %v203, %v204
    %v206 = vrot.slane %v205, 1
    %v207 = vmax.f32 %v205, %v206
    %v208 = vsel %vm103, %v100, -inf
    %v209 = vrot.slane %v208, 4
    %v210 = vmax.f32 %v208, %v209
    %v211 = vrot.slane %v210, 2
    %v212 = vmax.f32 %v210, %v211
    %v213 = vrot.slane %v212, 1
    %v214 = vmax.f32 %v212, %v213
    %v215 = vsel %vm103, %v101, -inf
    %v216 = vrot.slane %v215, 4
    %v217 = vmax.f32 %v215, %v216
    %v218 = vrot.slane %v217, 2
    %v219 = vmax.f32 %v217, %v218
    %v220 = vrot.slane %v219, 1
    %v221 = vmax.f32 %v219, %v220
    %v222 = vsel %vm103, %v102, -inf
    %v223 = vrot.slane %v222, 4
    %v224 = vmax.f32 %v222, %v223
    %v225 = vrot.slane %v224, 2
    %v226 = vmax.f32 %v224, %v225
    %v227 = vrot.slane %v226, 1
    %v228 = vmax.f32 %v226, %v227
    %v234 = vcombine.low %v200, %v207
    %v235 = vcombine.low %v214, %v221
    %v237 = vunpack.c.l.s4 1966171168
    %v238 = vunpack.c.0.s8 %v237
    %v239 = vlaneseq
    %v240 = vshrl.u32 %v239, 7
    %v241 = vsub.s32 %v238, %v240
    %v242 = vrot.slane %v234, %v241
    %v244 = vunpack.c.l.s4 1966171168
    %v245 = vunpack.c.0.s8 %v244
    %v246 = vlaneseq
    %v247 = vshrl.u32 %v246, 7
    %v248 = vsub.s32 %v245, %v247
    %v249 = vrot.slane %v235, %v248
    %v251 = vunpack.c.l.s4 1966171168
    %v252 = vunpack.c.0.s8 %v251
    %v253 = vlaneseq
    %v254 = vshrl.u32 %v253, 7
    %v255 = vsub.s32 %v252, %v254
    %v256 = vrot.slane %v228, %v255
    %v257 = vcombine.low %v242, %v249
    %v259 = vunpack.c.l.s4 1966171168
    %v260 = vunpack.c.0.s8 %v259
    %v261 = vlaneseq
    %v262 = vshrl.u32 %v261, 7
    %v263 = vsub.s32 %v260, %v262
    %v264 = vrot.slane %v257, %v263
    %v266 = vunpack.c.l.s4 1966171168
    %v267 = vunpack.c.0.s8 %v266
    %v268 = vlaneseq
    %v269 = vshrl.u32 %v268, 7
    %v270 = vsub.s32 %v267, %v269
    %v271 = vrot.slane %v256, %v270
    %v272 = vcombine.low %v264, %v271
    %s274 = scalar_lea.vmem [#allocation2], 2
    %275 = vst.msk [vmem:[%s274] ss:$4 sm:$0x1f] %vm192, %v272
    %v276 = vld [vmem:[#allocation5] sm:$0xf0]
    %v277 = vld [vmem:[#allocation5 + $0x8] sm:$0xf0]
    %v278 = vld [vmem:[#allocation5 + $0x10] sm:$0xf0]
    %v279 = vld [vmem:[#allocation5 + $0x18] sm:$0xf0]
    %v280 = vld [vmem:[#allocation5 + $0x20] sm:$0xf0]
    %v286 = vrot.slane %v276, 4
    %v287 = vrot.slane %v277, 4
    %v288 = vrot.slane %v278, 4
    %v289 = vrot.slane %v279, 4
    %v290 = vrot.slane %v280, 4
    %v296 = vsel %vm103, %v286, 0.0
    %v297 = vrot.slane %v296, 4
    %v298 = vadd.f32 %v296, %v297
    %v299 = vrot.slane %v298, 2
    %v300 = vadd.f32 %v298, %v299
    %v301 = vrot.slane %v300, 1
    %v302 = vadd.f32 %v300, %v301
    %v303 = vsel %vm103, %v287, 0.0
    %v304 = vrot.slane %v303, 4
    %v305 = vadd.f32 %v303, %v304
    %v306 = vrot.slane %v305, 2
    %v307 = vadd.f32 %v305, %v306
    %v308 = vrot.slane %v307, 1
    %v309 = vadd.f32 %v307, %v308
    %v310 = vsel %vm103, %v288, 0.0
    %v311 = vrot.slane %v310, 4
    %v312 = vadd.f32 %v310, %v311
    %v313 = vrot.slane %v312, 2
    %v314 = vadd.f32 %v312, %v313
    %v315 = vrot.slane %v314, 1
    %v316 = vadd.f32 %v314, %v315
    %v317 = vsel %vm103, %v289, 0.0
    %v318 = vrot.slane %v317, 4
    %v319 = vadd.f32 %v317, %v318
    %v320 = vrot.slane %v319, 2
    %v321 = vadd.f32 %v319, %v320
    %v322 = vrot.slane %v321, 1
    %v323 = vadd.f32 %v321, %v322
    %v324 = vsel %vm103, %v290, 0.0
    %v325 = vrot.slane %v324, 4
    %v326 = vadd.f32 %v324, %v325
    %v327 = vrot.slane %v326, 2
    %v328 = vadd.f32 %v326, %v327
    %v329 = vrot.slane %v328, 1
    %v330 = vadd.f32 %v328, %v329
    %v331 = vmul.f32 %v302, 0.25
    %v332 = vmul.f32 %v309, 0.25
    %v333 = vmul.f32 %v316, 0.25
    %v334 = vmul.f32 %v323, 0.25
    %v335 = vmul.f32 %v330, 0.25
    %v341 = vcombine.low %v331, %v332
    %v342 = vcombine.low %v333, %v334
    %v344 = vunpack.c.l.s4 1966171168
    %v345 = vunpack.c.0.s8 %v344
    %v346 = vlaneseq
    %v347 = vshrl.u32 %v346, 7
    %v348 = vsub.s32 %v345, %v347
    %v349 = vrot.slane %v341, %v348
    %v351 = vunpack.c.l.s4 1966171168
    %v352 = vunpack.c.0.s8 %v351
    %v353 = vlaneseq
    %v354 = vshrl.u32 %v353, 7
    %v355 = vsub.s32 %v352, %v354
    %v356 = vrot.slane %v342, %v355
    %v358 = vunpack.c.l.s4 1966171168
    %v359 = vunpack.c.0.s8 %v358
    %v360 = vlaneseq
    %v361 = vshrl.u32 %v360, 7
    %v362 = vsub.s32 %v359, %v361
    %v363 = vrot.slane %v335, %v362
    %v364 = vcombine.low %v349, %v356
    %v366 = vunpack.c.l.s4 1966171168
    %v367 = vunpack.c.0.s8 %v366
    %v368 = vlaneseq
    %v369 = vshrl.u32 %v368, 7
    %v370 = vsub.s32 %v367, %v369
    %v371 = vrot.slane %v364, %v370
    %v373 = vunpack.c.l.s4 1966171168
    %v374 = vunpack.c.0.s8 %v373
    %v375 = vlaneseq
    %v376 = vshrl.u32 %v375, 7
    %v377 = vsub.s32 %v374, %v376
    %v378 = vrot.slane %v363, %v377
    %v379 = vcombine.low %v371, %v378
    %s381 = scalar_lea.vmem [#allocation2], 1
    %382 = vst.msk [vmem:[%s381] ss:$4 sm:$0x1f] %vm192, %v379
    %vm383 = vcmask 1047556
    %v384 = vsel %vm383, %v276, -inf
    %v385 = vrot.slane %v384, 4
    %v386 = vmax.f32 %v384, %v385
    %v387 = vrot.slane %v386, 2
    %v388 = vmax.f32 %v386, %v387
    %v389 = vrot.slane %v388, 1
    %v390 = vmax.f32 %v388, %v389
    %v391 = vsel %vm383, %v277, -inf
    %v392 = vrot.slane %v391, 4
    %v393 = vmax.f32 %v391, %v392
    %v394 = vrot.slane %v393, 2
    %v395 = vmax.f32 %v393, %v394
    %v396 = vrot.slane %v395, 1
    %v397 = vmax.f32 %v395, %v396
    %v398 = vsel %vm383, %v278, -inf
    %v399 = vrot.slane %v398, 4
    %v400 = vmax.f32 %v398, %v399
    %v401 = vrot.slane %v400, 2
    %v402 = vmax.f32 %v400, %v401
    %v403 = vrot.slane %v402, 1
    %v404 = vmax.f32 %v402, %v403
    %v405 = vsel %vm383, %v279, -inf
    %v406 = vrot.slane %v405, 4
    %v407 = vmax.f32 %v405, %v406
    %v408 = vrot.slane %v407, 2
    %v409 = vmax.f32 %v407, %v408
    %v410 = vrot.slane %v409, 1
    %v411 = vmax.f32 %v409, %v410
    %v412 = vsel %vm383, %v280, -inf
    %v413 = vrot.slane %v412, 4
    %v414 = vmax.f32 %v412, %v413
    %v415 = vrot.slane %v414, 2
    %v416 = vmax.f32 %v414, %v415
    %v417 = vrot.slane %v416, 1
    %v418 = vmax.f32 %v416, %v417
    %v424 = vcombine.low %v390, %v397
    %v425 = vcombine.low %v404, %v411
    %v427 = vunpack.c.l.s4 1966171168
    %v428 = vunpack.c.0.s8 %v427
    %v429 = vlaneseq
    %v430 = vshrl.u32 %v429, 7
    %v431 = vsub.s32 %v428, %v430
    %v432 = vrot.slane %v424, %v431
    %v434 = vunpack.c.l.s4 1966171168
    %v435 = vunpack.c.0.s8 %v434
    %v436 = vlaneseq
    %v437 = vshrl.u32 %v436, 7
    %v438 = vsub.s32 %v435, %v437
    %v439 = vrot.slane %v425, %v438
    %v441 = vunpack.c.l.s4 1966171168
    %v442 = vunpack.c.0.s8 %v441
    %v443 = vlaneseq
    %v444 = vshrl.u32 %v443, 7
    %v445 = vsub.s32 %v442, %v444
    %v446 = vrot.slane %v418, %v445
    %v447 = vcombine.low %v432, %v439
    %v449 = vunpack.c.l.s4 1966171168
    %v450 = vunpack.c.0.s8 %v449
    %v451 = vlaneseq
    %v452 = vshrl.u32 %v451, 7
    %v453 = vsub.s32 %v450, %v452
    %v454 = vrot.slane %v447, %v453
    %v456 = vunpack.c.l.s4 1966171168
    %v457 = vunpack.c.0.s8 %v456
    %v458 = vlaneseq
    %v459 = vshrl.u32 %v458, 7
    %v460 = vsub.s32 %v457, %v459
    %v461 = vrot.slane %v446, %v460
    %v462 = vcombine.low %v454, %v461
    %s464 = scalar_lea.vmem [#allocation2], 3
    %465 = vst.msk [vmem:[%s464] ss:$4 sm:$0x1f] %vm192, %v462
    %v466 = vld [vmem:[#allocation5] sm:$0xff]
    %v467 = vld [vmem:[#allocation5 + $0x8] sm:$0xff]
    %v468 = vld [vmem:[#allocation5 + $0x10] sm:$0xff]
    %v469 = vld [vmem:[#allocation5 + $0x18] sm:$0xff]
    %v470 = vld [vmem:[#allocation5 + $0x20] sm:$0xff]
    %v471 = vld [vmem:[#allocation11] sm:$0xff]
    %v472 = vld [vmem:[#allocation13] sm:$0xff]
    %v473 = vld [vmem:[#allocation13 + $0x8] sm:$0xff]
    %v474 = vld [vmem:[#allocation13 + $0x10] sm:$0xff]
    %v475 = vld [vmem:[#allocation13 + $0x18] sm:$0xff]
    %v476 = vld [vmem:[#allocation13 + $0x20] sm:$0xff]
    %vm477 = vcmask 64512
    %v479 = vsel %vm477, %v471, 0
    %481 = vmatprep.subr.mxu0 0.0
    %482 = vmatpush1.msra.mxu0 0.0
    %483 = vmatprep.subr.mxu0 0.0
    %484 = vmatpush1.msra.mxu0 0.0
    %485 = vmatprep.subr.mxu0 0.0
    %486 = vmatpush1.msra.mxu0 0.0
    %487 = vmatprep.subr.mxu0 0.0
    %488 = vmatpush1.msra.mxu0 0.0
    %489 = vmatprep.subr.mxu0 0.0
    %490 = vmatpush1.msra.mxu0 0.0
    %491 = vmatprep.subr.mxu0 0.0
    %492 = vmatpush1.msra.mxu0 0.0
    %493 = vmatprep.subr.mxu0 0.0
    %494 = vmatpush1.msra.mxu0 0.0
    %495 = vmatprep.subr.mxu0 0.0
    %496 = vmatpush1.msra.mxu0 0.0
    %497 = vmatprep.subr.mxu0 0.0
    %498 = vmatpush1.msra.mxu0 0.0
    %499 = vmatprep.subr.mxu0 0.0
    %500 = vmatpush1.msra.mxu0 0.0
    %501 = vmatprep.subr.mxu0 0.0
    %502 = vmatpush1.msra.mxu0 0.0
    %503 = vmatprep.subr.mxu0 0.0
    %504 = vmatpush1.msra.mxu0 0.0
    %505 = vmatprep.subr.mxu0 0.0
    %506 = vmatpush1.msra.mxu0 0.0
    %507 = vmatprep.subr.mxu0 0.0
    %508 = vmatpush1.msra.mxu0 0.0
    %509 = vmatprep.subr.mxu0 0.0
    %510 = vmatpush1.msra.mxu0 0.0
    %511 = vmatprep.subr.mxu0 %v467
    %512 = vmatpush1.msra.mxu0 %v466
    %513 = vmatprep.subr.mxu0 0.0
    %514 = vmatpush2.msra.mxu0 0.0
    %515 = vmatprep.subr.mxu0 0.0
    %516 = vmatpush2.msra.mxu0 0.0
    %517 = vmatprep.subr.mxu0 0.0
    %518 = vmatpush2.msra.mxu0 0.0
    %519 = vmatprep.subr.mxu0 0.0
    %520 = vmatpush2.msra.mxu0 0.0
    %521 = vmatprep.subr.mxu0 0.0
    %522 = vmatpush2.msra.mxu0 0.0
    %523 = vmatprep.subr.mxu0 0.0
    %524 = vmatpush2.msra.mxu0 0.0
    %525 = vmatprep.subr.mxu0 0.0
    %526 = vmatpush2.msra.mxu0 0.0
    %527 = vmatprep.subr.mxu0 0.0
    %528 = vmatpush2.msra.mxu0 0.0
    %529 = vmatprep.subr.mxu0 0.0
    %530 = vmatpush2.msra.mxu0 0.0
    %531 = vmatprep.subr.mxu0 0.0
    %532 = vmatpush2.msra.mxu0 0.0
    %533 = vmatprep.subr.mxu0 0.0
    %534 = vmatpush2.msra.mxu0 0.0
    %535 = vmatprep.subr.mxu0 0.0
    %536 = vmatpush2.msra.mxu0 0.0
    %537 = vmatprep.subr.mxu0 0.0
    %538 = vmatpush2.msra.mxu0 0.0
    %539 = vmatprep.subr.mxu0 0.0
    %540 = vmatpush2.msra.mxu0 0.0
    %541 = vmatprep.subr.mxu0 0.0
    %542 = vmatpush2.msra.mxu0 0.0
    %543 = vmatprep.subr.mxu0 0.0
    %544 = vmatpush2.msra.mxu0 0.0
    %545 = vmatprep.mubr.f32.mxu0 0.0
    %546 = vmatmul.mubr.f32.gmra.mxu0 %v479
    %v547 = vpop.f32.mrf.mxu0
    %v548 = vadd.f32 %v472, %v547
    %v549 = vpop.f32.mrf.mxu0
    %v550 = vadd.f32 %v473, %v549
    %551 = vdwg.mxu0
    %552 = vmatprep.subr.mxu0 0.0
    %553 = vmatpush1.msra.mxu0 0.0
    %554 = vmatprep.subr.mxu0 0.0
    %555 = vmatpush1.msra.mxu0 0.0
    %556 = vmatprep.subr.mxu0 0.0
    %557 = vmatpush1.msra.mxu0 0.0
    %558 = vmatprep.subr.mxu0 0.0
    %559 = vmatpush1.msra.mxu0 0.0
    %560 = vmatprep.subr.mxu0 0.0
    %561 = vmatpush1.msra.mxu0 0.0
    %562 = vmatprep.subr.mxu0 0.0
    %563 = vmatpush1.msra.mxu0 0.0
    %564 = vmatprep.subr.mxu0 0.0
    %565 = vmatpush1.msra.mxu0 0.0
    %566 = vmatprep.subr.mxu0 0.0
    %567 = vmatpush1.msra.mxu0 0.0
    %568 = vmatprep.subr.mxu0 0.0
    %569 = vmatpush1.msra.mxu0 0.0
    %570 = vmatprep.subr.mxu0 0.0
    %571 = vmatpush1.msra.mxu0 0.0
    %572 = vmatprep.subr.mxu0 0.0
    %573 = vmatpush1.msra.mxu0 0.0
    %574 = vmatprep.subr.mxu0 0.0
    %575 = vmatpush1.msra.mxu0 0.0
    %576 = vmatprep.subr.mxu0 0.0
    %577 = vmatpush1.msra.mxu0 0.0
    %578 = vmatprep.subr.mxu0 0.0
    %579 = vmatpush1.msra.mxu0 0.0
    %580 = vmatprep.subr.mxu0 0.0
    %581 = vmatpush1.msra.mxu0 0.0
    %582 = vmatprep.subr.mxu0 %v469
    %583 = vmatpush1.msra.mxu0 %v468
    %584 = vmatprep.subr.mxu0 0.0
    %585 = vmatpush2.msra.mxu0 0.0
    %586 = vmatprep.subr.mxu0 0.0
    %587 = vmatpush2.msra.mxu0 0.0
    %588 = vmatprep.subr.mxu0 0.0
    %589 = vmatpush2.msra.mxu0 0.0
    %590 = vmatprep.subr.mxu0 0.0
    %591 = vmatpush2.msra.mxu0 0.0
    %592 = vmatprep.subr.mxu0 0.0
    %593 = vmatpush2.msra.mxu0 0.0
    %594 = vmatprep.subr.mxu0 0.0
    %595 = vmatpush2.msra.mxu0 0.0
    %596 = vmatprep.subr.mxu0 0.0
    %597 = vmatpush2.msra.mxu0 0.0
    %598 = vmatprep.subr.mxu0 0.0
    %599 = vmatpush2.msra.mxu0 0.0
    %600 = vmatprep.subr.mxu0 0.0
    %601 = vmatpush2.msra.mxu0 0.0
    %602 = vmatprep.subr.mxu0 0.0
    %603 = vmatpush2.msra.mxu0 0.0
    %604 = vmatprep.subr.mxu0 0.0
    %605 = vmatpush2.msra.mxu0 0.0
    %606 = vmatprep.subr.mxu0 0.0
    %607 = vmatpush2.msra.mxu0 0.0
    %608 = vmatprep.subr.mxu0 0.0
    %609 = vmatpush2.msra.mxu0 0.0
    %610 = vmatprep.subr.mxu0 0.0
    %611 = vmatpush2.msra.mxu0 0.0
    %612 = vmatprep.subr.mxu0 0.0
    %613 = vmatpush2.msra.mxu0 0.0
    %614 = vmatprep.subr.mxu0 0.0
    %615 = vmatpush2.msra.mxu0 0.0
    %616 = vmatprep.mubr.f32.mxu0 0.0
    %617 = vmatmul.mubr.f32.gmra.mxu0 %v479
    %v618 = vpop.f32.mrf.mxu0
    %v619 = vadd.f32 %v474, %v618
    %v620 = vpop.f32.mrf.mxu0
    %v621 = vadd.f32 %v475, %v620
    %622 = vdwg.mxu0
    %623 = vmatprep.subr.mxu0 0.0
    %624 = vmatpush1.msra.mxu0 0.0
    %625 = vmatprep.subr.mxu0 0.0
    %626 = vmatpush1.msra.mxu0 0.0
    %627 = vmatprep.subr.mxu0 0.0
    %628 = vmatpush1.msra.mxu0 0.0
    %629 = vmatprep.subr.mxu0 0.0
    %630 = vmatpush1.msra.mxu0 0.0
    %631 = vmatprep.subr.mxu0 0.0
    %632 = vmatpush1.msra.mxu0 0.0
    %633 = vmatprep.subr.mxu0 0.0
    %634 = vmatpush1.msra.mxu0 0.0
    %635 = vmatprep.subr.mxu0 0.0
    %636 = vmatpush1.msra.mxu0 0.0
    %637 = vmatprep.subr.mxu0 0.0
    %638 = vmatpush1.msra.mxu0 0.0
    %639 = vmatprep.subr.mxu0 0.0
    %640 = vmatpush1.msra.mxu0 0.0
    %641 = vmatprep.subr.mxu0 0.0
    %642 = vmatpush1.msra.mxu0 0.0
    %643 = vmatprep.subr.mxu0 0.0
    %644 = vmatpush1.msra.mxu0 0.0
    %645 = vmatprep.subr.mxu0 0.0
    %646 = vmatpush1.msra.mxu0 0.0
    %647 = vmatprep.subr.mxu0 0.0
    %648 = vmatpush1.msra.mxu0 0.0
    %649 = vmatprep.subr.mxu0 0.0
    %650 = vmatpush1.msra.mxu0 0.0
    %651 = vmatprep.subr.mxu0 0.0
    %652 = vmatpush1.msra.mxu0 0.0
    %653 = vmatprep.subr.mxu0 0.0
    %654 = vmatpush1.msra.mxu0 %v470
    %655 = vmatprep.subr.mxu0 0.0
    %656 = vmatpush2.msra.mxu0 0.0
    %657 = vmatprep.subr.mxu0 0.0
    %658 = vmatpush2.msra.mxu0 0.0
    %659 = vmatprep.subr.mxu0 0.0
    %660 = vmatpush2.msra.mxu0 0.0
    %661 = vmatprep.subr.mxu0 0.0
    %662 = vmatpush2.msra.mxu0 0.0
    %663 = vmatprep.subr.mxu0 0.0
    %664 = vmatpush2.msra.mxu0 0.0
    %665 = vmatprep.subr.mxu0 0.0
    %666 = vmatpush2.msra.mxu0 0.0
    %667 = vmatprep.subr.mxu0 0.0
    %668 = vmatpush2.msra.mxu0 0.0
    %669 = vmatprep.subr.mxu0 0.0
    %670 = vmatpush2.msra.mxu0 0.0
    %671 = vmatprep.subr.mxu0 0.0
    %672 = vmatpush2.msra.mxu0 0.0
    %673 = vmatprep.subr.mxu0 0.0
    %674 = vmatpush2.msra.mxu0 0.0
    %675 = vmatprep.subr.mxu0 0.0
    %676 = vmatpush2.msra.mxu0 0.0
    %677 = vmatprep.subr.mxu0 0.0
    %678 = vmatpush2.msra.mxu0 0.0
    %679 = vmatprep.subr.mxu0 0.0
    %680 = vmatpush2.msra.mxu0 0.0
    %681 = vmatprep.subr.mxu0 0.0
    %682 = vmatpush2.msra.mxu0 0.0
    %683 = vmatprep.subr.mxu0 0.0
    %684 = vmatpush2.msra.mxu0 0.0
    %685 = vmatprep.subr.mxu0 0.0
    %686 = vmatpush2.msra.mxu0 0.0
    %687 = vmatprep.mubr.f32.mxu0 0.0
    %688 = vmatmul.mubr.f32.gmra.mxu0 %v479
    %v689 = vpop.f32.mrf.mxu0
    %v690 = vadd.f32 %v476, %v689
    %v691 = vpop.f32.mrf.mxu0
    %692 = vdwg.mxu0
    %v693 = vmax.f32 %v548, 0.0
    %v694 = vmax.f32 %v550, 0.0
    %v695 = vmax.f32 %v619, 0.0
    %v696 = vmax.f32 %v621, 0.0
    %v697 = vmax.f32 %v690, 0.0
    %698 = vst [vmem:[#allocation3] sm:$0xff] %v693
    %699 = vst [vmem:[#allocation3 + $0x8] sm:$0xff] %v694
    %700 = vst [vmem:[#allocation3 + $0x10] sm:$0xff] %v695
    %701 = vst [vmem:[#allocation3 + $0x18] sm:$0xff] %v696
    %702 = vst [vmem:[#allocation3 + $0x20] sm:$0xff] %v697
    %v703 = vld [vmem:[#allocation2] sm:$0xff]
    %v704 = vld [vmem:[#allocation2 + $0x8] sm:$0xff]
    %v705 = vld [vmem:[#allocation8] sm:$0xff]
    %v706 = vld [vmem:[#allocation8 + $0x8] sm:$0xf]
    %709 = vrot.lane.b32.xlu0 %v705, 25
    %v710 = vpop.permute.xlu0 %709
    %711 = vrot.lane.b32.xlu0 %v706, 25
    %v712 = vpop.permute.xlu0 %711
    %v713 = vrot.slane %v710, 4
    %v714 = vrot.slane %v712, 4
    %vm715 = vcmask 203776
    %v716 = vsel %vm715, %v713, %v710
    %v717 = vsel %vm103, %v713, %v714
    %v718 = vsel %vm715, %v717, %v712
    %v721 = vmul.f32 %v703, %v716
    %v722 = vmul.f32 %v704, %v718
    %v723 = vadd.f32 %v721, 0.0
    %v724 = vadd.f32 %v722, 0.0
    %v725 = vld [vmem:[#allocation8 + $0xc] sm:$0xff]
    %v726 = vld [vmem:[#allocation8 + $0x14] sm:$0xf]
    %729 = vrot.lane.b32.xlu0 %v725, 26
    %v730 = vpop.permute.xlu0 %729
    %731 = vrot.lane.b32.xlu0 %v726, 26
    %v732 = vpop.permute.xlu0 %731
    %v733 = vrot.slane %v730, 4
    %v734 = vrot.slane %v732, 4
    %vm735 = vcmask 211968
    %v736 = vsel %vm735, %v733, %v730
    %v737 = vsel %vm103, %v733, %v734
    %v738 = vsel %vm735, %v737, %v732
    %v741 = vmul.f32 %v703, %v736
    %v742 = vmul.f32 %v704, %v738
    %745 = vrot.lane.b32.xlu0 %v741, 127
    %v746 = vpop.permute.xlu0 %745
    %747 = vrot.lane.b32.xlu0 %v742, 127
    %v748 = vpop.permute.xlu0 %747
    %v749 = vrot.slane %v746, 4
    %v750 = vrot.slane %v748, 4
    %v751 = vsel %vm103, %v749, %v750
    %vm752 = vcmask 1039360
    %v753 = vsel %vm752, %v746, %v751
    %v754 = vsel %vm752, %v748, %v750
    %v757 = vadd.f32 %v723, %v753
    %v758 = vadd.f32 %v724, %v754
    %v759 = vld [vmem:[#allocation8 + $0x18] sm:$0xff]
    %v760 = vld [vmem:[#allocation8 + $0x20] sm:$0xf]
    %763 = vrot.lane.b32.xlu0 %v759, 27
    %v764 = vpop.permute.xlu0 %763
    %765 = vrot.lane.b32.xlu0 %v760, 27
    %v766 = vpop.permute.xlu0 %765
    %v767 = vrot.slane %v764, 4
    %v768 = vrot.slane %v766, 4
    %vm769 = vcmask 220160
    %v770 = vsel %vm769, %v767, %v764
    %v771 = vsel %vm103, %v767, %v768
    %v772 = vsel %vm769, %v771, %v766
    %v775 = vmul.f32 %v703, %v770
    %v776 = vmul.f32 %v704, %v772
    %779 = vrot.lane.b32.xlu0 %v775, 126
    %v780 = vpop.permute.xlu0 %779
    %781 = vrot.lane.b32.xlu0 %v776, 126
    %v782 = vpop.permute.xlu0 %781
    %v783 = vrot.slane %v780, 4
    %v784 = vrot.slane %v782, 4
    %v785 = vsel %vm103, %v783, %v784
    %vm786 = vcmask 1031168
    %v787 = vsel %vm786, %v780, %v785
    %v788 = vsel %vm786, %v782, %v784
    %v791 = vadd.f32 %v757, %v787
    %v792 = vadd.f32 %v758, %v788
    %v793 = vld [vmem:[#allocation8 + $0x24] sm:$0xff]
    %v794 = vld [vmem:[#allocation8 + $0x2c] sm:$0xf]
    %797 = vrot.lane.b32.xlu0 %v793, 28
    %v798 = vpop.permute.xlu0 %797
    %799 = vrot.lane.b32.xlu0 %v794, 28
    %v800 = vpop.permute.xlu0 %799
    %v801 = vrot.slane %v798, 4
    %v802 = vrot.slane %v800, 4
    %vm803 = vcmask 228352
    %v804 = vsel %vm803, %v801, %v798
    %v805 = vsel %vm103, %v801, %v802
    %v806 = vsel %vm803, %v805, %v800
    %v809 = vmul.f32 %v703, %v804
    %v810 = vmul.f32 %v704, %v806
    %813 = vrot.lane.b32.xlu0 %v809, 125
    %v814 = vpop.permute.xlu0 %813
    %815 = vrot.lane.b32.xlu0 %v810, 125
    %v816 = vpop.permute.xlu0 %815
    %v817 = vrot.slane %v814, 4
    %v818 = vrot.slane %v816, 4
    %v819 = vsel %vm103, %v817, %v818
    %vm820 = vcmask 1022976
    %v821 = vsel %vm820, %v814, %v819
    %v822 = vsel %vm820, %v816, %v818
    %v825 = vadd.f32 %v791, %v821
    %v826 = vadd.f32 %v792, %v822
    %v827 = vld [vmem:[#allocation8 + $0x30] sm:$0xff]
    %v828 = vld [vmem:[#allocation8 + $0x38] sm:$0xf]
    %831 = vrot.lane.b32.xlu0 %v827, 29
    %v832 = vpop.permute.xlu0 %831
    %833 = vrot.lane.b32.xlu0 %v828, 29
    %v834 = vpop.permute.xlu0 %833
    %v835 = vrot.slane %v832, 4
    %v836 = vrot.slane %v834, 4
    %vm837 = vcmask 236544
    %v838 = vsel %vm837, %v835, %v832
    %v839 = vsel %vm103, %v835, %v836
    %v840 = vsel %vm837, %v839, %v834
    %v843 = vmul.f32 %v703, %v838
    %v844 = vmul.f32 %v704, %v840
    %847 = vrot.lane.b32.xlu0 %v843, 124
    %v848 = vpop.permute.xlu0 %847
    %849 = vrot.lane.b32.xlu0 %v844, 124
    %v850 = vpop.permute.xlu0 %849
    %v851 = vrot.slane %v848, 4
    %v852 = vrot.slane %v850, 4
    %v853 = vsel %vm103, %v851, %v852
    %vm854 = vcmask 1014784
    %v855 = vsel %vm854, %v848, %v853
    %v856 = vsel %vm854, %v850, %v852
    %v859 = vadd.f32 %v825, %v855
    %v860 = vadd.f32 %v826, %v856
    %v861 = vld [vmem:[#allocation8 + $0x3c] sm:$0xff]
    %v862 = vld [vmem:[#allocation8 + $0x44] sm:$0xf]
    %865 = vrot.lane.b32.xlu0 %v861, 30
    %v866 = vpop.permute.xlu0 %865
    %867 = vrot.lane.b32.xlu0 %v862, 30
    %v868 = vpop.permute.xlu0 %867
    %v869 = vrot.slane %v866, 4
    %v870 = vrot.slane %v868, 4
    %vm871 = vcmask 244736
    %v872 = vsel %vm871, %v869, %v866
    %v873 = vsel %vm103, %v869, %v870
    %v874 = vsel %vm871, %v873, %v868
    %v877 = vmul.f32 %v703, %v872
    %v878 = vmul.f32 %v704, %v874
    %881 = vrot.lane.b32.xlu0 %v877, 123
    %v882 = vpop.permute.xlu0 %881
    %883 = vrot.lane.b32.xlu0 %v878, 123
    %v884 = vpop.permute.xlu0 %883
    %v885 = vrot.slane %v882, 4
    %v886 = vrot.slane %v884, 4
    %v887 = vsel %vm103, %v885, %v886
    %vm888 = vcmask 1006592
    %v889 = vsel %vm888, %v882, %v887
    %v890 = vsel %vm888, %v884, %v886
    %v893 = vadd.f32 %v859, %v889
    %v894 = vadd.f32 %v860, %v890
    %v895 = vld [vmem:[#allocation8 + $0x48] sm:$0xff]
    %v896 = vld [vmem:[#allocation8 + $0x50] sm:$0xf]
    %899 = vrot.lane.b32.xlu0 %v895, 31
    %v900 = vpop.permute.xlu0 %899
    %901 = vrot.lane.b32.xlu0 %v896, 31
    %v902 = vpop.permute.xlu0 %901
    %v903 = vrot.slane %v900, 4
    %v904 = vrot.slane %v902, 4
    %vm905 = vcmask 252928
    %v906 = vsel %vm905, %v903, %v900
    %v907 = vsel %vm103, %v903, %v904
    %v908 = vsel %vm905, %v907, %v902
    %v911 = vmul.f32 %v703, %v906
    %v912 = vmul.f32 %v704, %v908
    %915 = vrot.lane.b32.xlu0 %v911, 122
    %v916 = vpop.permute.xlu0 %915
    %917 = vrot.lane.b32.xlu0 %v912, 122
    %v918 = vpop.permute.xlu0 %917
    %v919 = vrot.slane %v916, 4
    %v920 = vrot.slane %v918, 4
    %v921 = vsel %vm103, %v919, %v920
    %vm922 = vcmask 998400
    %v923 = vsel %vm922, %v916, %v921
    %v924 = vsel %vm922, %v918, %v920
    %v927 = vadd.f32 %v893, %v923
    %v928 = vadd.f32 %v894, %v924
    %v929 = vld [vmem:[#allocation8 + $0x54] sm:$0xff]
    %v930 = vld [vmem:[#allocation8 + $0x5c] sm:$0xf]
    %933 = vrot.lane.b32.xlu0 %v929, 49
    %v934 = vpop.permute.xlu0 %933
    %935 = vrot.lane.b32.xlu0 %v930, 49
    %v936 = vpop.permute.xlu0 %935
    %v937 = vrot.slane %v934, 4
    %v938 = vrot.slane %v936, 4
    %vm939 = vcmask 400384
    %v940 = vsel %vm939, %v937, %v934
    %v941 = vsel %vm103, %v937, %v938
    %v942 = vsel %vm939, %v941, %v936
    %v945 = vmul.f32 %v703, %v940
    %v946 = vmul.f32 %v704, %v942
    %949 = vrot.lane.b32.xlu0 %v945, 104
    %v950 = vpop.permute.xlu0 %949
    %951 = vrot.lane.b32.xlu0 %v946, 104
    %v952 = vpop.permute.xlu0 %951
    %v953 = vrot.slane %v950, 4
    %v954 = vrot.slane %v952, 4
    %v955 = vsel %vm103, %v953, %v954
    %vm956 = vcmask 850944
    %v957 = vsel %vm956, %v950, %v955
    %v958 = vsel %vm956, %v952, %v954
    %v961 = vadd.f32 %v927, %v957
    %v962 = vadd.f32 %v928, %v958
    %v963 = vld [vmem:[#allocation8 + $0x60] sm:$0xff]
    %v964 = vld [vmem:[#allocation8 + $0x68] sm:$0xf]
    %967 = vrot.lane.b32.xlu0 %v963, 50
    %v968 = vpop.permute.xlu0 %967
    %969 = vrot.lane.b32.xlu0 %v964, 50
    %v970 = vpop.permute.xlu0 %969
    %v971 = vrot.slane %v968, 4
    %v972 = vrot.slane %v970, 4
    %vm973 = vcmask 408576
    %v974 = vsel %vm973, %v971, %v968
    %v975 = vsel %vm103, %v971, %v972
    %v976 = vsel %vm973, %v975, %v970
    %v979 = vmul.f32 %v703, %v974
    %v980 = vmul.f32 %v704, %v976
    %983 = vrot.lane.b32.xlu0 %v979, 103
    %v984 = vpop.permute.xlu0 %983
    %985 = vrot.lane.b32.xlu0 %v980, 103
    %v986 = vpop.permute.xlu0 %985
    %v987 = vrot.slane %v984, 4
    %v988 = vrot.slane %v986, 4
    %v989 = vsel %vm103, %v987, %v988
    %vm990 = vcmask 842752
    %v991 = vsel %vm990, %v984, %v989
    %v992 = vsel %vm990, %v986, %v988
    %v995 = vadd.f32 %v961, %v991
    %v996 = vadd.f32 %v962, %v992
    %v997 = vld [vmem:[#allocation8 + $0x6c] sm:$0xff]
    %v998 = vld [vmem:[#allocation8 + $0x74] sm:$0xf]
    %1001 = vrot.lane.b32.xlu0 %v997, 51
    %v1002 = vpop.permute.xlu0 %1001
    %1003 = vrot.lane.b32.xlu0 %v998, 51
    %v1004 = vpop.permute.xlu0 %1003
    %v1005 = vrot.slane %v1002, 4
    %v1006 = vrot.slane %v1004, 4
    %vm1007 = vcmask 416768
    %v1008 = vsel %vm1007, %v1005, %v1002
    %v1009 = vsel %vm103, %v1005, %v1006
    %v1010 = vsel %vm1007, %v1009, %v1004
    %v1013 = vmul.f32 %v703, %v1008
    %v1014 = vmul.f32 %v704, %v1010
    %1017 = vrot.lane.b32.xlu0 %v1013, 102
    %v1018 = vpop.permute.xlu0 %1017
    %1019 = vrot.lane.b32.xlu0 %v1014, 102
    %v1020 = vpop.permute.xlu0 %1019
    %v1021 = vrot.slane %v1018, 4
    %v1022 = vrot.slane %v1020, 4
    %v1023 = vsel %vm103, %v1021, %v1022
    %vm1024 = vcmask 834560
    %v1025 = vsel %vm1024, %v1018, %v1023
    %v1026 = vsel %vm1024, %v1020, %v1022
    %v1029 = vadd.f32 %v995, %v1025
    %v1030 = vadd.f32 %v996, %v1026
    %v1031 = vld [vmem:[#allocation8 + $0x78] sm:$0xff]
    %v1032 = vld [vmem:[#allocation8 + $0x80] sm:$0xf]
    %1035 = vrot.lane.b32.xlu0 %v1031, 52
    %v1036 = vpop.permute.xlu0 %1035
    %1037 = vrot.lane.b32.xlu0 %v1032, 52
    %v1038 = vpop.permute.xlu0 %1037
    %v1039 = vrot.slane %v1036, 4
    %v1040 = vrot.slane %v1038, 4
    %vm1041 = vcmask 424960
    %v1042 = vsel %vm1041, %v1039, %v1036
    %v1043 = vsel %vm103, %v1039, %v1040
    %v1044 = vsel %vm1041, %v1043, %v1038
    %v1047 = vmul.f32 %v703, %v1042
    %v1048 = vmul.f32 %v704, %v1044
    %1051 = vrot.lane.b32.xlu0 %v1047, 101
    %v1052 = vpop.permute.xlu0 %1051
    %1053 = vrot.lane.b32.xlu0 %v1048, 101
    %v1054 = vpop.permute.xlu0 %1053
    %v1055 = vrot.slane %v1052, 4
    %v1056 = vrot.slane %v1054, 4
    %v1057 = vsel %vm103, %v1055, %v1056
    %vm1058 = vcmask 826368
    %v1059 = vsel %vm1058, %v1052, %v1057
    %v1060 = vsel %vm1058, %v1054, %v1056
    %v1063 = vadd.f32 %v1029, %v1059
    %v1064 = vadd.f32 %v1030, %v1060
    %v1065 = vld [vmem:[#allocation8 + $0x84] sm:$0xff]
    %v1066 = vld [vmem:[#allocation8 + $0x8c] sm:$0xf]
    %1069 = vrot.lane.b32.xlu0 %v1065, 53
    %v1070 = vpop.permute.xlu0 %1069
    %1071 = vrot.lane.b32.xlu0 %v1066, 53
    %v1072 = vpop.permute.xlu0 %1071
    %v1073 = vrot.slane %v1070, 4
    %v1074 = vrot.slane %v1072, 4
    %vm1075 = vcmask 433152
    %v1076 = vsel %vm1075, %v1073, %v1070
    %v1077 = vsel %vm103, %v1073, %v1074
    %v1078 = vsel %vm1075, %v1077, %v1072
    %v1081 = vmul.f32 %v703, %v1076
    %v1082 = vmul.f32 %v704, %v1078
    %1085 = vrot.lane.b32.xlu0 %v1081, 100
    %v1086 = vpop.permute.xlu0 %1085
    %1087 = vrot.lane.b32.xlu0 %v1082, 100
    %v1088 = vpop.permute.xlu0 %1087
    %v1089 = vrot.slane %v1086, 4
    %v1090 = vrot.slane %v1088, 4
    %v1091 = vsel %vm103, %v1089, %v1090
    %vm1092 = vcmask 818176
    %v1093 = vsel %vm1092, %v1086, %v1091
    %v1094 = vsel %vm1092, %v1088, %v1090
    %v1097 = vadd.f32 %v1063, %v1093
    %v1098 = vadd.f32 %v1064, %v1094
    %v1099 = vld [vmem:[#allocation8 + $0x90] sm:$0xff]
    %v1100 = vld [vmem:[#allocation8 + $0x98] sm:$0xf]
    %1103 = vrot.lane.b32.xlu0 %v1099, 54
    %v1104 = vpop.permute.xlu0 %1103
    %1105 = vrot.lane.b32.xlu0 %v1100, 54
    %v1106 = vpop.permute.xlu0 %1105
    %v1107 = vrot.slane %v1104, 4
    %v1108 = vrot.slane %v1106, 4
    %vm1109 = vcmask 441344
    %v1110 = vsel %vm1109, %v1107, %v1104
    %v1111 = vsel %vm103, %v1107, %v1108
    %v1112 = vsel %vm1109, %v1111, %v1106
    %v1115 = vmul.f32 %v703, %v1110
    %v1116 = vmul.f32 %v704, %v1112
    %1119 = vrot.lane.b32.xlu0 %v1115, 99
    %v1120 = vpop.permute.xlu0 %1119
    %1121 = vrot.lane.b32.xlu0 %v1116, 99
    %v1122 = vpop.permute.xlu0 %1121
    %v1123 = vrot.slane %v1120, 4
    %v1124 = vrot.slane %v1122, 4
    %v1125 = vsel %vm103, %v1123, %v1124
    %vm1126 = vcmask 809984
    %v1127 = vsel %vm1126, %v1120, %v1125
    %v1128 = vsel %vm1126, %v1122, %v1124
    %v1131 = vadd.f32 %v1097, %v1127
    %v1132 = vadd.f32 %v1098, %v1128
    %v1133 = vld [vmem:[#allocation8 + $0x9c] sm:$0xff]
    %v1134 = vld [vmem:[#allocation8 + $0xa4] sm:$0xf]
    %1137 = vrot.lane.b32.xlu0 %v1133, 55
    %v1138 = vpop.permute.xlu0 %1137
    %1139 = vrot.lane.b32.xlu0 %v1134, 55
    %v1140 = vpop.permute.xlu0 %1139
    %v1141 = vrot.slane %v1138, 4
    %v1142 = vrot.slane %v1140, 4
    %vm1143 = vcmask 449536
    %v1144 = vsel %vm1143, %v1141, %v1138
    %v1145 = vsel %vm103, %v1141, %v1142
    %v1146 = vsel %vm1143, %v1145, %v1140
    %v1149 = vmul.f32 %v703, %v1144
    %v1150 = vmul.f32 %v704, %v1146
    %1153 = vrot.lane.b32.xlu0 %v1149, 98
    %v1154 = vpop.permute.xlu0 %1153
    %1155 = vrot.lane.b32.xlu0 %v1150, 98
    %v1156 = vpop.permute.xlu0 %1155
    %v1157 = vrot.slane %v1154, 4
    %v1158 = vrot.slane %v1156, 4
    %v1159 = vsel %vm103, %v1157, %v1158
    %vm1160 = vcmask 801792
    %v1161 = vsel %vm1160, %v1154, %v1159
    %v1162 = vsel %vm1160, %v1156, %v1158
    %v1165 = vadd.f32 %v1131, %v1161
    %v1166 = vadd.f32 %v1132, %v1162
    %v1167 = vld [vmem:[#allocation8 + $0xa8] sm:$0xff]
    %v1168 = vld [vmem:[#allocation8 + $0xb0] sm:$0xf]
    %1171 = vrot.lane.b32.xlu0 %v1167, 73
    %v1172 = vpop.permute.xlu0 %1171
    %1173 = vrot.lane.b32.xlu0 %v1168, 73
    %v1174 = vpop.permute.xlu0 %1173
    %v1175 = vrot.slane %v1172, 4
    %v1176 = vrot.slane %v1174, 4
    %vm1177 = vcmask 596992
    %v1178 = vsel %vm1177, %v1175, %v1172
    %v1179 = vsel %vm103, %v1175, %v1176
    %v1180 = vsel %vm1177, %v1179, %v1174
    %v1183 = vmul.f32 %v703, %v1178
    %v1184 = vmul.f32 %v704, %v1180
    %1187 = vrot.lane.b32.xlu0 %v1183, 80
    %v1188 = vpop.permute.xlu0 %1187
    %1189 = vrot.lane.b32.xlu0 %v1184, 80
    %v1190 = vpop.permute.xlu0 %1189
    %v1191 = vrot.slane %v1188, 4
    %v1192 = vrot.slane %v1190, 4
    %v1193 = vsel %vm103, %v1191, %v1192
    %vm1194 = vcmask 654336
    %v1195 = vsel %vm1194, %v1188, %v1193
    %v1196 = vsel %vm1194, %v1190, %v1192
    %v1199 = vadd.f32 %v1165, %v1195
    %v1200 = vadd.f32 %v1166, %v1196
    %v1201 = vld [vmem:[#allocation8 + $0xb4] sm:$0xff]
    %v1202 = vld [vmem:[#allocation8 + $0xbc] sm:$0xf]
    %1205 = vrot.lane.b32.xlu0 %v1201, 74
    %v1206 = vpop.permute.xlu0 %1205
    %1207 = vrot.lane.b32.xlu0 %v1202, 74
    %v1208 = vpop.permute.xlu0 %1207
    %v1209 = vrot.slane %v1206, 4
    %v1210 = vrot.slane %v1208, 4
    %vm1211 = vcmask 605184
    %v1212 = vsel %vm1211, %v1209, %v1206
    %v1213 = vsel %vm103, %v1209, %v1210
    %v1214 = vsel %vm1211, %v1213, %v1208
    %v1217 = vmul.f32 %v703, %v1212
    %v1218 = vmul.f32 %v704, %v1214
    %1221 = vrot.lane.b32.xlu0 %v1217, 79
    %v1222 = vpop.permute.xlu0 %1221
    %1223 = vrot.lane.b32.xlu0 %v1218, 79
    %v1224 = vpop.permute.xlu0 %1223
    %v1225 = vrot.slane %v1222, 4
    %v1226 = vrot.slane %v1224, 4
    %v1227 = vsel %vm103, %v1225, %v1226
    %vm1228 = vcmask 646144
    %v1229 = vsel %vm1228, %v1222, %v1227
    %v1230 = vsel %vm1228, %v1224, %v1226
    %v1233 = vadd.f32 %v1199, %v1229
    %v1234 = vadd.f32 %v1200, %v1230
    %v1235 = vld [vmem:[#allocation8 + $0xc0] sm:$0xff]
    %v1236 = vld [vmem:[#allocation8 + $0xc8] sm:$0xf]
    %1239 = vrot.lane.b32.xlu0 %v1235, 75
    %v1240 = vpop.permute.xlu0 %1239
    %1241 = vrot.lane.b32.xlu0 %v1236, 75
    %v1242 = vpop.permute.xlu0 %1241
    %v1243 = vrot.slane %v1240, 4
    %v1244 = vrot.slane %v1242, 4
    %vm1245 = vcmask 613376
    %v1246 = vsel %vm1245, %v1243, %v1240
    %v1247 = vsel %vm103, %v1243, %v1244
    %v1248 = vsel %vm1245, %v1247, %v1242
    %v1251 = vmul.f32 %v703, %v1246
    %v1252 = vmul.f32 %v704, %v1248
    %1255 = vrot.lane.b32.xlu0 %v1251, 78
    %v1256 = vpop.permute.xlu0 %1255
    %1257 = vrot.lane.b32.xlu0 %v1252, 78
    %v1258 = vpop.permute.xlu0 %1257
    %v1259 = vrot.slane %v1256, 4
    %v1260 = vrot.slane %v1258, 4
    %v1261 = vsel %vm103, %v1259, %v1260
    %vm1262 = vcmask 637952
    %v1263 = vsel %vm1262, %v1256, %v1261
    %v1264 = vsel %vm1262, %v1258, %v1260
    %v1267 = vadd.f32 %v1233, %v1263
    %v1268 = vadd.f32 %v1234, %v1264
    %v1269 = vld [vmem:[#allocation8 + $0xcc] sm:$0xff]
    %v1270 = vld [vmem:[#allocation8 + $0xd4] sm:$0xf]
    %1273 = vrot.lane.b32.xlu0 %v1269, 76
    %v1274 = vpop.permute.xlu0 %1273
    %1275 = vrot.lane.b32.xlu0 %v1270, 76
    %v1276 = vpop.permute.xlu0 %1275
    %v1277 = vrot.slane %v1274, 4
    %v1278 = vrot.slane %v1276, 4
    %vm1279 = vcmask 621568
    %v1280 = vsel %vm1279, %v1277, %v1274
    %v1281 = vsel %vm103, %v1277, %v1278
    %v1282 = vsel %vm1279, %v1281, %v1276
    %v1285 = vmul.f32 %v703, %v1280
    %v1286 = vmul.f32 %v704, %v1282
    %1289 = vrot.lane.b32.xlu0 %v1285, 77
    %v1290 = vpop.permute.xlu0 %1289
    %1291 = vrot.lane.b32.xlu0 %v1286, 77
    %v1292 = vpop.permute.xlu0 %1291
    %v1293 = vrot.slane %v1290, 4
    %v1294 = vrot.slane %v1292, 4
    %v1295 = vsel %vm103, %v1293, %v1294
    %vm1296 = vcmask 629760
    %v1297 = vsel %vm1296, %v1290, %v1295
    %v1298 = vsel %vm1296, %v1292, %v1294
    %v1301 = vadd.f32 %v1267, %v1297
    %v1302 = vadd.f32 %v1268, %v1298
    %v1303 = vld [vmem:[#allocation8 + $0xd8] sm:$0xff]
    %v1304 = vld [vmem:[#allocation8 + $0xe0] sm:$0xf]
    %1307 = vrot.lane.b32.xlu0 %v1303, 77
    %v1308 = vpop.permute.xlu0 %1307
    %1309 = vrot.lane.b32.xlu0 %v1304, 77
    %v1310 = vpop.permute.xlu0 %1309
    %v1311 = vrot.slane %v1308, 4
    %v1312 = vrot.slane %v1310, 4
    %v1313 = vsel %vm1296, %v1311, %v1308
    %v1314 = vsel %vm103, %v1311, %v1312
    %v1315 = vsel %vm1296, %v1314, %v1310
    %v1318 = vmul.f32 %v703, %v1313
    %v1319 = vmul.f32 %v704, %v1315
    %1322 = vrot.lane.b32.xlu0 %v1318, 76
    %v1323 = vpop.permute.xlu0 %1322
    %1324 = vrot.lane.b32.xlu0 %v1319, 76
    %v1325 = vpop.permute.xlu0 %1324
    %v1326 = vrot.slane %v1323, 4
    %v1327 = vrot.slane %v1325, 4
    %v1328 = vsel %vm103, %v1326, %v1327
    %v1329 = vsel %vm1279, %v1323, %v1328
    %v1330 = vsel %vm1279, %v1325, %v1327
    %v1333 = vadd.f32 %v1301, %v1329
    %v1334 = vadd.f32 %v1302, %v1330
    %v1335 = vld [vmem:[#allocation8 + $0xe4] sm:$0xff]
    %v1336 = vld [vmem:[#allocation8 + $0xec] sm:$0xf]
    %1339 = vrot.lane.b32.xlu0 %v1335, 78
    %v1340 = vpop.permute.xlu0 %1339
    %1341 = vrot.lane.b32.xlu0 %v1336, 78
    %v1342 = vpop.permute.xlu0 %1341
    %v1343 = vrot.slane %v1340, 4
    %v1344 = vrot.slane %v1342, 4
    %v1345 = vsel %vm1262, %v1343, %v1340
    %v1346 = vsel %vm103, %v1343, %v1344
    %v1347 = vsel %vm1262, %v1346, %v1342
    %v1350 = vmul.f32 %v703, %v1345
    %v1351 = vmul.f32 %v704, %v1347
    %1354 = vrot.lane.b32.xlu0 %v1350, 75
    %v1355 = vpop.permute.xlu0 %1354
    %1356 = vrot.lane.b32.xlu0 %v1351, 75
    %v1357 = vpop.permute.xlu0 %1356
    %v1358 = vrot.slane %v1355, 4
    %v1359 = vrot.slane %v1357, 4
    %v1360 = vsel %vm103, %v1358, %v1359
    %v1361 = vsel %vm1245, %v1355, %v1360
    %v1362 = vsel %vm1245, %v1357, %v1359
    %v1365 = vadd.f32 %v1333, %v1361
    %v1366 = vadd.f32 %v1334, %v1362
    %v1367 = vld [vmem:[#allocation8 + $0xf0] sm:$0xff]
    %v1368 = vld [vmem:[#allocation8 + $0xf8] sm:$0xf]
    %1371 = vrot.lane.b32.xlu0 %v1367, 79
    %v1372 = vpop.permute.xlu0 %1371
    %1373 = vrot.lane.b32.xlu0 %v1368, 79
    %v1374 = vpop.permute.xlu0 %1373
    %v1375 = vrot.slane %v1372, 4
    %v1376 = vrot.slane %v1374, 4
    %v1377 = vsel %vm1228, %v1375, %v1372
    %v1378 = vsel %vm103, %v1375, %v1376
    %v1379 = vsel %vm1228, %v1378, %v1374
    %v1382 = vmul.f32 %v703, %v1377
    %v1383 = vmul.f32 %v704, %v1379
    %1386 = vrot.lane.b32.xlu0 %v1382, 74
    %v1387 = vpop.permute.xlu0 %1386
    %1388 = vrot.lane.b32.xlu0 %v1383, 74
    %v1389 = vpop.permute.xlu0 %1388
    %v1390 = vrot.slane %v1387, 4
    %v1391 = vrot.slane %v1389, 4
    %v1392 = vsel %vm103, %v1390, %v1391
    %v1393 = vsel %vm1211, %v1387, %v1392
    %v1394 = vsel %vm1211, %v1389, %v1391
    %v1397 = vadd.f32 %v1365, %v1393
    %v1398 = vadd.f32 %v1366, %v1394
    %v1399 = vld [vmem:[#allocation8 + $0xfc] sm:$0xff]
    %v1400 = vld [vmem:[#allocation8 + $0x104] sm:$0xf]
    %1403 = vrot.lane.b32.xlu0 %v1399, 97
    %v1404 = vpop.permute.xlu0 %1403
    %1405 = vrot.lane.b32.xlu0 %v1400, 97
    %v1406 = vpop.permute.xlu0 %1405
    %v1407 = vrot.slane %v1404, 4
    %v1408 = vrot.slane %v1406, 4
    %vm1409 = vcmask 793600
    %v1410 = vsel %vm1409, %v1407, %v1404
    %v1411 = vsel %vm103, %v1407, %v1408
    %v1412 = vsel %vm1409, %v1411, %v1406
    %v1415 = vmul.f32 %v703, %v1410
    %v1416 = vmul.f32 %v704, %v1412
    %1419 = vrot.lane.b32.xlu0 %v1415, 56
    %v1420 = vpop.permute.xlu0 %1419
    %1421 = vrot.lane.b32.xlu0 %v1416, 56
    %v1422 = vpop.permute.xlu0 %1421
    %v1423 = vrot.slane %v1420, 4
    %v1424 = vrot.slane %v1422, 4
    %v1425 = vsel %vm103, %v1423, %v1424
    %vm1426 = vcmask 457728
    %v1427 = vsel %vm1426, %v1420, %v1425
    %v1428 = vsel %vm1426, %v1422, %v1424
    %v1431 = vadd.f32 %v1397, %v1427
    %v1432 = vadd.f32 %v1398, %v1428
    %v1433 = vld [vmem:[#allocation8 + $0x108] sm:$0xff]
    %v1434 = vld [vmem:[#allocation8 + $0x110] sm:$0xf]
    %1437 = vrot.lane.b32.xlu0 %v1433, 98
    %v1438 = vpop.permute.xlu0 %1437
    %1439 = vrot.lane.b32.xlu0 %v1434, 98
    %v1440 = vpop.permute.xlu0 %1439
    %v1441 = vrot.slane %v1438, 4
    %v1442 = vrot.slane %v1440, 4
    %v1443 = vsel %vm1160, %v1441, %v1438
    %v1444 = vsel %vm103, %v1441, %v1442
    %v1445 = vsel %vm1160, %v1444, %v1440
    %v1448 = vmul.f32 %v703, %v1443
    %v1449 = vmul.f32 %v704, %v1445
    %1452 = vrot.lane.b32.xlu0 %v1448, 55
    %v1453 = vpop.permute.xlu0 %1452
    %1454 = vrot.lane.b32.xlu0 %v1449, 55
    %v1455 = vpop.permute.xlu0 %1454
    %v1456 = vrot.slane %v1453, 4
    %v1457 = vrot.slane %v1455, 4
    %v1458 = vsel %vm103, %v1456, %v1457
    %v1459 = vsel %vm1143, %v1453, %v1458
    %v1460 = vsel %vm1143, %v1455, %v1457
    %v1463 = vadd.f32 %v1431, %v1459
    %v1464 = vadd.f32 %v1432, %v1460
    %v1465 = vld [vmem:[#allocation8 + $0x114] sm:$0xff]
    %v1466 = vld [vmem:[#allocation8 + $0x11c] sm:$0xf]
    %1469 = vrot.lane.b32.xlu0 %v1465, 99
    %v1470 = vpop.permute.xlu0 %1469
    %1471 = vrot.lane.b32.xlu0 %v1466, 99
    %v1472 = vpop.permute.xlu0 %1471
    %v1473 = vrot.slane %v1470, 4
    %v1474 = vrot.slane %v1472, 4
    %v1475 = vsel %vm1126, %v1473, %v1470
    %v1476 = vsel %vm103, %v1473, %v1474
    %v1477 = vsel %vm1126, %v1476, %v1472
    %v1480 = vmul.f32 %v703, %v1475
    %v1481 = vmul.f32 %v704, %v1477
    %1484 = vrot.lane.b32.xlu0 %v1480, 54
    %v1485 = vpop.permute.xlu0 %1484
    %1486 = vrot.lane.b32.xlu0 %v1481, 54
    %v1487 = vpop.permute.xlu0 %1486
    %v1488 = vrot.slane %v1485, 4
    %v1489 = vrot.slane %v1487, 4
    %v1490 = vsel %vm103, %v1488, %v1489
    %v1491 = vsel %vm1109, %v1485, %v1490
    %v1492 = vsel %vm1109, %v1487, %v1489
    %v1495 = vadd.f32 %v1463, %v1491
    %v1496 = vadd.f32 %v1464, %v1492
    %v1497 = vld [vmem:[#allocation8 + $0x120] sm:$0xff]
    %v1498 = vld [vmem:[#allocation8 + $0x128] sm:$0xf]
    %1501 = vrot.lane.b32.xlu0 %v1497, 100
    %v1502 = vpop.permute.xlu0 %1501
    %1503 = vrot.lane.b32.xlu0 %v1498, 100
    %v1504 = vpop.permute.xlu0 %1503
    %v1505 = vrot.slane %v1502, 4
    %v1506 = vrot.slane %v1504, 4
    %v1507 = vsel %vm1092, %v1505, %v1502
    %v1508 = vsel %vm103, %v1505, %v1506
    %v1509 = vsel %vm1092, %v1508, %v1504
    %v1512 = vmul.f32 %v703, %v1507
    %v1513 = vmul.f32 %v704, %v1509
    %1516 = vrot.lane.b32.xlu0 %v1512, 53
    %v1517 = vpop.permute.xlu0 %1516
    %1518 = vrot.lane.b32.xlu0 %v1513, 53
    %v1519 = vpop.permute.xlu0 %1518
    %v1520 = vrot.slane %v1517, 4
    %v1521 = vrot.slane %v1519, 4
    %v1522 = vsel %vm103, %v1520, %v1521
    %v1523 = vsel %vm1075, %v1517, %v1522
    %v1524 = vsel %vm1075, %v1519, %v1521
    %v1527 = vadd.f32 %v1495, %v1523
    %v1528 = vadd.f32 %v1496, %v1524
    %v1529 = vld [vmem:[#allocation8 + $0x12c] sm:$0xff]
    %v1530 = vld [vmem:[#allocation8 + $0x134] sm:$0xf]
    %1533 = vrot.lane.b32.xlu0 %v1529, 101
    %v1534 = vpop.permute.xlu0 %1533
    %1535 = vrot.lane.b32.xlu0 %v1530, 101
    %v1536 = vpop.permute.xlu0 %1535
    %v1537 = vrot.slane %v1534, 4
    %v1538 = vrot.slane %v1536, 4
    %v1539 = vsel %vm1058, %v1537, %v1534
    %v1540 = vsel %vm103, %v1537, %v1538
    %v1541 = vsel %vm1058, %v1540, %v1536
    %v1544 = vmul.f32 %v703, %v1539
    %v1545 = vmul.f32 %v704, %v1541
    %1548 = vrot.lane.b32.xlu0 %v1544, 52
    %v1549 = vpop.permute.xlu0 %1548
    %1550 = vrot.lane.b32.xlu0 %v1545, 52
    %v1551 = vpop.permute.xlu0 %1550
    %v1552 = vrot.slane %v1549, 4
    %v1553 = vrot.slane %v1551, 4
    %v1554 = vsel %vm103, %v1552, %v1553
    %v1555 = vsel %vm1041, %v1549, %v1554
    %v1556 = vsel %vm1041, %v1551, %v1553
    %v1559 = vadd.f32 %v1527, %v1555
    %v1560 = vadd.f32 %v1528, %v1556
    %v1561 = vld [vmem:[#allocation8 + $0x138] sm:$0xff]
    %v1562 = vld [vmem:[#allocation8 + $0x140] sm:$0xf]
    %1565 = vrot.lane.b32.xlu0 %v1561, 102
    %v1566 = vpop.permute.xlu0 %1565
    %1567 = vrot.lane.b32.xlu0 %v1562, 102
    %v1568 = vpop.permute.xlu0 %1567
    %v1569 = vrot.slane %v1566, 4
    %v1570 = vrot.slane %v1568, 4
    %v1571 = vsel %vm1024, %v1569, %v1566
    %v1572 = vsel %vm103, %v1569, %v1570
    %v1573 = vsel %vm1024, %v1572, %v1568
    %v1576 = vmul.f32 %v703, %v1571
    %v1577 = vmul.f32 %v704, %v1573
    %1580 = vrot.lane.b32.xlu0 %v1576, 51
    %v1581 = vpop.permute.xlu0 %1580
    %1582 = vrot.lane.b32.xlu0 %v1577, 51
    %v1583 = vpop.permute.xlu0 %1582
    %v1584 = vrot.slane %v1581, 4
    %v1585 = vrot.slane %v1583, 4
    %v1586 = vsel %vm103, %v1584, %v1585
    %v1587 = vsel %vm1007, %v1581, %v1586
    %v1588 = vsel %vm1007, %v1583, %v1585
    %v1591 = vadd.f32 %v1559, %v1587
    %v1592 = vadd.f32 %v1560, %v1588
    %v1593 = vld [vmem:[#allocation8 + $0x144] sm:$0xff]
    %v1594 = vld [vmem:[#allocation8 + $0x14c] sm:$0xf]
    %1597 = vrot.lane.b32.xlu0 %v1593, 103
    %v1598 = vpop.permute.xlu0 %1597
    %1599 = vrot.lane.b32.xlu0 %v1594, 103
    %v1600 = vpop.permute.xlu0 %1599
    %v1601 = vrot.slane %v1598, 4
    %v1602 = vrot.slane %v1600, 4
    %v1603 = vsel %vm990, %v1601, %v1598
    %v1604 = vsel %vm103, %v1601, %v1602
    %v1605 = vsel %vm990, %v1604, %v1600
    %v1608 = vmul.f32 %v703, %v1603
    %v1609 = vmul.f32 %v704, %v1605
    %1612 = vrot.lane.b32.xlu0 %v1608, 50
    %v1613 = vpop.permute.xlu0 %1612
    %1614 = vrot.lane.b32.xlu0 %v1609, 50
    %v1615 = vpop.permute.xlu0 %1614
    %v1616 = vrot.slane %v1613, 4
    %v1617 = vrot.slane %v1615, 4
    %v1618 = vsel %vm103, %v1616, %v1617
    %v1619 = vsel %vm973, %v1613, %v1618
    %v1620 = vsel %vm973, %v1615, %v1617
    %v1623 = vadd.f32 %v1591, %v1619
    %v1624 = vadd.f32 %v1592, %v1620
    %v1625 = vld [vmem:[#allocation8 + $0x150] sm:$0xff]
    %v1626 = vld [vmem:[#allocation8 + $0x158] sm:$0xf]
    %1629 = vrot.lane.b32.xlu0 %v1625, 121
    %v1630 = vpop.permute.xlu0 %1629
    %1631 = vrot.lane.b32.xlu0 %v1626, 121
    %v1632 = vpop.permute.xlu0 %1631
    %v1633 = vrot.slane %v1630, 4
    %v1634 = vrot.slane %v1632, 4
    %vm1635 = vcmask 990208
    %v1636 = vsel %vm1635, %v1633, %v1630
    %v1637 = vsel %vm103, %v1633, %v1634
    %v1638 = vsel %vm1635, %v1637, %v1632
    %v1641 = vmul.f32 %v703, %v1636
    %v1642 = vmul.f32 %v704, %v1638
    %1645 = vrot.lane.b32.xlu0 %v1641, 32
    %v1646 = vpop.permute.xlu0 %1645
    %1647 = vrot.lane.b32.xlu0 %v1642, 32
    %v1648 = vpop.permute.xlu0 %1647
    %v1649 = vrot.slane %v1646, 4
    %v1650 = vrot.slane %v1648, 4
    %v1651 = vsel %vm103, %v1649, %v1650
    %vm1652 = vcmask 261120
    %v1653 = vsel %vm1652, %v1646, %v1651
    %v1654 = vsel %vm1652, %v1648, %v1650
    %v1657 = vadd.f32 %v1623, %v1653
    %v1658 = vadd.f32 %v1624, %v1654
    %v1659 = vld [vmem:[#allocation8 + $0x15c] sm:$0xff]
    %v1660 = vld [vmem:[#allocation8 + $0x164] sm:$0xf]
    %1663 = vrot.lane.b32.xlu0 %v1659, 122
    %v1664 = vpop.permute.xlu0 %1663
    %1665 = vrot.lane.b32.xlu0 %v1660, 122
    %v1666 = vpop.permute.xlu0 %1665
    %v1667 = vrot.slane %v1664, 4
    %v1668 = vrot.slane %v1666, 4
    %v1669 = vsel %vm922, %v1667, %v1664
    %v1670 = vsel %vm103, %v1667, %v1668
    %v1671 = vsel %vm922, %v1670, %v1666
    %v1674 = vmul.f32 %v703, %v1669
    %v1675 = vmul.f32 %v704, %v1671
    %1678 = vrot.lane.b32.xlu0 %v1674, 31
    %v1679 = vpop.permute.xlu0 %1678
    %1680 = vrot.lane.b32.xlu0 %v1675, 31
    %v1681 = vpop.permute.xlu0 %1680
    %v1682 = vrot.slane %v1679, 4
    %v1683 = vrot.slane %v1681, 4
    %v1684 = vsel %vm103, %v1682, %v1683
    %v1685 = vsel %vm905, %v1679, %v1684
    %v1686 = vsel %vm905, %v1681, %v1683
    %v1689 = vadd.f32 %v1657, %v1685
    %v1690 = vadd.f32 %v1658, %v1686
    %v1691 = vld [vmem:[#allocation8 + $0x168] sm:$0xff]
    %v1692 = vld [vmem:[#allocation8 + $0x170] sm:$0xf]
    %1695 = vrot.lane.b32.xlu0 %v1691, 123
    %v1696 = vpop.permute.xlu0 %1695
    %1697 = vrot.lane.b32.xlu0 %v1692, 123
    %v1698 = vpop.permute.xlu0 %1697
    %v1699 = vrot.slane %v1696, 4
    %v1700 = vrot.slane %v1698, 4
    %v1701 = vsel %vm888, %v1699, %v1696
    %v1702 = vsel %vm103, %v1699, %v1700
    %v1703 = vsel %vm888, %v1702, %v1698
    %v1706 = vmul.f32 %v703, %v1701
    %v1707 = vmul.f32 %v704, %v1703
    %1710 = vrot.lane.b32.xlu0 %v1706, 30
    %v1711 = vpop.permute.xlu0 %1710
    %1712 = vrot.lane.b32.xlu0 %v1707, 30
    %v1713 = vpop.permute.xlu0 %1712
    %v1714 = vrot.slane %v1711, 4
    %v1715 = vrot.slane %v1713, 4
    %v1716 = vsel %vm103, %v1714, %v1715
    %v1717 = vsel %vm871, %v1711, %v1716
    %v1718 = vsel %vm871, %v1713, %v1715
    %v1721 = vadd.f32 %v1689, %v1717
    %v1722 = vadd.f32 %v1690, %v1718
    %v1723 = vld [vmem:[#allocation8 + $0x174] sm:$0xff]
    %v1724 = vld [vmem:[#allocation8 + $0x17c] sm:$0xf]
    %1727 = vrot.lane.b32.xlu0 %v1723, 124
    %v1728 = vpop.permute.xlu0 %1727
    %1729 = vrot.lane.b32.xlu0 %v1724, 124
    %v1730 = vpop.permute.xlu0 %1729
    %v1731 = vrot.slane %v1728, 4
    %v1732 = vrot.slane %v1730, 4
    %v1733 = vsel %vm854, %v1731, %v1728
    %v1734 = vsel %vm103, %v1731, %v1732
    %v1735 = vsel %vm854, %v1734, %v1730
    %v1738 = vmul.f32 %v703, %v1733
    %v1739 = vmul.f32 %v704, %v1735
    %1742 = vrot.lane.b32.xlu0 %v1738, 29
    %v1743 = vpop.permute.xlu0 %1742
    %1744 = vrot.lane.b32.xlu0 %v1739, 29
    %v1745 = vpop.permute.xlu0 %1744
    %v1746 = vrot.slane %v1743, 4
    %v1747 = vrot.slane %v1745, 4
    %v1748 = vsel %vm103, %v1746, %v1747
    %v1749 = vsel %vm837, %v1743, %v1748
    %v1750 = vsel %vm837, %v1745, %v1747
    %v1753 = vadd.f32 %v1721, %v1749
    %v1754 = vadd.f32 %v1722, %v1750
    %v1755 = vld [vmem:[#allocation8 + $0x180] sm:$0xff]
    %v1756 = vld [vmem:[#allocation8 + $0x188] sm:$0xf]
    %1759 = vrot.lane.b32.xlu0 %v1755, 125
    %v1760 = vpop.permute.xlu0 %1759
    %1761 = vrot.lane.b32.xlu0 %v1756, 125
    %v1762 = vpop.permute.xlu0 %1761
    %v1763 = vrot.slane %v1760, 4
    %v1764 = vrot.slane %v1762, 4
    %v1765 = vsel %vm820, %v1763, %v1760
    %v1766 = vsel %vm103, %v1763, %v1764
    %v1767 = vsel %vm820, %v1766, %v1762
    %v1770 = vmul.f32 %v703, %v1765
    %v1771 = vmul.f32 %v704, %v1767
    %1774 = vrot.lane.b32.xlu0 %v1770, 28
    %v1775 = vpop.permute.xlu0 %1774
    %1776 = vrot.lane.b32.xlu0 %v1771, 28
    %v1777 = vpop.permute.xlu0 %1776
    %v1778 = vrot.slane %v1775, 4
    %v1779 = vrot.slane %v1777, 4
    %v1780 = vsel %vm103, %v1778, %v1779
    %v1781 = vsel %vm803, %v1775, %v1780
    %v1782 = vsel %vm803, %v1777, %v1779
    %v1785 = vadd.f32 %v1753, %v1781
    %v1786 = vadd.f32 %v1754, %v1782
    %v1787 = vld [vmem:[#allocation8 + $0x18c] sm:$0xff]
    %v1788 = vld [vmem:[#allocation8 + $0x194] sm:$0xf]
    %1791 = vrot.lane.b32.xlu0 %v1787, 126
    %v1792 = vpop.permute.xlu0 %1791
    %1793 = vrot.lane.b32.xlu0 %v1788, 126
    %v1794 = vpop.permute.xlu0 %1793
    %v1795 = vrot.slane %v1792, 4
    %v1796 = vrot.slane %v1794, 4
    %v1797 = vsel %vm786, %v1795, %v1792
    %v1798 = vsel %vm103, %v1795, %v1796
    %v1799 = vsel %vm786, %v1798, %v1794
    %v1802 = vmul.f32 %v703, %v1797
    %v1803 = vmul.f32 %v704, %v1799
    %1806 = vrot.lane.b32.xlu0 %v1802, 27
    %v1807 = vpop.permute.xlu0 %1806
    %1808 = vrot.lane.b32.xlu0 %v1803, 27
    %v1809 = vpop.permute.xlu0 %1808
    %v1810 = vrot.slane %v1807, 4
    %v1811 = vrot.slane %v1809, 4
    %v1812 = vsel %vm103, %v1810, %v1811
    %v1813 = vsel %vm769, %v1807, %v1812
    %v1814 = vsel %vm769, %v1809, %v1811
    %v1817 = vadd.f32 %v1785, %v1813
    %v1818 = vadd.f32 %v1786, %v1814
    %v1819 = vld [vmem:[#allocation8 + $0x198] sm:$0xff]
    %v1820 = vld [vmem:[#allocation8 + $0x1a0] sm:$0xf]
    %1823 = vrot.lane.b32.xlu0 %v1819, 127
    %v1824 = vpop.permute.xlu0 %1823
    %1825 = vrot.lane.b32.xlu0 %v1820, 127
    %v1826 = vpop.permute.xlu0 %1825
    %v1827 = vrot.slane %v1824, 4
    %v1828 = vrot.slane %v1826, 4
    %v1829 = vsel %vm752, %v1827, %v1824
    %v1830 = vsel %vm103, %v1827, %v1828
    %v1831 = vsel %vm752, %v1830, %v1826
    %v1834 = vmul.f32 %v703, %v1829
    %v1835 = vmul.f32 %v704, %v1831
    %1838 = vrot.lane.b32.xlu0 %v1834, 26
    %v1839 = vpop.permute.xlu0 %1838
    %1840 = vrot.lane.b32.xlu0 %v1835, 26
    %v1841 = vpop.permute.xlu0 %1840
    %v1842 = vrot.slane %v1839, 4
    %v1843 = vrot.slane %v1841, 4
    %v1844 = vsel %vm103, %v1842, %v1843
    %v1845 = vsel %vm735, %v1839, %v1844
    %v1846 = vsel %vm735, %v1841, %v1843
    %v1849 = vadd.f32 %v1817, %v1845
    %v1850 = vadd.f32 %v1818, %v1846
    %v1851 = vld [vmem:[#allocation2 + $0x4] sm:$0xff]
    %v1852 = vld [vmem:[#allocation2 + $0xc] sm:$0xff]
    %v1853 = vld [vmem:[#allocation8 + $0x1a4] sm:$0xff]
    %v1854 = vld [vmem:[#allocation8 + $0x1ac] sm:$0xf]
    %1857 = vrot.lane.b32.xlu0 %v1853, 17
    %v1858 = vpop.permute.xlu0 %1857
    %1859 = vrot.lane.b32.xlu0 %v1854, 17
    %v1860 = vpop.permute.xlu0 %1859
    %v1861 = vrot.slane %v1858, 4
    %v1862 = vrot.slane %v1860, 4
    %vm1863 = vcmask 138240
    %v1864 = vsel %vm1863, %v1861, %v1858
    %v1865 = vsel %vm103, %v1861, %v1862
    %v1866 = vsel %vm1863, %v1865, %v1860
    %v1869 = vmul.f32 %v1851, %v1864
    %v1870 = vmul.f32 %v1852, %v1866
    %1873 = vrot.lane.b32.xlu0 %v1869, 8
    %v1874 = vpop.permute.xlu0 %1873
    %1875 = vrot.lane.b32.xlu0 %v1870, 8
    %v1876 = vpop.permute.xlu0 %1875
    %v1877 = vrot.slane %v1874, 4
    %v1878 = vrot.slane %v1876, 4
    %v1879 = vsel %vm477, %v1877, %v1874
    %v1880 = vsel %vm103, %v1877, %v1878
    %v1881 = vsel %vm477, %v1880, %v1876
    %v1884 = vadd.f32 %v1849, %v1879
    %v1885 = vadd.f32 %v1850, %v1881
    %v1886 = vld [vmem:[#allocation8 + $0x1b0] sm:$0xff]
    %v1887 = vld [vmem:[#allocation8 + $0x1b8] sm:$0xf]
    %1890 = vrot.lane.b32.xlu0 %v1886, 18
    %v1891 = vpop.permute.xlu0 %1890
    %1892 = vrot.lane.b32.xlu0 %v1887, 18
    %v1893 = vpop.permute.xlu0 %1892
    %v1894 = vrot.slane %v1891, 4
    %v1895 = vrot.slane %v1893, 4
    %vm1896 = vcmask 146432
    %v1897 = vsel %vm1896, %v1894, %v1891
    %v1898 = vsel %vm103, %v1894, %v1895
    %v1899 = vsel %vm1896, %v1898, %v1893
    %v1902 = vmul.f32 %v1851, %v1897
    %v1903 = vmul.f32 %v1852, %v1899
    %1906 = vrot.lane.b32.xlu0 %v1902, 7
    %v1907 = vpop.permute.xlu0 %1906
    %1908 = vrot.lane.b32.xlu0 %v1903, 7
    %v1909 = vpop.permute.xlu0 %1908
    %v1910 = vrot.slane %v1907, 4
    %v1911 = vrot.slane %v1909, 4
    %vm1912 = vcmask 56320
    %v1913 = vsel %vm1912, %v1910, %v1907
    %v1914 = vsel %vm103, %v1910, %v1911
    %v1915 = vsel %vm1912, %v1914, %v1909
    %v1918 = vadd.f32 %v1884, %v1913
    %v1919 = vadd.f32 %v1885, %v1915
    %v1920 = vld [vmem:[#allocation8 + $0x1bc] sm:$0xff]
    %v1921 = vld [vmem:[#allocation8 + $0x1c4] sm:$0xf]
    %1924 = vrot.lane.b32.xlu0 %v1920, 19
    %v1925 = vpop.permute.xlu0 %1924
    %1926 = vrot.lane.b32.xlu0 %v1921, 19
    %v1927 = vpop.permute.xlu0 %1926
    %v1928 = vrot.slane %v1925, 4
    %v1929 = vrot.slane %v1927, 4
    %vm1930 = vcmask 154624
    %v1931 = vsel %vm1930, %v1928, %v1925
    %v1932 = vsel %vm103, %v1928, %v1929
    %v1933 = vsel %vm1930, %v1932, %v1927
    %v1936 = vmul.f32 %v1851, %v1931
    %v1937 = vmul.f32 %v1852, %v1933
    %1940 = vrot.lane.b32.xlu0 %v1936, 6
    %v1941 = vpop.permute.xlu0 %1940
    %1942 = vrot.lane.b32.xlu0 %v1937, 6
    %v1943 = vpop.permute.xlu0 %1942
    %v1944 = vrot.slane %v1941, 4
    %v1945 = vrot.slane %v1943, 4
    %vm1946 = vcmask 48128
    %v1947 = vsel %vm1946, %v1944, %v1941
    %v1948 = vsel %vm103, %v1944, %v1945
    %v1949 = vsel %vm1946, %v1948, %v1943
    %v1952 = vadd.f32 %v1918, %v1947
    %v1953 = vadd.f32 %v1919, %v1949
    %v1954 = vld [vmem:[#allocation8 + $0x1c8] sm:$0xff]
    %v1955 = vld [vmem:[#allocation8 + $0x1d0] sm:$0xf]
    %1958 = vrot.lane.b32.xlu0 %v1954, 20
    %v1959 = vpop.permute.xlu0 %1958
    %1960 = vrot.lane.b32.xlu0 %v1955, 20
    %v1961 = vpop.permute.xlu0 %1960
    %v1962 = vrot.slane %v1959, 4
    %v1963 = vrot.slane %v1961, 4
    %vm1964 = vcmask 162816
    %v1965 = vsel %vm1964, %v1962, %v1959
    %v1966 = vsel %vm103, %v1962, %v1963
    %v1967 = vsel %vm1964, %v1966, %v1961
    %v1970 = vmul.f32 %v1851, %v1965
    %v1971 = vmul.f32 %v1852, %v1967
    %1974 = vrot.lane.b32.xlu0 %v1970, 5
    %v1975 = vpop.permute.xlu0 %1974
    %1976 = vrot.lane.b32.xlu0 %v1971, 5
    %v1977 = vpop.permute.xlu0 %1976
    %v1978 = vrot.slane %v1975, 4
    %v1979 = vrot.slane %v1977, 4
    %vm1980 = vcmask 39936
    %v1981 = vsel %vm1980, %v1978, %v1975
    %v1982 = vsel %vm103, %v1978, %v1979
    %v1983 = vsel %vm1980, %v1982, %v1977
    %v1986 = vadd.f32 %v1952, %v1981
    %v1987 = vadd.f32 %v1953, %v1983
    %v1988 = vld [vmem:[#allocation8 + $0x1d4] sm:$0xff]
    %v1989 = vld [vmem:[#allocation8 + $0x1dc] sm:$0xf]
    %1992 = vrot.lane.b32.xlu0 %v1988, 21
    %v1993 = vpop.permute.xlu0 %1992
    %1994 = vrot.lane.b32.xlu0 %v1989, 21
    %v1995 = vpop.permute.xlu0 %1994
    %v1996 = vrot.slane %v1993, 4
    %v1997 = vrot.slane %v1995, 4
    %vm1998 = vcmask 171008
    %v1999 = vsel %vm1998, %v1996, %v1993
    %v2000 = vsel %vm103, %v1996, %v1997
    %v2001 = vsel %vm1998, %v2000, %v1995
    %v2004 = vmul.f32 %v1851, %v1999
    %v2005 = vmul.f32 %v1852, %v2001
    %2008 = vrot.lane.b32.xlu0 %v2004, 4
    %v2009 = vpop.permute.xlu0 %2008
    %2010 = vrot.lane.b32.xlu0 %v2005, 4
    %v2011 = vpop.permute.xlu0 %2010
    %v2012 = vrot.slane %v2009, 4
    %v2013 = vrot.slane %v2011, 4
    %vm2014 = vcmask 31744
    %v2015 = vsel %vm2014, %v2012, %v2009
    %v2016 = vsel %vm103, %v2012, %v2013
    %v2017 = vsel %vm2014, %v2016, %v2011
    %v2020 = vadd.f32 %v1986, %v2015
    %v2021 = vadd.f32 %v1987, %v2017
    %v2022 = vld [vmem:[#allocation8 + $0x1e0] sm:$0xff]
    %v2023 = vld [vmem:[#allocation8 + $0x1e8] sm:$0xf]
    %2026 = vrot.lane.b32.xlu0 %v2022, 22
    %v2027 = vpop.permute.xlu0 %2026
    %2028 = vrot.lane.b32.xlu0 %v2023, 22
    %v2029 = vpop.permute.xlu0 %2028
    %v2030 = vrot.slane %v2027, 4
    %v2031 = vrot.slane %v2029, 4
    %vm2032 = vcmask 179200
    %v2033 = vsel %vm2032, %v2030, %v2027
    %v2034 = vsel %vm103, %v2030, %v2031
    %v2035 = vsel %vm2032, %v2034, %v2029
    %v2038 = vmul.f32 %v1851, %v2033
    %v2039 = vmul.f32 %v1852, %v2035
    %2042 = vrot.lane.b32.xlu0 %v2038, 3
    %v2043 = vpop.permute.xlu0 %2042
    %2044 = vrot.lane.b32.xlu0 %v2039, 3
    %v2045 = vpop.permute.xlu0 %2044
    %v2046 = vrot.slane %v2043, 4
    %v2047 = vrot.slane %v2045, 4
    %vm2048 = vcmask 23552
    %v2049 = vsel %vm2048, %v2046, %v2043
    %v2050 = vsel %vm103, %v2046, %v2047
    %v2051 = vsel %vm2048, %v2050, %v2045
    %v2054 = vadd.f32 %v2020, %v2049
    %v2055 = vadd.f32 %v2021, %v2051
    %v2056 = vld [vmem:[#allocation8 + $0x1ec] sm:$0xff]
    %v2057 = vld [vmem:[#allocation8 + $0x1f4] sm:$0xf]
    %2060 = vrot.lane.b32.xlu0 %v2056, 23
    %v2061 = vpop.permute.xlu0 %2060
    %2062 = vrot.lane.b32.xlu0 %v2057, 23
    %v2063 = vpop.permute.xlu0 %2062
    %v2064 = vrot.slane %v2061, 4
    %v2065 = vrot.slane %v2063, 4
    %vm2066 = vcmask 187392
    %v2067 = vsel %vm2066, %v2064, %v2061
    %v2068 = vsel %vm103, %v2064, %v2065
    %v2069 = vsel %vm2066, %v2068, %v2063
    %v2072 = vmul.f32 %v1851, %v2067
    %v2073 = vmul.f32 %v1852, %v2069
    %2076 = vrot.lane.b32.xlu0 %v2072, 2
    %v2077 = vpop.permute.xlu0 %2076
    %2078 = vrot.lane.b32.xlu0 %v2073, 2
    %v2079 = vpop.permute.xlu0 %2078
    %v2080 = vrot.slane %v2077, 4
    %v2081 = vrot.slane %v2079, 4
    %vm2082 = vcmask 15360
    %v2083 = vsel %vm2082, %v2080, %v2077
    %v2084 = vsel %vm103, %v2080, %v2081
    %v2085 = vsel %vm2082, %v2084, %v2079
    %v2088 = vadd.f32 %v2054, %v2083
    %v2089 = vadd.f32 %v2055, %v2085
    %v2090 = vld [vmem:[#allocation8 + $0x1f8] sm:$0xff]
    %v2091 = vld [vmem:[#allocation8 + $0x200] sm:$0xf]
    %2094 = vrot.lane.b32.xlu0 %v2090, 41
    %v2095 = vpop.permute.xlu0 %2094
    %2096 = vrot.lane.b32.xlu0 %v2091, 41
    %v2097 = vpop.permute.xlu0 %2096
    %v2098 = vrot.slane %v2095, 4
    %v2099 = vrot.slane %v2097, 4
    %vm2100 = vcmask 334848
    %v2101 = vsel %vm2100, %v2098, %v2095
    %v2102 = vsel %vm103, %v2098, %v2099
    %v2103 = vsel %vm2100, %v2102, %v2097
    %v2106 = vmul.f32 %v1851, %v2101
    %v2107 = vmul.f32 %v1852, %v2103
    %2110 = vrot.lane.b32.xlu0 %v2106, 112
    %v2111 = vpop.permute.xlu0 %2110
    %2112 = vrot.lane.b32.xlu0 %v2107, 112
    %v2113 = vpop.permute.xlu0 %2112
    %v2114 = vrot.slane %v2111, 4
    %v2115 = vrot.slane %v2113, 4
    %v2116 = vsel %vm103, %v2114, %v2115
    %vm2117 = vcmask 916480
    %v2118 = vsel %vm2117, %v2111, %v2116
    %v2119 = vsel %vm2117, %v2113, %v2115
    %v2122 = vadd.f32 %v2088, %v2118
    %v2123 = vadd.f32 %v2089, %v2119
    %v2124 = vld [vmem:[#allocation8 + $0x204] sm:$0xff]
    %v2125 = vld [vmem:[#allocation8 + $0x20c] sm:$0xf]
    %2128 = vrot.lane.b32.xlu0 %v2124, 42
    %v2129 = vpop.permute.xlu0 %2128
    %2130 = vrot.lane.b32.xlu0 %v2125, 42
    %v2131 = vpop.permute.xlu0 %2130
    %v2132 = vrot.slane %v2129, 4
    %v2133 = vrot.slane %v2131, 4
    %vm2134 = vcmask 343040
    %v2135 = vsel %vm2134, %v2132, %v2129
    %v2136 = vsel %vm103, %v2132, %v2133
    %v2137 = vsel %vm2134, %v2136, %v2131
    %v2140 = vmul.f32 %v1851, %v2135
    %v2141 = vmul.f32 %v1852, %v2137
    %2144 = vrot.lane.b32.xlu0 %v2140, 111
    %v2145 = vpop.permute.xlu0 %2144
    %2146 = vrot.lane.b32.xlu0 %v2141, 111
    %v2147 = vpop.permute.xlu0 %2146
    %v2148 = vrot.slane %v2145, 4
    %v2149 = vrot.slane %v2147, 4
    %v2150 = vsel %vm103, %v2148, %v2149
    %vm2151 = vcmask 908288
    %v2152 = vsel %vm2151, %v2145, %v2150
    %v2153 = vsel %vm2151, %v2147, %v2149
    %v2156 = vadd.f32 %v2122, %v2152
    %v2157 = vadd.f32 %v2123, %v2153
    %v2158 = vld [vmem:[#allocation8 + $0x210] sm:$0xff]
    %v2159 = vld [vmem:[#allocation8 + $0x218] sm:$0xf]
    %2162 = vrot.lane.b32.xlu0 %v2158, 43
    %v2163 = vpop.permute.xlu0 %2162
    %2164 = vrot.lane.b32.xlu0 %v2159, 43
    %v2165 = vpop.permute.xlu0 %2164
    %v2166 = vrot.slane %v2163, 4
    %v2167 = vrot.slane %v2165, 4
    %vm2168 = vcmask 351232
    %v2169 = vsel %vm2168, %v2166, %v2163
    %v2170 = vsel %vm103, %v2166, %v2167
    %v2171 = vsel %vm2168, %v2170, %v2165
    %v2174 = vmul.f32 %v1851, %v2169
    %v2175 = vmul.f32 %v1852, %v2171
    %2178 = vrot.lane.b32.xlu0 %v2174, 110
    %v2179 = vpop.permute.xlu0 %2178
    %2180 = vrot.lane.b32.xlu0 %v2175, 110
    %v2181 = vpop.permute.xlu0 %2180
    %v2182 = vrot.slane %v2179, 4
    %v2183 = vrot.slane %v2181, 4
    %v2184 = vsel %vm103, %v2182, %v2183
    %vm2185 = vcmask 900096
    %v2186 = vsel %vm2185, %v2179, %v2184
    %v2187 = vsel %vm2185, %v2181, %v2183
    %v2190 = vadd.f32 %v2156, %v2186
    %v2191 = vadd.f32 %v2157, %v2187
    %v2192 = vld [vmem:[#allocation8 + $0x21c] sm:$0xff]
    %v2193 = vld [vmem:[#allocation8 + $0x224] sm:$0xf]
    %2196 = vrot.lane.b32.xlu0 %v2192, 44
    %v2197 = vpop.permute.xlu0 %2196
    %2198 = vrot.lane.b32.xlu0 %v2193, 44
    %v2199 = vpop.permute.xlu0 %2198
    %v2200 = vrot.slane %v2197, 4
    %v2201 = vrot.slane %v2199, 4
    %vm2202 = vcmask 359424
    %v2203 = vsel %vm2202, %v2200, %v2197
    %v2204 = vsel %vm103, %v2200, %v2201
    %v2205 = vsel %vm2202, %v2204, %v2199
    %v2208 = vmul.f32 %v1851, %v2203
    %v2209 = vmul.f32 %v1852, %v2205
    %2212 = vrot.lane.b32.xlu0 %v2208, 109
    %v2213 = vpop.permute.xlu0 %2212
    %2214 = vrot.lane.b32.xlu0 %v2209, 109
    %v2215 = vpop.permute.xlu0 %2214
    %v2216 = vrot.slane %v2213, 4
    %v2217 = vrot.slane %v2215, 4
    %v2218 = vsel %vm103, %v2216, %v2217
    %vm2219 = vcmask 891904
    %v2220 = vsel %vm2219, %v2213, %v2218
    %v2221 = vsel %vm2219, %v2215, %v2217
    %v2224 = vadd.f32 %v2190, %v2220
    %v2225 = vadd.f32 %v2191, %v2221
    %v2226 = vld [vmem:[#allocation8 + $0x228] sm:$0xff]
    %v2227 = vld [vmem:[#allocation8 + $0x230] sm:$0xf]
    %2230 = vrot.lane.b32.xlu0 %v2226, 45
    %v2231 = vpop.permute.xlu0 %2230
    %2232 = vrot.lane.b32.xlu0 %v2227, 45
    %v2233 = vpop.permute.xlu0 %2232
    %v2234 = vrot.slane %v2231, 4
    %v2235 = vrot.slane %v2233, 4
    %vm2236 = vcmask 367616
    %v2237 = vsel %vm2236, %v2234, %v2231
    %v2238 = vsel %vm103, %v2234, %v2235
    %v2239 = vsel %vm2236, %v2238, %v2233
    %v2242 = vmul.f32 %v1851, %v2237
    %v2243 = vmul.f32 %v1852, %v2239
    %2246 = vrot.lane.b32.xlu0 %v2242, 108
    %v2247 = vpop.permute.xlu0 %2246
    %2248 = vrot.lane.b32.xlu0 %v2243, 108
    %v2249 = vpop.permute.xlu0 %2248
    %v2250 = vrot.slane %v2247, 4
    %v2251 = vrot.slane %v2249, 4
    %v2252 = vsel %vm103, %v2250, %v2251
    %vm2253 = vcmask 883712
    %v2254 = vsel %vm2253, %v2247, %v2252
    %v2255 = vsel %vm2253, %v2249, %v2251
    %v2258 = vadd.f32 %v2224, %v2254
    %v2259 = vadd.f32 %v2225, %v2255
    %v2260 = vld [vmem:[#allocation8 + $0x234] sm:$0xff]
    %v2261 = vld [vmem:[#allocation8 + $0x23c] sm:$0xf]
    %2264 = vrot.lane.b32.xlu0 %v2260, 46
    %v2265 = vpop.permute.xlu0 %2264
    %2266 = vrot.lane.b32.xlu0 %v2261, 46
    %v2267 = vpop.permute.xlu0 %2266
    %v2268 = vrot.slane %v2265, 4
    %v2269 = vrot.slane %v2267, 4
    %vm2270 = vcmask 375808
    %v2271 = vsel %vm2270, %v2268, %v2265
    %v2272 = vsel %vm103, %v2268, %v2269
    %v2273 = vsel %vm2270, %v2272, %v2267
    %v2276 = vmul.f32 %v1851, %v2271
    %v2277 = vmul.f32 %v1852, %v2273
    %2280 = vrot.lane.b32.xlu0 %v2276, 107
    %v2281 = vpop.permute.xlu0 %2280
    %2282 = vrot.lane.b32.xlu0 %v2277, 107
    %v2283 = vpop.permute.xlu0 %2282
    %v2284 = vrot.slane %v2281, 4
    %v2285 = vrot.slane %v2283, 4
    %v2286 = vsel %vm103, %v2284, %v2285
    %vm2287 = vcmask 875520
    %v2288 = vsel %vm2287, %v2281, %v2286
    %v2289 = vsel %vm2287, %v2283, %v2285
    %v2292 = vadd.f32 %v2258, %v2288
    %v2293 = vadd.f32 %v2259, %v2289
    %v2294 = vld [vmem:[#allocation8 + $0x240] sm:$0xff]
    %v2295 = vld [vmem:[#allocation8 + $0x248] sm:$0xf]
    %2298 = vrot.lane.b32.xlu0 %v2294, 47
    %v2299 = vpop.permute.xlu0 %2298
    %2300 = vrot.lane.b32.xlu0 %v2295, 47
    %v2301 = vpop.permute.xlu0 %2300
    %v2302 = vrot.slane %v2299, 4
    %v2303 = vrot.slane %v2301, 4
    %vm2304 = vcmask 384000
    %v2305 = vsel %vm2304, %v2302, %v2299
    %v2306 = vsel %vm103, %v2302, %v2303
    %v2307 = vsel %vm2304, %v2306, %v2301
    %v2310 = vmul.f32 %v1851, %v2305
    %v2311 = vmul.f32 %v1852, %v2307
    %2314 = vrot.lane.b32.xlu0 %v2310, 106
    %v2315 = vpop.permute.xlu0 %2314
    %2316 = vrot.lane.b32.xlu0 %v2311, 106
    %v2317 = vpop.permute.xlu0 %2316
    %v2318 = vrot.slane %v2315, 4
    %v2319 = vrot.slane %v2317, 4
    %v2320 = vsel %vm103, %v2318, %v2319
    %vm2321 = vcmask 867328
    %v2322 = vsel %vm2321, %v2315, %v2320
    %v2323 = vsel %vm2321, %v2317, %v2319
    %v2326 = vadd.f32 %v2292, %v2322
    %v2327 = vadd.f32 %v2293, %v2323
    %v2330 = vrot.slane %v2326, 6
    %v2331 = vrot.slane %v2330, 4
    %v2332 = vrot.slane %v2327, 6
    %v2333 = vrot.slane %v2332, 4
    %v2336 = vadd.f32 %v2326, %v2331
    %v2337 = vadd.f32 %v2327, %v2333
    %s2338 = sld [smem:[#allocation4]]
    %v2339 = vstv %s2338
    %v2340 = vadd.f32 %v2336, %v2339
    %v2341 = vadd.f32 %v2337, %v2339
    %v2342 = vxor.u32 %v2340, 2147483648
    %v2343 = vxor.u32 %v2341, 2147483648
    %v2344 = vmul.f32 %v2342, 1.442695
    %v2345 = vpow.pop %v2344
    %v2346 = vmul.f32 %v2343, 1.442695
    %v2347 = vpow.pop %v2346
    %v2348 = vadd.f32 %v2345, 1.0
    %v2349 = vadd.f32 %v2347, 1.0
    %v2350 = vrcp.pop %v2348
    %v2351 = vmul.f32 1.0, %v2350
    %v2352 = vrcp.pop %v2349
    %v2353 = vmul.f32 1.0, %v2352
    %v2354 = vld [vmem:[#allocation14] sm:$0xff]
    %v2355 = vld [vmem:[#allocation14 + $0x8] sm:$0xff]
    %v2356 = vld [vmem:[#allocation14 + $0x10] sm:$0xff]
    %v2357 = vld [vmem:[#allocation3] sm:$0xff]
    %v2358 = vld [vmem:[#allocation3 + $0x8] sm:$0xff]
    %v2359 = vld [vmem:[#allocation3 + $0x10] sm:$0xff]
    %v2360 = vld [vmem:[#allocation10] sm:$0xff]
    %v2361 = vld [vmem:[#allocation10 + $0x8] sm:$0xff]
    %v2362 = vld [vmem:[#allocation10 + $0x10] sm:$0xff]
    %v2363 = vmul.f32 %v2357, %v2360
    %v2364 = vmul.f32 %v2358, %v2361
    %v2365 = vmul.f32 %v2359, %v2362
    %v2366 = vadd.f32 %v2354, %v2363
    %v2367 = vadd.f32 %v2355, %v2364
    %v2368 = vadd.f32 %v2356, %v2365
    %v2369 = vld [vmem:[#allocation3 + $0x18] sm:$0xff]
    %v2370 = vld [vmem:[#allocation10 + $0x18] sm:$0xff]
    %v2371 = vld [vmem:[#allocation10 + $0x20] sm:$0xff]
    %v2372 = vld [vmem:[#allocation10 + $0x28] sm:$0xff]
    %2376 = vrot.lane.b32.xlu0 %v2370, 1
    %v2377 = vpop.permute.xlu0 %2376
    %2378 = vrot.lane.b32.xlu0 %v2371, 1
    %v2379 = vpop.permute.xlu0 %2378
    %2380 = vrot.lane.b32.xlu0 %v2372, 1
    %v2381 = vpop.permute.xlu0 %2380
    %vm2382 = vcmask 7168
    %v2383 = vsel %vm2382, %v2377, %v2379
    %v2384 = vsel %vm2382, %v2379, %v2381
    %v2389 = vmul.f32 %v2357, %v2377
    %v2390 = vmul.f32 %v2358, %v2383
    %v2391 = vmul.f32 %v2359, %v2384
    %v2392 = vmul.f32 %v2369, %v2381
    %2397 = vrot.lane.b32.xlu0 %v2389, 127
    %v2398 = vpop.permute.xlu0 %2397
    %2399 = vrot.lane.b32.xlu0 %v2390, 127
    %v2400 = vpop.permute.xlu0 %2399
    %2401 = vrot.lane.b32.xlu0 %v2391, 127
    %v2402 = vpop.permute.xlu0 %2401
    %2403 = vrot.lane.b32.xlu0 %v2392, 127
    %v2404 = vpop.permute.xlu0 %2403
    %v2405 = vsel %vm752, %v2398, %v2400
    %v2406 = vsel %vm752, %v2400, %v2402
    %v2407 = vsel %vm752, %v2402, %v2404
    %v2411 = vadd.f32 %v2366, %v2405
    %v2412 = vadd.f32 %v2367, %v2406
    %v2413 = vadd.f32 %v2368, %v2407
    %v2414 = vld [vmem:[#allocation10 + $0x30] sm:$0xff]
    %v2415 = vld [vmem:[#allocation10 + $0x38] sm:$0xff]
    %v2416 = vld [vmem:[#allocation10 + $0x40] sm:$0xff]
    %2420 = vrot.lane.b32.xlu0 %v2414, 2
    %v2421 = vpop.permute.xlu0 %2420
    %2422 = vrot.lane.b32.xlu0 %v2415, 2
    %v2423 = vpop.permute.xlu0 %2422
    %2424 = vrot.lane.b32.xlu0 %v2416, 2
    %v2425 = vpop.permute.xlu0 %2424
    %v2426 = vsel %vm2082, %v2421, %v2423
    %v2427 = vsel %vm2082, %v2423, %v2425
    %v2432 = vmul.f32 %v2357, %v2421
    %v2433 = vmul.f32 %v2358, %v2426
    %v2434 = vmul.f32 %v2359, %v2427
    %v2435 = vmul.f32 %v2369, %v2425
    %2440 = vrot.lane.b32.xlu0 %v2432, 126
    %v2441 = vpop.permute.xlu0 %2440
    %2442 = vrot.lane.b32.xlu0 %v2433, 126
    %v2443 = vpop.permute.xlu0 %2442
    %2444 = vrot.lane.b32.xlu0 %v2434, 126
    %v2445 = vpop.permute.xlu0 %2444
    %2446 = vrot.lane.b32.xlu0 %v2435, 126
    %v2447 = vpop.permute.xlu0 %2446
    %v2448 = vsel %vm786, %v2441, %v2443
    %v2449 = vsel %vm786, %v2443, %v2445
    %v2450 = vsel %vm786, %v2445, %v2447
    %v2454 = vadd.f32 %v2411, %v2448
    %v2455 = vadd.f32 %v2412, %v2449
    %v2456 = vadd.f32 %v2413, %v2450
    %v2457 = vld [vmem:[#allocation10 + $0x48] sm:$0xff]
    %v2458 = vld [vmem:[#allocation10 + $0x50] sm:$0xff]
    %v2459 = vld [vmem:[#allocation10 + $0x58] sm:$0xff]
    %2463 = vrot.lane.b32.xlu0 %v2457, 3
    %v2464 = vpop.permute.xlu0 %2463
    %2465 = vrot.lane.b32.xlu0 %v2458, 3
    %v2466 = vpop.permute.xlu0 %2465
    %2467 = vrot.lane.b32.xlu0 %v2459, 3
    %v2468 = vpop.permute.xlu0 %2467
    %v2469 = vsel %vm2048, %v2464, %v2466
    %v2470 = vsel %vm2048, %v2466, %v2468
    %v2475 = vmul.f32 %v2357, %v2464
    %v2476 = vmul.f32 %v2358, %v2469
    %v2477 = vmul.f32 %v2359, %v2470
    %v2478 = vmul.f32 %v2369, %v2468
    %2483 = vrot.lane.b32.xlu0 %v2475, 125
    %v2484 = vpop.permute.xlu0 %2483
    %2485 = vrot.lane.b32.xlu0 %v2476, 125
    %v2486 = vpop.permute.xlu0 %2485
    %2487 = vrot.lane.b32.xlu0 %v2477, 125
    %v2488 = vpop.permute.xlu0 %2487
    %2489 = vrot.lane.b32.xlu0 %v2478, 125
    %v2490 = vpop.permute.xlu0 %2489
    %v2491 = vsel %vm820, %v2484, %v2486
    %v2492 = vsel %vm820, %v2486, %v2488
    %v2493 = vsel %vm820, %v2488, %v2490
    %v2497 = vadd.f32 %v2454, %v2491
    %v2498 = vadd.f32 %v2455, %v2492
    %v2499 = vadd.f32 %v2456, %v2493
    %v2500 = vld [vmem:[#allocation10 + $0x60] sm:$0xff]
    %v2501 = vld [vmem:[#allocation10 + $0x68] sm:$0xff]
    %v2502 = vld [vmem:[#allocation10 + $0x70] sm:$0xff]
    %2506 = vrot.lane.b32.xlu0 %v2500, 4
    %v2507 = vpop.permute.xlu0 %2506
    %2508 = vrot.lane.b32.xlu0 %v2501, 4
    %v2509 = vpop.permute.xlu0 %2508
    %2510 = vrot.lane.b32.xlu0 %v2502, 4
    %v2511 = vpop.permute.xlu0 %2510
    %v2512 = vsel %vm2014, %v2507, %v2509
    %v2513 = vsel %vm2014, %v2509, %v2511
    %v2518 = vmul.f32 %v2357, %v2507
    %v2519 = vmul.f32 %v2358, %v2512
    %v2520 = vmul.f32 %v2359, %v2513
    %v2521 = vmul.f32 %v2369, %v2511
    %2526 = vrot.lane.b32.xlu0 %v2518, 124
    %v2527 = vpop.permute.xlu0 %2526
    %2528 = vrot.lane.b32.xlu0 %v2519, 124
    %v2529 = vpop.permute.xlu0 %2528
    %2530 = vrot.lane.b32.xlu0 %v2520, 124
    %v2531 = vpop.permute.xlu0 %2530
    %2532 = vrot.lane.b32.xlu0 %v2521, 124
    %v2533 = vpop.permute.xlu0 %2532
    %v2534 = vsel %vm854, %v2527, %v2529
    %v2535 = vsel %vm854, %v2529, %v2531
    %v2536 = vsel %vm854, %v2531, %v2533
    %v2540 = vadd.f32 %v2497, %v2534
    %v2541 = vadd.f32 %v2498, %v2535
    %v2542 = vadd.f32 %v2499, %v2536
    %v2543 = vld [vmem:[#allocation10 + $0x78] sm:$0xff]
    %v2544 = vld [vmem:[#allocation10 + $0x80] sm:$0xff]
    %v2545 = vld [vmem:[#allocation10 + $0x88] sm:$0xff]
    %2549 = vrot.lane.b32.xlu0 %v2543, 5
    %v2550 = vpop.permute.xlu0 %2549
    %2551 = vrot.lane.b32.xlu0 %v2544, 5
    %v2552 = vpop.permute.xlu0 %2551
    %2553 = vrot.lane.b32.xlu0 %v2545, 5
    %v2554 = vpop.permute.xlu0 %2553
    %v2555 = vsel %vm1980, %v2550, %v2552
    %v2556 = vsel %vm1980, %v2552, %v2554
    %v2561 = vmul.f32 %v2357, %v2550
    %v2562 = vmul.f32 %v2358, %v2555
    %v2563 = vmul.f32 %v2359, %v2556
    %v2564 = vmul.f32 %v2369, %v2554
    %2569 = vrot.lane.b32.xlu0 %v2561, 123
    %v2570 = vpop.permute.xlu0 %2569
    %2571 = vrot.lane.b32.xlu0 %v2562, 123
    %v2572 = vpop.permute.xlu0 %2571
    %2573 = vrot.lane.b32.xlu0 %v2563, 123
    %v2574 = vpop.permute.xlu0 %2573
    %2575 = vrot.lane.b32.xlu0 %v2564, 123
    %v2576 = vpop.permute.xlu0 %2575
    %v2577 = vsel %vm888, %v2570, %v2572
    %v2578 = vsel %vm888, %v2572, %v2574
    %v2579 = vsel %vm888, %v2574, %v2576
    %v2583 = vadd.f32 %v2540, %v2577
    %v2584 = vadd.f32 %v2541, %v2578
    %v2585 = vadd.f32 %v2542, %v2579
    %v2586 = vld [vmem:[#allocation10 + $0x90] sm:$0xff]
    %v2587 = vld [vmem:[#allocation10 + $0x98] sm:$0xff]
    %v2588 = vld [vmem:[#allocation10 + $0xa0] sm:$0xff]
    %2592 = vrot.lane.b32.xlu0 %v2586, 6
    %v2593 = vpop.permute.xlu0 %2592
    %2594 = vrot.lane.b32.xlu0 %v2587, 6
    %v2595 = vpop.permute.xlu0 %2594
    %2596 = vrot.lane.b32.xlu0 %v2588, 6
    %v2597 = vpop.permute.xlu0 %2596
    %v2598 = vsel %vm1946, %v2593, %v2595
    %v2599 = vsel %vm1946, %v2595, %v2597
    %v2604 = vmul.f32 %v2357, %v2593
    %v2605 = vmul.f32 %v2358, %v2598
    %v2606 = vmul.f32 %v2359, %v2599
    %v2607 = vmul.f32 %v2369, %v2597
    %2612 = vrot.lane.b32.xlu0 %v2604, 122
    %v2613 = vpop.permute.xlu0 %2612
    %2614 = vrot.lane.b32.xlu0 %v2605, 122
    %v2615 = vpop.permute.xlu0 %2614
    %2616 = vrot.lane.b32.xlu0 %v2606, 122
    %v2617 = vpop.permute.xlu0 %2616
    %2618 = vrot.lane.b32.xlu0 %v2607, 122
    %v2619 = vpop.permute.xlu0 %2618
    %v2620 = vsel %vm922, %v2613, %v2615
    %v2621 = vsel %vm922, %v2615, %v2617
    %v2622 = vsel %vm922, %v2617, %v2619
    %v2626 = vadd.f32 %v2583, %v2620
    %v2627 = vadd.f32 %v2584, %v2621
    %v2628 = vadd.f32 %v2585, %v2622
    %v2629 = vld [vmem:[#allocation10 + $0xa8] sm:$0xff]
    %v2630 = vld [vmem:[#allocation10 + $0xb0] sm:$0xff]
    %v2631 = vld [vmem:[#allocation10 + $0xb8] sm:$0xff]
    %2635 = vrot.lane.b32.xlu0 %v2629, 7
    %v2636 = vpop.permute.xlu0 %2635
    %2637 = vrot.lane.b32.xlu0 %v2630, 7
    %v2638 = vpop.permute.xlu0 %2637
    %2639 = vrot.lane.b32.xlu0 %v2631, 7
    %v2640 = vpop.permute.xlu0 %2639
    %v2641 = vsel %vm1912, %v2636, %v2638
    %v2642 = vsel %vm1912, %v2638, %v2640
    %v2647 = vmul.f32 %v2357, %v2636
    %v2648 = vmul.f32 %v2358, %v2641
    %v2649 = vmul.f32 %v2359, %v2642
    %v2650 = vmul.f32 %v2369, %v2640
    %2655 = vrot.lane.b32.xlu0 %v2647, 121
    %v2656 = vpop.permute.xlu0 %2655
    %2657 = vrot.lane.b32.xlu0 %v2648, 121
    %v2658 = vpop.permute.xlu0 %2657
    %2659 = vrot.lane.b32.xlu0 %v2649, 121
    %v2660 = vpop.permute.xlu0 %2659
    %2661 = vrot.lane.b32.xlu0 %v2650, 121
    %v2662 = vpop.permute.xlu0 %2661
    %v2663 = vsel %vm1635, %v2656, %v2658
    %v2664 = vsel %vm1635, %v2658, %v2660
    %v2665 = vsel %vm1635, %v2660, %v2662
    %v2669 = vadd.f32 %v2626, %v2663
    %v2670 = vadd.f32 %v2627, %v2664
    %v2671 = vadd.f32 %v2628, %v2665
    %v2672 = vld [vmem:[#allocation10 + $0xc0] sm:$0xff]
    %v2673 = vld [vmem:[#allocation10 + $0xc8] sm:$0xff]
    %v2674 = vld [vmem:[#allocation10 + $0xd0] sm:$0xff]
    %2678 = vrot.lane.b32.xlu0 %v2672, 8
    %v2679 = vpop.permute.xlu0 %2678
    %2680 = vrot.lane.b32.xlu0 %v2673, 8
    %v2681 = vpop.permute.xlu0 %2680
    %2682 = vrot.lane.b32.xlu0 %v2674, 8
    %v2683 = vpop.permute.xlu0 %2682
    %v2684 = vsel %vm477, %v2679, %v2681
    %v2685 = vsel %vm477, %v2681, %v2683
    %v2690 = vmul.f32 %v2357, %v2679
    %v2691 = vmul.f32 %v2358, %v2684
    %v2692 = vmul.f32 %v2359, %v2685
    %v2693 = vmul.f32 %v2369, %v2683
    %2698 = vrot.lane.b32.xlu0 %v2690, 120
    %v2699 = vpop.permute.xlu0 %2698
    %2700 = vrot.lane.b32.xlu0 %v2691, 120
    %v2701 = vpop.permute.xlu0 %2700
    %2702 = vrot.lane.b32.xlu0 %v2692, 120
    %v2703 = vpop.permute.xlu0 %2702
    %2704 = vrot.lane.b32.xlu0 %v2693, 120
    %v2705 = vpop.permute.xlu0 %2704
    %vm2706 = vcmask 982016
    %v2707 = vsel %vm2706, %v2699, %v2701
    %v2708 = vsel %vm2706, %v2701, %v2703
    %v2709 = vsel %vm2706, %v2703, %v2705
    %v2713 = vadd.f32 %v2669, %v2707
    %v2714 = vadd.f32 %v2670, %v2708
    %v2715 = vadd.f32 %v2671, %v2709
    %v2716 = vld [vmem:[#allocation10 + $0xd8] sm:$0xff]
    %v2717 = vld [vmem:[#allocation10 + $0xe0] sm:$0xff]
    %v2718 = vld [vmem:[#allocation10 + $0xe8] sm:$0xff]
    %2722 = vrot.lane.b32.xlu0 %v2716, 24
    %v2723 = vpop.permute.xlu0 %2722
    %2724 = vrot.lane.b32.xlu0 %v2717, 24
    %v2725 = vpop.permute.xlu0 %2724
    %2726 = vrot.lane.b32.xlu0 %v2718, 24
    %v2727 = vpop.permute.xlu0 %2726
    %vm2728 = vcmask 195584
    %v2729 = vsel %vm2728, %v2723, %v2725
    %v2730 = vsel %vm2728, %v2725, %v2727
    %v2735 = vmul.f32 %v2357, %v2723
    %v2736 = vmul.f32 %v2358, %v2729
    %v2737 = vmul.f32 %v2359, %v2730
    %v2738 = vmul.f32 %v2369, %v2727
    %2743 = vrot.lane.b32.xlu0 %v2735, 104
    %v2744 = vpop.permute.xlu0 %2743
    %2745 = vrot.lane.b32.xlu0 %v2736, 104
    %v2746 = vpop.permute.xlu0 %2745
    %2747 = vrot.lane.b32.xlu0 %v2737, 104
    %v2748 = vpop.permute.xlu0 %2747
    %2749 = vrot.lane.b32.xlu0 %v2738, 104
    %v2750 = vpop.permute.xlu0 %2749
    %v2751 = vsel %vm956, %v2744, %v2746
    %v2752 = vsel %vm956, %v2746, %v2748
    %v2753 = vsel %vm956, %v2748, %v2750
    %v2757 = vadd.f32 %v2713, %v2751
    %v2758 = vadd.f32 %v2714, %v2752
    %v2759 = vadd.f32 %v2715, %v2753
    %v2760 = vld [vmem:[#allocation10 + $0xf0] sm:$0xff]
    %v2761 = vld [vmem:[#allocation10 + $0xf8] sm:$0xff]
    %v2762 = vld [vmem:[#allocation10 + $0x100] sm:$0xff]
    %2766 = vrot.lane.b32.xlu0 %v2760, 25
    %v2767 = vpop.permute.xlu0 %2766
    %2768 = vrot.lane.b32.xlu0 %v2761, 25
    %v2769 = vpop.permute.xlu0 %2768
    %2770 = vrot.lane.b32.xlu0 %v2762, 25
    %v2771 = vpop.permute.xlu0 %2770
    %v2772 = vsel %vm715, %v2767, %v2769
    %v2773 = vsel %vm715, %v2769, %v2771
    %v2778 = vmul.f32 %v2357, %v2767
    %v2779 = vmul.f32 %v2358, %v2772
    %v2780 = vmul.f32 %v2359, %v2773
    %v2781 = vmul.f32 %v2369, %v2771
    %2786 = vrot.lane.b32.xlu0 %v2778, 103
    %v2787 = vpop.permute.xlu0 %2786
    %2788 = vrot.lane.b32.xlu0 %v2779, 103
    %v2789 = vpop.permute.xlu0 %2788
    %2790 = vrot.lane.b32.xlu0 %v2780, 103
    %v2791 = vpop.permute.xlu0 %2790
    %2792 = vrot.lane.b32.xlu0 %v2781, 103
    %v2793 = vpop.permute.xlu0 %2792
    %v2794 = vsel %vm990, %v2787, %v2789
    %v2795 = vsel %vm990, %v2789, %v2791
    %v2796 = vsel %vm990, %v2791, %v2793
    %v2800 = vadd.f32 %v2757, %v2794
    %v2801 = vadd.f32 %v2758, %v2795
    %v2802 = vadd.f32 %v2759, %v2796
    %v2803 = vld [vmem:[#allocation10 + $0x108] sm:$0xff]
    %v2804 = vld [vmem:[#allocation10 + $0x110] sm:$0xff]
    %v2805 = vld [vmem:[#allocation10 + $0x118] sm:$0xff]
    %2809 = vrot.lane.b32.xlu0 %v2803, 26
    %v2810 = vpop.permute.xlu0 %2809
    %2811 = vrot.lane.b32.xlu0 %v2804, 26
    %v2812 = vpop.permute.xlu0 %2811
    %2813 = vrot.lane.b32.xlu0 %v2805, 26
    %v2814 = vpop.permute.xlu0 %2813
    %v2815 = vsel %vm735, %v2810, %v2812
    %v2816 = vsel %vm735, %v2812, %v2814
    %v2821 = vmul.f32 %v2357, %v2810
    %v2822 = vmul.f32 %v2358, %v2815
    %v2823 = vmul.f32 %v2359, %v2816
    %v2824 = vmul.f32 %v2369, %v2814
    %2829 = vrot.lane.b32.xlu0 %v2821, 102
    %v2830 = vpop.permute.xlu0 %2829
    %2831 = vrot.lane.b32.xlu0 %v2822, 102
    %v2832 = vpop.permute.xlu0 %2831
    %2833 = vrot.lane.b32.xlu0 %v2823, 102
    %v2834 = vpop.permute.xlu0 %2833
    %2835 = vrot.lane.b32.xlu0 %v2824, 102
    %v2836 = vpop.permute.xlu0 %2835
    %v2837 = vsel %vm1024, %v2830, %v2832
    %v2838 = vsel %vm1024, %v2832, %v2834
    %v2839 = vsel %vm1024, %v2834, %v2836
    %v2843 = vadd.f32 %v2800, %v2837
    %v2844 = vadd.f32 %v2801, %v2838
    %v2845 = vadd.f32 %v2802, %v2839
    %v2846 = vld [vmem:[#allocation10 + $0x120] sm:$0xff]
    %v2847 = vld [vmem:[#allocation10 + $0x128] sm:$0xff]
    %v2848 = vld [vmem:[#allocation10 + $0x130] sm:$0xff]
    %2852 = vrot.lane.b32.xlu0 %v2846, 27
    %v2853 = vpop.permute.xlu0 %2852
    %2854 = vrot.lane.b32.xlu0 %v2847, 27
    %v2855 = vpop.permute.xlu0 %2854
    %2856 = vrot.lane.b32.xlu0 %v2848, 27
    %v2857 = vpop.permute.xlu0 %2856
    %v2858 = vsel %vm769, %v2853, %v2855
    %v2859 = vsel %vm769, %v2855, %v2857
    %v2864 = vmul.f32 %v2357, %v2853
    %v2865 = vmul.f32 %v2358, %v2858
    %v2866 = vmul.f32 %v2359, %v2859
    %v2867 = vmul.f32 %v2369, %v2857
    %2872 = vrot.lane.b32.xlu0 %v2864, 101
    %v2873 = vpop.permute.xlu0 %2872
    %2874 = vrot.lane.b32.xlu0 %v2865, 101
    %v2875 = vpop.permute.xlu0 %2874
    %2876 = vrot.lane.b32.xlu0 %v2866, 101
    %v2877 = vpop.permute.xlu0 %2876
    %2878 = vrot.lane.b32.xlu0 %v2867, 101
    %v2879 = vpop.permute.xlu0 %2878
    %v2880 = vsel %vm1058, %v2873, %v2875
    %v2881 = vsel %vm1058, %v2875, %v2877
    %v2882 = vsel %vm1058, %v2877, %v2879
    %v2886 = vadd.f32 %v2843, %v2880
    %v2887 = vadd.f32 %v2844, %v2881
    %v2888 = vadd.f32 %v2845, %v2882
    %v2889 = vld [vmem:[#allocation10 + $0x138] sm:$0xff]
    %v2890 = vld [vmem:[#allocation10 + $0x140] sm:$0xff]
    %v2891 = vld [vmem:[#allocation10 + $0x148] sm:$0xff]
    %2895 = vrot.lane.b32.xlu0 %v2889, 28
    %v2896 = vpop.permute.xlu0 %2895
    %2897 = vrot.lane.b32.xlu0 %v2890, 28
    %v2898 = vpop.permute.xlu0 %2897
    %2899 = vrot.lane.b32.xlu0 %v2891, 28
    %v2900 = vpop.permute.xlu0 %2899
    %v2901 = vsel %vm803, %v2896, %v2898
    %v2902 = vsel %vm803, %v2898, %v2900
    %v2907 = vmul.f32 %v2357, %v2896
    %v2908 = vmul.f32 %v2358, %v2901
    %v2909 = vmul.f32 %v2359, %v2902
    %v2910 = vmul.f32 %v2369, %v2900
    %2915 = vrot.lane.b32.xlu0 %v2907, 100
    %v2916 = vpop.permute.xlu0 %2915
    %2917 = vrot.lane.b32.xlu0 %v2908, 100
    %v2918 = vpop.permute.xlu0 %2917
    %2919 = vrot.lane.b32.xlu0 %v2909, 100
    %v2920 = vpop.permute.xlu0 %2919
    %2921 = vrot.lane.b32.xlu0 %v2910, 100
    %v2922 = vpop.permute.xlu0 %2921
    %v2923 = vsel %vm1092, %v2916, %v2918
    %v2924 = vsel %vm1092, %v2918, %v2920
    %v2925 = vsel %vm1092, %v2920, %v2922
    %v2929 = vadd.f32 %v2886, %v2923
    %v2930 = vadd.f32 %v2887, %v2924
    %v2931 = vadd.f32 %v2888, %v2925
    %v2932 = vld [vmem:[#allocation10 + $0x150] sm:$0xff]
    %v2933 = vld [vmem:[#allocation10 + $0x158] sm:$0xff]
    %v2934 = vld [vmem:[#allocation10 + $0x160] sm:$0xff]
    %2938 = vrot.lane.b32.xlu0 %v2932, 29
    %v2939 = vpop.permute.xlu0 %2938
    %2940 = vrot.lane.b32.xlu0 %v2933, 29
    %v2941 = vpop.permute.xlu0 %2940
    %2942 = vrot.lane.b32.xlu0 %v2934, 29
    %v2943 = vpop.permute.xlu0 %2942
    %v2944 = vsel %vm837, %v2939, %v2941
    %v2945 = vsel %vm837, %v2941, %v2943
    %v2950 = vmul.f32 %v2357, %v2939
    %v2951 = vmul.f32 %v2358, %v2944
    %v2952 = vmul.f32 %v2359, %v2945
    %v2953 = vmul.f32 %v2369, %v2943
    %2958 = vrot.lane.b32.xlu0 %v2950, 99
    %v2959 = vpop.permute.xlu0 %2958
    %2960 = vrot.lane.b32.xlu0 %v2951, 99
    %v2961 = vpop.permute.xlu0 %2960
    %2962 = vrot.lane.b32.xlu0 %v2952, 99
    %v2963 = vpop.permute.xlu0 %2962
    %2964 = vrot.lane.b32.xlu0 %v2953, 99
    %v2965 = vpop.permute.xlu0 %2964
    %v2966 = vsel %vm1126, %v2959, %v2961
    %v2967 = vsel %vm1126, %v2961, %v2963
    %v2968 = vsel %vm1126, %v2963, %v2965
    %v2972 = vadd.f32 %v2929, %v2966
    %v2973 = vadd.f32 %v2930, %v2967
    %v2974 = vadd.f32 %v2931, %v2968
    %v2975 = vld [vmem:[#allocation10 + $0x168] sm:$0xff]
    %v2976 = vld [vmem:[#allocation10 + $0x170] sm:$0xff]
    %v2977 = vld [vmem:[#allocation10 + $0x178] sm:$0xff]
    %2981 = vrot.lane.b32.xlu0 %v2975, 30
    %v2982 = vpop.permute.xlu0 %2981
    %2983 = vrot.lane.b32.xlu0 %v2976, 30
    %v2984 = vpop.permute.xlu0 %2983
    %2985 = vrot.lane.b32.xlu0 %v2977, 30
    %v2986 = vpop.permute.xlu0 %2985
    %v2987 = vsel %vm871, %v2982, %v2984
    %v2988 = vsel %vm871, %v2984, %v2986
    %v2993 = vmul.f32 %v2357, %v2982
    %v2994 = vmul.f32 %v2358, %v2987
    %v2995 = vmul.f32 %v2359, %v2988
    %v2996 = vmul.f32 %v2369, %v2986
    %3001 = vrot.lane.b32.xlu0 %v2993, 98
    %v3002 = vpop.permute.xlu0 %3001
    %3003 = vrot.lane.b32.xlu0 %v2994, 98
    %v3004 = vpop.permute.xlu0 %3003
    %3005 = vrot.lane.b32.xlu0 %v2995, 98
    %v3006 = vpop.permute.xlu0 %3005
    %3007 = vrot.lane.b32.xlu0 %v2996, 98
    %v3008 = vpop.permute.xlu0 %3007
    %v3009 = vsel %vm1160, %v3002, %v3004
    %v3010 = vsel %vm1160, %v3004, %v3006
    %v3011 = vsel %vm1160, %v3006, %v3008
    %v3015 = vadd.f32 %v2972, %v3009
    %v3016 = vadd.f32 %v2973, %v3010
    %v3017 = vadd.f32 %v2974, %v3011
    %v3018 = vld [vmem:[#allocation10 + $0x180] sm:$0xff]
    %v3019 = vld [vmem:[#allocation10 + $0x188] sm:$0xff]
    %v3020 = vld [vmem:[#allocation10 + $0x190] sm:$0xff]
    %3024 = vrot.lane.b32.xlu0 %v3018, 31
    %v3025 = vpop.permute.xlu0 %3024
    %3026 = vrot.lane.b32.xlu0 %v3019, 31
    %v3027 = vpop.permute.xlu0 %3026
    %3028 = vrot.lane.b32.xlu0 %v3020, 31
    %v3029 = vpop.permute.xlu0 %3028
    %v3030 = vsel %vm905, %v3025, %v3027
    %v3031 = vsel %vm905, %v3027, %v3029
    %v3036 = vmul.f32 %v2357, %v3025
    %v3037 = vmul.f32 %v2358, %v3030
    %v3038 = vmul.f32 %v2359, %v3031
    %v3039 = vmul.f32 %v2369, %v3029
    %3044 = vrot.lane.b32.xlu0 %v3036, 97
    %v3045 = vpop.permute.xlu0 %3044
    %3046 = vrot.lane.b32.xlu0 %v3037, 97
    %v3047 = vpop.permute.xlu0 %3046
    %3048 = vrot.lane.b32.xlu0 %v3038, 97
    %v3049 = vpop.permute.xlu0 %3048
    %3050 = vrot.lane.b32.xlu0 %v3039, 97
    %v3051 = vpop.permute.xlu0 %3050
    %v3052 = vsel %vm1409, %v3045, %v3047
    %v3053 = vsel %vm1409, %v3047, %v3049
    %v3054 = vsel %vm1409, %v3049, %v3051
    %v3058 = vadd.f32 %v3015, %v3052
    %v3059 = vadd.f32 %v3016, %v3053
    %v3060 = vadd.f32 %v3017, %v3054
    %v3061 = vld [vmem:[#allocation10 + $0x198] sm:$0xff]
    %v3062 = vld [vmem:[#allocation10 + $0x1a0] sm:$0xff]
    %v3063 = vld [vmem:[#allocation10 + $0x1a8] sm:$0xff]
    %3067 = vrot.lane.b32.xlu0 %v3061, 32
    %v3068 = vpop.permute.xlu0 %3067
    %3069 = vrot.lane.b32.xlu0 %v3062, 32
    %v3070 = vpop.permute.xlu0 %3069
    %3071 = vrot.lane.b32.xlu0 %v3063, 32
    %v3072 = vpop.permute.xlu0 %3071
    %v3073 = vsel %vm1652, %v3068, %v3070
    %v3074 = vsel %vm1652, %v3070, %v3072
    %v3079 = vmul.f32 %v2357, %v3068
    %v3080 = vmul.f32 %v2358, %v3073
    %v3081 = vmul.f32 %v2359, %v3074
    %v3082 = vmul.f32 %v2369, %v3072
    %3087 = vrot.lane.b32.xlu0 %v3079, 96
    %v3088 = vpop.permute.xlu0 %3087
    %3089 = vrot.lane.b32.xlu0 %v3080, 96
    %v3090 = vpop.permute.xlu0 %3089
    %3091 = vrot.lane.b32.xlu0 %v3081, 96
    %v3092 = vpop.permute.xlu0 %3091
    %3093 = vrot.lane.b32.xlu0 %v3082, 96
    %v3094 = vpop.permute.xlu0 %3093
    %vm3095 = vcmask 785408
    %v3096 = vsel %vm3095, %v3088, %v3090
    %v3097 = vsel %vm3095, %v3090, %v3092
    %v3098 = vsel %vm3095, %v3092, %v3094
    %v3102 = vadd.f32 %v3058, %v3096
    %v3103 = vadd.f32 %v3059, %v3097
    %v3104 = vadd.f32 %v3060, %v3098
    %v3105 = vld [vmem:[#allocation10 + $0x1b0] sm:$0xff]
    %v3106 = vld [vmem:[#allocation10 + $0x1b8] sm:$0xff]
    %v3107 = vld [vmem:[#allocation10 + $0x1c0] sm:$0xff]
    %3111 = vrot.lane.b32.xlu0 %v3105, 48
    %v3112 = vpop.permute.xlu0 %3111
    %3113 = vrot.lane.b32.xlu0 %v3106, 48
    %v3114 = vpop.permute.xlu0 %3113
    %3115 = vrot.lane.b32.xlu0 %v3107, 48
    %v3116 = vpop.permute.xlu0 %3115
    %vm3117 = vcmask 392192
    %v3118 = vsel %vm3117, %v3112, %v3114
    %v3119 = vsel %vm3117, %v3114, %v3116
    %v3124 = vmul.f32 %v2357, %v3112
    %v3125 = vmul.f32 %v2358, %v3118
    %v3126 = vmul.f32 %v2359, %v3119
    %v3127 = vmul.f32 %v2369, %v3116
    %3132 = vrot.lane.b32.xlu0 %v3124, 80
    %v3133 = vpop.permute.xlu0 %3132
    %3134 = vrot.lane.b32.xlu0 %v3125, 80
    %v3135 = vpop.permute.xlu0 %3134
    %3136 = vrot.lane.b32.xlu0 %v3126, 80
    %v3137 = vpop.permute.xlu0 %3136
    %3138 = vrot.lane.b32.xlu0 %v3127, 80
    %v3139 = vpop.permute.xlu0 %3138
    %v3140 = vsel %vm1194, %v3133, %v3135
    %v3141 = vsel %vm1194, %v3135, %v3137
    %v3142 = vsel %vm1194, %v3137, %v3139
    %v3146 = vadd.f32 %v3102, %v3140
    %v3147 = vadd.f32 %v3103, %v3141
    %v3148 = vadd.f32 %v3104, %v3142
    %v3149 = vld [vmem:[#allocation10 + $0x1c8] sm:$0xff]
    %v3150 = vld [vmem:[#allocation10 + $0x1d0] sm:$0xff]
    %v3151 = vld [vmem:[#allocation10 + $0x1d8] sm:$0xff]
    %3155 = vrot.lane.b32.xlu0 %v3149, 49
    %v3156 = vpop.permute.xlu0 %3155
    %3157 = vrot.lane.b32.xlu0 %v3150, 49
    %v3158 = vpop.permute.xlu0 %3157
    %3159 = vrot.lane.b32.xlu0 %v3151, 49
    %v3160 = vpop.permute.xlu0 %3159
    %v3161 = vsel %vm939, %v3156, %v3158
    %v3162 = vsel %vm939, %v3158, %v3160
    %v3167 = vmul.f32 %v2357, %v3156
    %v3168 = vmul.f32 %v2358, %v3161
    %v3169 = vmul.f32 %v2359, %v3162
    %v3170 = vmul.f32 %v2369, %v3160
    %3175 = vrot.lane.b32.xlu0 %v3167, 79
    %v3176 = vpop.permute.xlu0 %3175
    %3177 = vrot.lane.b32.xlu0 %v3168, 79
    %v3178 = vpop.permute.xlu0 %3177
    %3179 = vrot.lane.b32.xlu0 %v3169, 79
    %v3180 = vpop.permute.xlu0 %3179
    %3181 = vrot.lane.b32.xlu0 %v3170, 79
    %v3182 = vpop.permute.xlu0 %3181
    %v3183 = vsel %vm1228, %v3176, %v3178
    %v3184 = vsel %vm1228, %v3178, %v3180
    %v3185 = vsel %vm1228, %v3180, %v3182
    %v3189 = vadd.f32 %v3146, %v3183
    %v3190 = vadd.f32 %v3147, %v3184
    %v3191 = vadd.f32 %v3148, %v3185
    %v3192 = vld [vmem:[#allocation10 + $0x1e0] sm:$0xff]
    %v3193 = vld [vmem:[#allocation10 + $0x1e8] sm:$0xff]
    %v3194 = vld [vmem:[#allocation10 + $0x1f0] sm:$0xff]
    %3198 = vrot.lane.b32.xlu0 %v3192, 50
    %v3199 = vpop.permute.xlu0 %3198
    %3200 = vrot.lane.b32.xlu0 %v3193, 50
    %v3201 = vpop.permute.xlu0 %3200
    %3202 = vrot.lane.b32.xlu0 %v3194, 50
    %v3203 = vpop.permute.xlu0 %3202
    %v3204 = vsel %vm973, %v3199, %v3201
    %v3205 = vsel %vm973, %v3201, %v3203
    %v3210 = vmul.f32 %v2357, %v3199
    %v3211 = vmul.f32 %v2358, %v3204
    %v3212 = vmul.f32 %v2359, %v3205
    %v3213 = vmul.f32 %v2369, %v3203
    %3218 = vrot.lane.b32.xlu0 %v3210, 78
    %v3219 = vpop.permute.xlu0 %3218
    %3220 = vrot.lane.b32.xlu0 %v3211, 78
    %v3221 = vpop.permute.xlu0 %3220
    %3222 = vrot.lane.b32.xlu0 %v3212, 78
    %v3223 = vpop.permute.xlu0 %3222
    %3224 = vrot.lane.b32.xlu0 %v3213, 78
    %v3225 = vpop.permute.xlu0 %3224
    %v3226 = vsel %vm1262, %v3219, %v3221
    %v3227 = vsel %vm1262, %v3221, %v3223
    %v3228 = vsel %vm1262, %v3223, %v3225
    %v3232 = vadd.f32 %v3189, %v3226
    %v3233 = vadd.f32 %v3190, %v3227
    %v3234 = vadd.f32 %v3191, %v3228
    %v3235 = vld [vmem:[#allocation10 + $0x1f8] sm:$0xff]
    %v3236 = vld [vmem:[#allocation10 + $0x200] sm:$0xff]
    %v3237 = vld [vmem:[#allocation10 + $0x208] sm:$0xff]
    %3241 = vrot.lane.b32.xlu0 %v3235, 51
    %v3242 = vpop.permute.xlu0 %3241
    %3243 = vrot.lane.b32.xlu0 %v3236, 51
    %v3244 = vpop.permute.xlu0 %3243
    %3245 = vrot.lane.b32.xlu0 %v3237, 51
    %v3246 = vpop.permute.xlu0 %3245
    %v3247 = vsel %vm1007, %v3242, %v3244
    %v3248 = vsel %vm1007, %v3244, %v3246
    %v3253 = vmul.f32 %v2357, %v3242
    %v3254 = vmul.f32 %v2358, %v3247
    %v3255 = vmul.f32 %v2359, %v3248
    %v3256 = vmul.f32 %v2369, %v3246
    %3261 = vrot.lane.b32.xlu0 %v3253, 77
    %v3262 = vpop.permute.xlu0 %3261
    %3263 = vrot.lane.b32.xlu0 %v3254, 77
    %v3264 = vpop.permute.xlu0 %3263
    %3265 = vrot.lane.b32.xlu0 %v3255, 77
    %v3266 = vpop.permute.xlu0 %3265
    %3267 = vrot.lane.b32.xlu0 %v3256, 77
    %v3268 = vpop.permute.xlu0 %3267
    %v3269 = vsel %vm1296, %v3262, %v3264
    %v3270 = vsel %vm1296, %v3264, %v3266
    %v3271 = vsel %vm1296, %v3266, %v3268
    %v3275 = vadd.f32 %v3232, %v3269
    %v3276 = vadd.f32 %v3233, %v3270
    %v3277 = vadd.f32 %v3234, %v3271
    %v3278 = vld [vmem:[#allocation10 + $0x210] sm:$0xff]
    %v3279 = vld [vmem:[#allocation10 + $0x218] sm:$0xff]
    %v3280 = vld [vmem:[#allocation10 + $0x220] sm:$0xff]
    %3284 = vrot.lane.b32.xlu0 %v3278, 52
    %v3285 = vpop.permute.xlu0 %3284
    %3286 = vrot.lane.b32.xlu0 %v3279, 52
    %v3287 = vpop.permute.xlu0 %3286
    %3288 = vrot.lane.b32.xlu0 %v3280, 52
    %v3289 = vpop.permute.xlu0 %3288
    %v3290 = vsel %vm1041, %v3285, %v3287
    %v3291 = vsel %vm1041, %v3287, %v3289
    %v3296 = vmul.f32 %v2357, %v3285
    %v3297 = vmul.f32 %v2358, %v3290
    %v3298 = vmul.f32 %v2359, %v3291
    %v3299 = vmul.f32 %v2369, %v3289
    %3304 = vrot.lane.b32.xlu0 %v3296, 76
    %v3305 = vpop.permute.xlu0 %3304
    %3306 = vrot.lane.b32.xlu0 %v3297, 76
    %v3307 = vpop.permute.xlu0 %3306
    %3308 = vrot.lane.b32.xlu0 %v3298, 76
    %v3309 = vpop.permute.xlu0 %3308
    %3310 = vrot.lane.b32.xlu0 %v3299, 76
    %v3311 = vpop.permute.xlu0 %3310
    %v3312 = vsel %vm1279, %v3305, %v3307
    %v3313 = vsel %vm1279, %v3307, %v3309
    %v3314 = vsel %vm1279, %v3309, %v3311
    %v3318 = vadd.f32 %v3275, %v3312
    %v3319 = vadd.f32 %v3276, %v3313
    %v3320 = vadd.f32 %v3277, %v3314
    %v3321 = vld [vmem:[#allocation10 + $0x228] sm:$0xff]
    %v3322 = vld [vmem:[#allocation10 + $0x230] sm:$0xff]
    %v3323 = vld [vmem:[#allocation10 + $0x238] sm:$0xff]
    %3327 = vrot.lane.b32.xlu0 %v3321, 53
    %v3328 = vpop.permute.xlu0 %3327
    %3329 = vrot.lane.b32.xlu0 %v3322, 53
    %v3330 = vpop.permute.xlu0 %3329
    %3331 = vrot.lane.b32.xlu0 %v3323, 53
    %v3332 = vpop.permute.xlu0 %3331
    %v3333 = vsel %vm1075, %v3328, %v3330
    %v3334 = vsel %vm1075, %v3330, %v3332
    %v3339 = vmul.f32 %v2357, %v3328
    %v3340 = vmul.f32 %v2358, %v3333
    %v3341 = vmul.f32 %v2359, %v3334
    %v3342 = vmul.f32 %v2369, %v3332
    %3347 = vrot.lane.b32.xlu0 %v3339, 75
    %v3348 = vpop.permute.xlu0 %3347
    %3349 = vrot.lane.b32.xlu0 %v3340, 75
    %v3350 = vpop.permute.xlu0 %3349
    %3351 = vrot.lane.b32.xlu0 %v3341, 75
    %v3352 = vpop.permute.xlu0 %3351
    %3353 = vrot.lane.b32.xlu0 %v3342, 75
    %v3354 = vpop.permute.xlu0 %3353
    %v3355 = vsel %vm1245, %v3348, %v3350
    %v3356 = vsel %vm1245, %v3350, %v3352
    %v3357 = vsel %vm1245, %v3352, %v3354
    %v3361 = vadd.f32 %v3318, %v3355
    %v3362 = vadd.f32 %v3319, %v3356
    %v3363 = vadd.f32 %v3320, %v3357
    %v3364 = vld [vmem:[#allocation10 + $0x240] sm:$0xff]
    %v3365 = vld [vmem:[#allocation10 + $0x248] sm:$0xff]
    %v3366 = vld [vmem:[#allocation10 + $0x250] sm:$0xff]
    %3370 = vrot.lane.b32.xlu0 %v3364, 54
    %v3371 = vpop.permute.xlu0 %3370
    %3372 = vrot.lane.b32.xlu0 %v3365, 54
    %v3373 = vpop.permute.xlu0 %3372
    %3374 = vrot.lane.b32.xlu0 %v3366, 54
    %v3375 = vpop.permute.xlu0 %3374
    %v3376 = vsel %vm1109, %v3371, %v3373
    %v3377 = vsel %vm1109, %v3373, %v3375
    %v3382 = vmul.f32 %v2357, %v3371
    %v3383 = vmul.f32 %v2358, %v3376
    %v3384 = vmul.f32 %v2359, %v3377
    %v3385 = vmul.f32 %v2369, %v3375
    %3390 = vrot.lane.b32.xlu0 %v3382, 74
    %v3391 = vpop.permute.xlu0 %3390
    %3392 = vrot.lane.b32.xlu0 %v3383, 74
    %v3393 = vpop.permute.xlu0 %3392
    %3394 = vrot.lane.b32.xlu0 %v3384, 74
    %v3395 = vpop.permute.xlu0 %3394
    %3396 = vrot.lane.b32.xlu0 %v3385, 74
    %v3397 = vpop.permute.xlu0 %3396
    %v3398 = vsel %vm1211, %v3391, %v3393
    %v3399 = vsel %vm1211, %v3393, %v3395
    %v3400 = vsel %vm1211, %v3395, %v3397
    %v3404 = vadd.f32 %v3361, %v3398
    %v3405 = vadd.f32 %v3362, %v3399
    %v3406 = vadd.f32 %v3363, %v3400
    %v3407 = vld [vmem:[#allocation10 + $0x258] sm:$0xff]
    %v3408 = vld [vmem:[#allocation10 + $0x260] sm:$0xff]
    %v3409 = vld [vmem:[#allocation10 + $0x268] sm:$0xff]
    %3413 = vrot.lane.b32.xlu0 %v3407, 55
    %v3414 = vpop.permute.xlu0 %3413
    %3415 = vrot.lane.b32.xlu0 %v3408, 55
    %v3416 = vpop.permute.xlu0 %3415
    %3417 = vrot.lane.b32.xlu0 %v3409, 55
    %v3418 = vpop.permute.xlu0 %3417
    %v3419 = vsel %vm1143, %v3414, %v3416
    %v3420 = vsel %vm1143, %v3416, %v3418
    %v3425 = vmul.f32 %v2357, %v3414
    %v3426 = vmul.f32 %v2358, %v3419
    %v3427 = vmul.f32 %v2359, %v3420
    %v3428 = vmul.f32 %v2369, %v3418
    %3433 = vrot.lane.b32.xlu0 %v3425, 73
    %v3434 = vpop.permute.xlu0 %3433
    %3435 = vrot.lane.b32.xlu0 %v3426, 73
    %v3436 = vpop.permute.xlu0 %3435
    %3437 = vrot.lane.b32.xlu0 %v3427, 73
    %v3438 = vpop.permute.xlu0 %3437
    %3439 = vrot.lane.b32.xlu0 %v3428, 73
    %v3440 = vpop.permute.xlu0 %3439
    %v3441 = vsel %vm1177, %v3434, %v3436
    %v3442 = vsel %vm1177, %v3436, %v3438
    %v3443 = vsel %vm1177, %v3438, %v3440
    %v3447 = vadd.f32 %v3404, %v3441
    %v3448 = vadd.f32 %v3405, %v3442
    %v3449 = vadd.f32 %v3406, %v3443
    %v3450 = vld [vmem:[#allocation10 + $0x270] sm:$0xff]
    %v3451 = vld [vmem:[#allocation10 + $0x278] sm:$0xff]
    %v3452 = vld [vmem:[#allocation10 + $0x280] sm:$0xff]
    %3456 = vrot.lane.b32.xlu0 %v3450, 56
    %v3457 = vpop.permute.xlu0 %3456
    %3458 = vrot.lane.b32.xlu0 %v3451, 56
    %v3459 = vpop.permute.xlu0 %3458
    %3460 = vrot.lane.b32.xlu0 %v3452, 56
    %v3461 = vpop.permute.xlu0 %3460
    %v3462 = vsel %vm1426, %v3457, %v3459
    %v3463 = vsel %vm1426, %v3459, %v3461
    %v3468 = vmul.f32 %v2357, %v3457
    %v3469 = vmul.f32 %v2358, %v3462
    %v3470 = vmul.f32 %v2359, %v3463
    %v3471 = vmul.f32 %v2369, %v3461
    %3476 = vrot.lane.b32.xlu0 %v3468, 72
    %v3477 = vpop.permute.xlu0 %3476
    %3478 = vrot.lane.b32.xlu0 %v3469, 72
    %v3479 = vpop.permute.xlu0 %3478
    %3480 = vrot.lane.b32.xlu0 %v3470, 72
    %v3481 = vpop.permute.xlu0 %3480
    %3482 = vrot.lane.b32.xlu0 %v3471, 72
    %v3483 = vpop.permute.xlu0 %3482
    %vm3484 = vcmask 588800
    %v3485 = vsel %vm3484, %v3477, %v3479
    %v3486 = vsel %vm3484, %v3479, %v3481
    %v3487 = vsel %vm3484, %v3481, %v3483
    %v3491 = vadd.f32 %v3447, %v3485
    %v3492 = vadd.f32 %v3448, %v3486
    %v3493 = vadd.f32 %v3449, %v3487
    %v3494 = vld [vmem:[#allocation10 + $0x288] sm:$0xff]
    %v3495 = vld [vmem:[#allocation10 + $0x290] sm:$0xff]
    %v3496 = vld [vmem:[#allocation10 + $0x298] sm:$0xff]
    %3500 = vrot.lane.b32.xlu0 %v3494, 72
    %v3501 = vpop.permute.xlu0 %3500
    %3502 = vrot.lane.b32.xlu0 %v3495, 72
    %v3503 = vpop.permute.xlu0 %3502
    %3504 = vrot.lane.b32.xlu0 %v3496, 72
    %v3505 = vpop.permute.xlu0 %3504
    %v3506 = vsel %vm3484, %v3501, %v3503
    %v3507 = vsel %vm3484, %v3503, %v3505
    %v3512 = vmul.f32 %v2357, %v3501
    %v3513 = vmul.f32 %v2358, %v3506
    %v3514 = vmul.f32 %v2359, %v3507
    %v3515 = vmul.f32 %v2369, %v3505
    %3520 = vrot.lane.b32.xlu0 %v3512, 56
    %v3521 = vpop.permute.xlu0 %3520
    %3522 = vrot.lane.b32.xlu0 %v3513, 56
    %v3523 = vpop.permute.xlu0 %3522
    %3524 = vrot.lane.b32.xlu0 %v3514, 56
    %v3525 = vpop.permute.xlu0 %3524
    %3526 = vrot.lane.b32.xlu0 %v3515, 56
    %v3527 = vpop.permute.xlu0 %3526
    %v3528 = vsel %vm1426, %v3521, %v3523
    %v3529 = vsel %vm1426, %v3523, %v3525
    %v3530 = vsel %vm1426, %v3525, %v3527
    %v3534 = vadd.f32 %v3491, %v3528
    %v3535 = vadd.f32 %v3492, %v3529
    %v3536 = vadd.f32 %v3493, %v3530
    %v3537 = vld [vmem:[#allocation10 + $0x2a0] sm:$0xff]
    %v3538 = vld [vmem:[#allocation10 + $0x2a8] sm:$0xff]
    %v3539 = vld [vmem:[#allocation10 + $0x2b0] sm:$0xff]
    %3543 = vrot.lane.b32.xlu0 %v3537, 73
    %v3544 = vpop.permute.xlu0 %3543
    %3545 = vrot.lane.b32.xlu0 %v3538, 73
    %v3546 = vpop.permute.xlu0 %3545
    %3547 = vrot.lane.b32.xlu0 %v3539, 73
    %v3548 = vpop.permute.xlu0 %3547
    %v3549 = vsel %vm1177, %v3544, %v3546
    %v3550 = vsel %vm1177, %v3546, %v3548
    %v3555 = vmul.f32 %v2357, %v3544
    %v3556 = vmul.f32 %v2358, %v3549
    %v3557 = vmul.f32 %v2359, %v3550
    %v3558 = vmul.f32 %v2369, %v3548
    %3563 = vrot.lane.b32.xlu0 %v3555, 55
    %v3564 = vpop.permute.xlu0 %3563
    %3565 = vrot.lane.b32.xlu0 %v3556, 55
    %v3566 = vpop.permute.xlu0 %3565
    %3567 = vrot.lane.b32.xlu0 %v3557, 55
    %v3568 = vpop.permute.xlu0 %3567
    %3569 = vrot.lane.b32.xlu0 %v3558, 55
    %v3570 = vpop.permute.xlu0 %3569
    %v3571 = vsel %vm1143, %v3564, %v3566
    %v3572 = vsel %vm1143, %v3566, %v3568
    %v3573 = vsel %vm1143, %v3568, %v3570
    %v3577 = vadd.f32 %v3534, %v3571
    %v3578 = vadd.f32 %v3535, %v3572
    %v3579 = vadd.f32 %v3536, %v3573
    %v3580 = vld [vmem:[#allocation10 + $0x2b8] sm:$0xff]
    %v3581 = vld [vmem:[#allocation10 + $0x2c0] sm:$0xff]
    %v3582 = vld [vmem:[#allocation10 + $0x2c8] sm:$0xff]
    %3586 = vrot.lane.b32.xlu0 %v3580, 74
    %v3587 = vpop.permute.xlu0 %3586
    %3588 = vrot.lane.b32.xlu0 %v3581, 74
    %v3589 = vpop.permute.xlu0 %3588
    %3590 = vrot.lane.b32.xlu0 %v3582, 74
    %v3591 = vpop.permute.xlu0 %3590
    %v3592 = vsel %vm1211, %v3587, %v3589
    %v3593 = vsel %vm1211, %v3589, %v3591
    %v3598 = vmul.f32 %v2357, %v3587
    %v3599 = vmul.f32 %v2358, %v3592
    %v3600 = vmul.f32 %v2359, %v3593
    %v3601 = vmul.f32 %v2369, %v3591
    %3606 = vrot.lane.b32.xlu0 %v3598, 54
    %v3607 = vpop.permute.xlu0 %3606
    %3608 = vrot.lane.b32.xlu0 %v3599, 54
    %v3609 = vpop.permute.xlu0 %3608
    %3610 = vrot.lane.b32.xlu0 %v3600, 54
    %v3611 = vpop.permute.xlu0 %3610
    %3612 = vrot.lane.b32.xlu0 %v3601, 54
    %v3613 = vpop.permute.xlu0 %3612
    %v3614 = vsel %vm1109, %v3607, %v3609
    %v3615 = vsel %vm1109, %v3609, %v3611
    %v3616 = vsel %vm1109, %v3611, %v3613
    %v3620 = vadd.f32 %v3577, %v3614
    %v3621 = vadd.f32 %v3578, %v3615
    %v3622 = vadd.f32 %v3579, %v3616
    %v3623 = vld [vmem:[#allocation10 + $0x2d0] sm:$0xff]
    %v3624 = vld [vmem:[#allocation10 + $0x2d8] sm:$0xff]
    %v3625 = vld [vmem:[#allocation10 + $0x2e0] sm:$0xff]
    %3629 = vrot.lane.b32.xlu0 %v3623, 75
    %v3630 = vpop.permute.xlu0 %3629
    %3631 = vrot.lane.b32.xlu0 %v3624, 75
    %v3632 = vpop.permute.xlu0 %3631
    %3633 = vrot.lane.b32.xlu0 %v3625, 75
    %v3634 = vpop.permute.xlu0 %3633
    %v3635 = vsel %vm1245, %v3630, %v3632
    %v3636 = vsel %vm1245, %v3632, %v3634
    %v3641 = vmul.f32 %v2357, %v3630
    %v3642 = vmul.f32 %v2358, %v3635
    %v3643 = vmul.f32 %v2359, %v3636
    %v3644 = vmul.f32 %v2369, %v3634
    %3649 = vrot.lane.b32.xlu0 %v3641, 53
    %v3650 = vpop.permute.xlu0 %3649
    %3651 = vrot.lane.b32.xlu0 %v3642, 53
    %v3652 = vpop.permute.xlu0 %3651
    %3653 = vrot.lane.b32.xlu0 %v3643, 53
    %v3654 = vpop.permute.xlu0 %3653
    %3655 = vrot.lane.b32.xlu0 %v3644, 53
    %v3656 = vpop.permute.xlu0 %3655
    %v3657 = vsel %vm1075, %v3650, %v3652
    %v3658 = vsel %vm1075, %v3652, %v3654
    %v3659 = vsel %vm1075, %v3654, %v3656
    %v3663 = vadd.f32 %v3620, %v3657
    %v3664 = vadd.f32 %v3621, %v3658
    %v3665 = vadd.f32 %v3622, %v3659
    %v3666 = vld [vmem:[#allocation10 + $0x2e8] sm:$0xff]
    %v3667 = vld [vmem:[#allocation10 + $0x2f0] sm:$0xff]
    %v3668 = vld [vmem:[#allocation10 + $0x2f8] sm:$0xff]
    %3672 = vrot.lane.b32.xlu0 %v3666, 76
    %v3673 = vpop.permute.xlu0 %3672
    %3674 = vrot.lane.b32.xlu0 %v3667, 76
    %v3675 = vpop.permute.xlu0 %3674
    %3676 = vrot.lane.b32.xlu0 %v3668, 76
    %v3677 = vpop.permute.xlu0 %3676
    %v3678 = vsel %vm1279, %v3673, %v3675
    %v3679 = vsel %vm1279, %v3675, %v3677
    %v3684 = vmul.f32 %v2357, %v3673
    %v3685 = vmul.f32 %v2358, %v3678
    %v3686 = vmul.f32 %v2359, %v3679
    %v3687 = vmul.f32 %v2369, %v3677
    %3692 = vrot.lane.b32.xlu0 %v3684, 52
    %v3693 = vpop.permute.xlu0 %3692
    %3694 = vrot.lane.b32.xlu0 %v3685, 52
    %v3695 = vpop.permute.xlu0 %3694
    %3696 = vrot.lane.b32.xlu0 %v3686, 52
    %v3697 = vpop.permute.xlu0 %3696
    %3698 = vrot.lane.b32.xlu0 %v3687, 52
    %v3699 = vpop.permute.xlu0 %3698
    %v3700 = vsel %vm1041, %v3693, %v3695
    %v3701 = vsel %vm1041, %v3695, %v3697
    %v3702 = vsel %vm1041, %v3697, %v3699
    %v3706 = vadd.f32 %v3663, %v3700
    %v3707 = vadd.f32 %v3664, %v3701
    %v3708 = vadd.f32 %v3665, %v3702
    %v3709 = vld [vmem:[#allocation10 + $0x300] sm:$0xff]
    %v3710 = vld [vmem:[#allocation10 + $0x308] sm:$0xff]
    %v3711 = vld [vmem:[#allocation10 + $0x310] sm:$0xff]
    %3715 = vrot.lane.b32.xlu0 %v3709, 77
    %v3716 = vpop.permute.xlu0 %3715
    %3717 = vrot.lane.b32.xlu0 %v3710, 77
    %v3718 = vpop.permute.xlu0 %3717
    %3719 = vrot.lane.b32.xlu0 %v3711, 77
    %v3720 = vpop.permute.xlu0 %3719
    %v3721 = vsel %vm1296, %v3716, %v3718
    %v3722 = vsel %vm1296, %v3718, %v3720
    %v3727 = vmul.f32 %v2357, %v3716
    %v3728 = vmul.f32 %v2358, %v3721
    %v3729 = vmul.f32 %v2359, %v3722
    %v3730 = vmul.f32 %v2369, %v3720
    %3735 = vrot.lane.b32.xlu0 %v3727, 51
    %v3736 = vpop.permute.xlu0 %3735
    %3737 = vrot.lane.b32.xlu0 %v3728, 51
    %v3738 = vpop.permute.xlu0 %3737
    %3739 = vrot.lane.b32.xlu0 %v3729, 51
    %v3740 = vpop.permute.xlu0 %3739
    %3741 = vrot.lane.b32.xlu0 %v3730, 51
    %v3742 = vpop.permute.xlu0 %3741
    %v3743 = vsel %vm1007, %v3736, %v3738
    %v3744 = vsel %vm1007, %v3738, %v3740
    %v3745 = vsel %vm1007, %v3740, %v3742
    %v3749 = vadd.f32 %v3706, %v3743
    %v3750 = vadd.f32 %v3707, %v3744
    %v3751 = vadd.f32 %v3708, %v3745
    %v3752 = vld [vmem:[#allocation10 + $0x318] sm:$0xff]
    %v3753 = vld [vmem:[#allocation10 + $0x320] sm:$0xff]
    %v3754 = vld [vmem:[#allocation10 + $0x328] sm:$0xff]
    %3758 = vrot.lane.b32.xlu0 %v3752, 78
    %v3759 = vpop.permute.xlu0 %3758
    %3760 = vrot.lane.b32.xlu0 %v3753, 78
    %v3761 = vpop.permute.xlu0 %3760
    %3762 = vrot.lane.b32.xlu0 %v3754, 78
    %v3763 = vpop.permute.xlu0 %3762
    %v3764 = vsel %vm1262, %v3759, %v3761
    %v3765 = vsel %vm1262, %v3761, %v3763
    %v3770 = vmul.f32 %v2357, %v3759
    %v3771 = vmul.f32 %v2358, %v3764
    %v3772 = vmul.f32 %v2359, %v3765
    %v3773 = vmul.f32 %v2369, %v3763
    %3778 = vrot.lane.b32.xlu0 %v3770, 50
    %v3779 = vpop.permute.xlu0 %3778
    %3780 = vrot.lane.b32.xlu0 %v3771, 50
    %v3781 = vpop.permute.xlu0 %3780
    %3782 = vrot.lane.b32.xlu0 %v3772, 50
    %v3783 = vpop.permute.xlu0 %3782
    %3784 = vrot.lane.b32.xlu0 %v3773, 50
    %v3785 = vpop.permute.xlu0 %3784
    %v3786 = vsel %vm973, %v3779, %v3781
    %v3787 = vsel %vm973, %v3781, %v3783
    %v3788 = vsel %vm973, %v3783, %v3785
    %v3792 = vadd.f32 %v3749, %v3786
    %v3793 = vadd.f32 %v3750, %v3787
    %v3794 = vadd.f32 %v3751, %v3788
    %v3795 = vld [vmem:[#allocation10 + $0x330] sm:$0xff]
    %v3796 = vld [vmem:[#allocation10 + $0x338] sm:$0xff]
    %v3797 = vld [vmem:[#allocation10 + $0x340] sm:$0xff]
    %3801 = vrot.lane.b32.xlu0 %v3795, 79
    %v3802 = vpop.permute.xlu0 %3801
    %3803 = vrot.lane.b32.xlu0 %v3796, 79
    %v3804 = vpop.permute.xlu0 %3803
    %3805 = vrot.lane.b32.xlu0 %v3797, 79
    %v3806 = vpop.permute.xlu0 %3805
    %v3807 = vsel %vm1228, %v3802, %v3804
    %v3808 = vsel %vm1228, %v3804, %v3806
    %v3813 = vmul.f32 %v2357, %v3802
    %v3814 = vmul.f32 %v2358, %v3807
    %v3815 = vmul.f32 %v2359, %v3808
    %v3816 = vmul.f32 %v2369, %v3806
    %3821 = vrot.lane.b32.xlu0 %v3813, 49
    %v3822 = vpop.permute.xlu0 %3821
    %3823 = vrot.lane.b32.xlu0 %v3814, 49
    %v3824 = vpop.permute.xlu0 %3823
    %3825 = vrot.lane.b32.xlu0 %v3815, 49
    %v3826 = vpop.permute.xlu0 %3825
    %3827 = vrot.lane.b32.xlu0 %v3816, 49
    %v3828 = vpop.permute.xlu0 %3827
    %v3829 = vsel %vm939, %v3822, %v3824
    %v3830 = vsel %vm939, %v3824, %v3826
    %v3831 = vsel %vm939, %v3826, %v3828
    %v3835 = vadd.f32 %v3792, %v3829
    %v3836 = vadd.f32 %v3793, %v3830
    %v3837 = vadd.f32 %v3794, %v3831
    %v3838 = vld [vmem:[#allocation10 + $0x348] sm:$0xff]
    %v3839 = vld [vmem:[#allocation10 + $0x350] sm:$0xff]
    %v3840 = vld [vmem:[#allocation10 + $0x358] sm:$0xff]
    %3844 = vrot.lane.b32.xlu0 %v3838, 80
    %v3845 = vpop.permute.xlu0 %3844
    %3846 = vrot.lane.b32.xlu0 %v3839, 80
    %v3847 = vpop.permute.xlu0 %3846
    %3848 = vrot.lane.b32.xlu0 %v3840, 80
    %v3849 = vpop.permute.xlu0 %3848
    %v3850 = vsel %vm1194, %v3845, %v3847
    %v3851 = vsel %vm1194, %v3847, %v3849
    %v3856 = vmul.f32 %v2357, %v3845
    %v3857 = vmul.f32 %v2358, %v3850
    %v3858 = vmul.f32 %v2359, %v3851
    %v3859 = vmul.f32 %v2369, %v3849
    %3864 = vrot.lane.b32.xlu0 %v3856, 48
    %v3865 = vpop.permute.xlu0 %3864
    %3866 = vrot.lane.b32.xlu0 %v3857, 48
    %v3867 = vpop.permute.xlu0 %3866
    %3868 = vrot.lane.b32.xlu0 %v3858, 48
    %v3869 = vpop.permute.xlu0 %3868
    %3870 = vrot.lane.b32.xlu0 %v3859, 48
    %v3871 = vpop.permute.xlu0 %3870
    %v3872 = vsel %vm3117, %v3865, %v3867
    %v3873 = vsel %vm3117, %v3867, %v3869
    %v3874 = vsel %vm3117, %v3869, %v3871
    %v3878 = vadd.f32 %v3835, %v3872
    %v3879 = vadd.f32 %v3836, %v3873
    %v3880 = vadd.f32 %v3837, %v3874
    %v3881 = vld [vmem:[#allocation10 + $0x360] sm:$0xff]
    %v3882 = vld [vmem:[#allocation10 + $0x368] sm:$0xff]
    %v3883 = vld [vmem:[#allocation10 + $0x370] sm:$0xff]
    %3887 = vrot.lane.b32.xlu0 %v3881, 96
    %v3888 = vpop.permute.xlu0 %3887
    %3889 = vrot.lane.b32.xlu0 %v3882, 96
    %v3890 = vpop.permute.xlu0 %3889
    %3891 = vrot.lane.b32.xlu0 %v3883, 96
    %v3892 = vpop.permute.xlu0 %3891
    %v3893 = vsel %vm3095, %v3888, %v3890
    %v3894 = vsel %vm3095, %v3890, %v3892
    %v3899 = vmul.f32 %v2357, %v3888
    %v3900 = vmul.f32 %v2358, %v3893
    %v3901 = vmul.f32 %v2359, %v3894
    %v3902 = vmul.f32 %v2369, %v3892
    %3907 = vrot.lane.b32.xlu0 %v3899, 32
    %v3908 = vpop.permute.xlu0 %3907
    %3909 = vrot.lane.b32.xlu0 %v3900, 32
    %v3910 = vpop.permute.xlu0 %3909
    %3911 = vrot.lane.b32.xlu0 %v3901, 32
    %v3912 = vpop.permute.xlu0 %3911
    %3913 = vrot.lane.b32.xlu0 %v3902, 32
    %v3914 = vpop.permute.xlu0 %3913
    %v3915 = vsel %vm1652, %v3908, %v3910
    %v3916 = vsel %vm1652, %v3910, %v3912
    %v3917 = vsel %vm1652, %v3912, %v3914
    %v3921 = vadd.f32 %v3878, %v3915
    %v3922 = vadd.f32 %v3879, %v3916
    %v3923 = vadd.f32 %v3880, %v3917
    %v3924 = vld [vmem:[#allocation10 + $0x378] sm:$0xff]
    %v3925 = vld [vmem:[#allocation10 + $0x380] sm:$0xff]
    %v3926 = vld [vmem:[#allocation10 + $0x388] sm:$0xff]
    %3930 = vrot.lane.b32.xlu0 %v3924, 97
    %v3931 = vpop.permute.xlu0 %3930
    %3932 = vrot.lane.b32.xlu0 %v3925, 97
    %v3933 = vpop.permute.xlu0 %3932
    %3934 = vrot.lane.b32.xlu0 %v3926, 97
    %v3935 = vpop.permute.xlu0 %3934
    %v3936 = vsel %vm1409, %v3931, %v3933
    %v3937 = vsel %vm1409, %v3933, %v3935
    %v3942 = vmul.f32 %v2357, %v3931
    %v3943 = vmul.f32 %v2358, %v3936
    %v3944 = vmul.f32 %v2359, %v3937
    %v3945 = vmul.f32 %v2369, %v3935
    %3950 = vrot.lane.b32.xlu0 %v3942, 31
    %v3951 = vpop.permute.xlu0 %3950
    %3952 = vrot.lane.b32.xlu0 %v3943, 31
    %v3953 = vpop.permute.xlu0 %3952
    %3954 = vrot.lane.b32.xlu0 %v3944, 31
    %v3955 = vpop.permute.xlu0 %3954
    %3956 = vrot.lane.b32.xlu0 %v3945, 31
    %v3957 = vpop.permute.xlu0 %3956
    %v3958 = vsel %vm905, %v3951, %v3953
    %v3959 = vsel %vm905, %v3953, %v3955
    %v3960 = vsel %vm905, %v3955, %v3957
    %v3964 = vadd.f32 %v3921, %v3958
    %v3965 = vadd.f32 %v3922, %v3959
    %v3966 = vadd.f32 %v3923, %v3960
    %v3967 = vld [vmem:[#allocation10 + $0x390] sm:$0xff]
    %v3968 = vld [vmem:[#allocation10 + $0x398] sm:$0xff]
    %v3969 = vld [vmem:[#allocation10 + $0x3a0] sm:$0xff]
    %3973 = vrot.lane.b32.xlu0 %v3967, 98
    %v3974 = vpop.permute.xlu0 %3973
    %3975 = vrot.lane.b32.xlu0 %v3968, 98
    %v3976 = vpop.permute.xlu0 %3975
    %3977 = vrot.lane.b32.xlu0 %v3969, 98
    %v3978 = vpop.permute.xlu0 %3977
    %v3979 = vsel %vm1160, %v3974, %v3976
    %v3980 = vsel %vm1160, %v3976, %v3978
    %v3985 = vmul.f32 %v2357, %v3974
    %v3986 = vmul.f32 %v2358, %v3979
    %v3987 = vmul.f32 %v2359, %v3980
    %v3988 = vmul.f32 %v2369, %v3978
    %3993 = vrot.lane.b32.xlu0 %v3985, 30
    %v3994 = vpop.permute.xlu0 %3993
    %3995 = vrot.lane.b32.xlu0 %v3986, 30
    %v3996 = vpop.permute.xlu0 %3995
    %3997 = vrot.lane.b32.xlu0 %v3987, 30
    %v3998 = vpop.permute.xlu0 %3997
    %3999 = vrot.lane.b32.xlu0 %v3988, 30
    %v4000 = vpop.permute.xlu0 %3999
    %v4001 = vsel %vm871, %v3994, %v3996
    %v4002 = vsel %vm871, %v3996, %v3998
    %v4003 = vsel %vm871, %v3998, %v4000
    %v4007 = vadd.f32 %v3964, %v4001
    %v4008 = vadd.f32 %v3965, %v4002
    %v4009 = vadd.f32 %v3966, %v4003
    %v4010 = vld [vmem:[#allocation10 + $0x3a8] sm:$0xff]
    %v4011 = vld [vmem:[#allocation10 + $0x3b0] sm:$0xff]
    %v4012 = vld [vmem:[#allocation10 + $0x3b8] sm:$0xff]
    %4016 = vrot.lane.b32.xlu0 %v4010, 99
    %v4017 = vpop.permute.xlu0 %4016
    %4018 = vrot.lane.b32.xlu0 %v4011, 99
    %v4019 = vpop.permute.xlu0 %4018
    %4020 = vrot.lane.b32.xlu0 %v4012, 99
    %v4021 = vpop.permute.xlu0 %4020
    %v4022 = vsel %vm1126, %v4017, %v4019
    %v4023 = vsel %vm1126, %v4019, %v4021
    %v4028 = vmul.f32 %v2357, %v4017
    %v4029 = vmul.f32 %v2358, %v4022
    %v4030 = vmul.f32 %v2359, %v4023
    %v4031 = vmul.f32 %v2369, %v4021
    %4036 = vrot.lane.b32.xlu0 %v4028, 29
    %v4037 = vpop.permute.xlu0 %4036
    %4038 = vrot.lane.b32.xlu0 %v4029, 29
    %v4039 = vpop.permute.xlu0 %4038
    %4040 = vrot.lane.b32.xlu0 %v4030, 29
    %v4041 = vpop.permute.xlu0 %4040
    %4042 = vrot.lane.b32.xlu0 %v4031, 29
    %v4043 = vpop.permute.xlu0 %4042
    %v4044 = vsel %vm837, %v4037, %v4039
    %v4045 = vsel %vm837, %v4039, %v4041
    %v4046 = vsel %vm837, %v4041, %v4043
    %v4050 = vadd.f32 %v4007, %v4044
    %v4051 = vadd.f32 %v4008, %v4045
    %v4052 = vadd.f32 %v4009, %v4046
    %v4053 = vld [vmem:[#allocation10 + $0x3c0] sm:$0xff]
    %v4054 = vld [vmem:[#allocation10 + $0x3c8] sm:$0xff]
    %v4055 = vld [vmem:[#allocation10 + $0x3d0] sm:$0xff]
    %4059 = vrot.lane.b32.xlu0 %v4053, 100
    %v4060 = vpop.permute.xlu0 %4059
    %4061 = vrot.lane.b32.xlu0 %v4054, 100
    %v4062 = vpop.permute.xlu0 %4061
    %4063 = vrot.lane.b32.xlu0 %v4055, 100
    %v4064 = vpop.permute.xlu0 %4063
    %v4065 = vsel %vm1092, %v4060, %v4062
    %v4066 = vsel %vm1092, %v4062, %v4064
    %v4071 = vmul.f32 %v2357, %v4060
    %v4072 = vmul.f32 %v2358, %v4065
    %v4073 = vmul.f32 %v2359, %v4066
    %v4074 = vmul.f32 %v2369, %v4064
    %4079 = vrot.lane.b32.xlu0 %v4071, 28
    %v4080 = vpop.permute.xlu0 %4079
    %4081 = vrot.lane.b32.xlu0 %v4072, 28
    %v4082 = vpop.permute.xlu0 %4081
    %4083 = vrot.lane.b32.xlu0 %v4073, 28
    %v4084 = vpop.permute.xlu0 %4083
    %4085 = vrot.lane.b32.xlu0 %v4074, 28
    %v4086 = vpop.permute.xlu0 %4085
    %v4087 = vsel %vm803, %v4080, %v4082
    %v4088 = vsel %vm803, %v4082, %v4084
    %v4089 = vsel %vm803, %v4084, %v4086
    %v4093 = vadd.f32 %v4050, %v4087
    %v4094 = vadd.f32 %v4051, %v4088
    %v4095 = vadd.f32 %v4052, %v4089
    %v4096 = vld [vmem:[#allocation10 + $0x3d8] sm:$0xff]
    %v4097 = vld [vmem:[#allocation10 + $0x3e0] sm:$0xff]
    %v4098 = vld [vmem:[#allocation10 + $0x3e8] sm:$0xff]
    %4102 = vrot.lane.b32.xlu0 %v4096, 101
    %v4103 = vpop.permute.xlu0 %4102
    %4104 = vrot.lane.b32.xlu0 %v4097, 101
    %v4105 = vpop.permute.xlu0 %4104
    %4106 = vrot.lane.b32.xlu0 %v4098, 101
    %v4107 = vpop.permute.xlu0 %4106
    %v4108 = vsel %vm1058, %v4103, %v4105
    %v4109 = vsel %vm1058, %v4105, %v4107
    %v4114 = vmul.f32 %v2357, %v4103
    %v4115 = vmul.f32 %v2358, %v4108
    %v4116 = vmul.f32 %v2359, %v4109
    %v4117 = vmul.f32 %v2369, %v4107
    %4122 = vrot.lane.b32.xlu0 %v4114, 27
    %v4123 = vpop.permute.xlu0 %4122
    %4124 = vrot.lane.b32.xlu0 %v4115, 27
    %v4125 = vpop.permute.xlu0 %4124
    %4126 = vrot.lane.b32.xlu0 %v4116, 27
    %v4127 = vpop.permute.xlu0 %4126
    %4128 = vrot.lane.b32.xlu0 %v4117, 27
    %v4129 = vpop.permute.xlu0 %4128
    %v4130 = vsel %vm769, %v4123, %v4125
    %v4131 = vsel %vm769, %v4125, %v4127
    %v4132 = vsel %vm769, %v4127, %v4129
    %v4136 = vadd.f32 %v4093, %v4130
    %v4137 = vadd.f32 %v4094, %v4131
    %v4138 = vadd.f32 %v4095, %v4132
    %v4139 = vld [vmem:[#allocation10 + $0x3f0] sm:$0xff]
    %v4140 = vld [vmem:[#allocation10 + $0x3f8] sm:$0xff]
    %v4141 = vld [vmem:[#allocation10 + $0x400] sm:$0xff]
    %4145 = vrot.lane.b32.xlu0 %v4139, 102
    %v4146 = vpop.permute.xlu0 %4145
    %4147 = vrot.lane.b32.xlu0 %v4140, 102
    %v4148 = vpop.permute.xlu0 %4147
    %4149 = vrot.lane.b32.xlu0 %v4141, 102
    %v4150 = vpop.permute.xlu0 %4149
    %v4151 = vsel %vm1024, %v4146, %v4148
    %v4152 = vsel %vm1024, %v4148, %v4150
    %v4157 = vmul.f32 %v2357, %v4146
    %v4158 = vmul.f32 %v2358, %v4151
    %v4159 = vmul.f32 %v2359, %v4152
    %v4160 = vmul.f32 %v2369, %v4150
    %4165 = vrot.lane.b32.xlu0 %v4157, 26
    %v4166 = vpop.permute.xlu0 %4165
    %4167 = vrot.lane.b32.xlu0 %v4158, 26
    %v4168 = vpop.permute.xlu0 %4167
    %4169 = vrot.lane.b32.xlu0 %v4159, 26
    %v4170 = vpop.permute.xlu0 %4169
    %4171 = vrot.lane.b32.xlu0 %v4160, 26
    %v4172 = vpop.permute.xlu0 %4171
    %v4173 = vsel %vm735, %v4166, %v4168
    %v4174 = vsel %vm735, %v4168, %v4170
    %v4175 = vsel %vm735, %v4170, %v4172
    %v4179 = vadd.f32 %v4136, %v4173
    %v4180 = vadd.f32 %v4137, %v4174
    %v4181 = vadd.f32 %v4138, %v4175
    %v4182 = vld [vmem:[#allocation10 + $0x408] sm:$0xff]
    %v4183 = vld [vmem:[#allocation10 + $0x410] sm:$0xff]
    %v4184 = vld [vmem:[#allocation10 + $0x418] sm:$0xff]
    %4188 = vrot.lane.b32.xlu0 %v4182, 103
    %v4189 = vpop.permute.xlu0 %4188
    %4190 = vrot.lane.b32.xlu0 %v4183, 103
    %v4191 = vpop.permute.xlu0 %4190
    %4192 = vrot.lane.b32.xlu0 %v4184, 103
    %v4193 = vpop.permute.xlu0 %4192
    %v4194 = vsel %vm990, %v4189, %v4191
    %v4195 = vsel %vm990, %v4191, %v4193
    %v4200 = vmul.f32 %v2357, %v4189
    %v4201 = vmul.f32 %v2358, %v4194
    %v4202 = vmul.f32 %v2359, %v4195
    %v4203 = vmul.f32 %v2369, %v4193
    %4208 = vrot.lane.b32.xlu0 %v4200, 25
    %v4209 = vpop.permute.xlu0 %4208
    %4210 = vrot.lane.b32.xlu0 %v4201, 25
    %v4211 = vpop.permute.xlu0 %4210
    %4212 = vrot.lane.b32.xlu0 %v4202, 25
    %v4213 = vpop.permute.xlu0 %4212
    %4214 = vrot.lane.b32.xlu0 %v4203, 25
    %v4215 = vpop.permute.xlu0 %4214
    %v4216 = vsel %vm715, %v4209, %v4211
    %v4217 = vsel %vm715, %v4211, %v4213
    %v4218 = vsel %vm715, %v4213, %v4215
    %v4222 = vadd.f32 %v4179, %v4216
    %v4223 = vadd.f32 %v4180, %v4217
    %v4224 = vadd.f32 %v4181, %v4218
    %v4225 = vld [vmem:[#allocation10 + $0x420] sm:$0xff]
    %v4226 = vld [vmem:[#allocation10 + $0x428] sm:$0xff]
    %v4227 = vld [vmem:[#allocation10 + $0x430] sm:$0xff]
    %4231 = vrot.lane.b32.xlu0 %v4225, 104
    %v4232 = vpop.permute.xlu0 %4231
    %4233 = vrot.lane.b32.xlu0 %v4226, 104
    %v4234 = vpop.permute.xlu0 %4233
    %4235 = vrot.lane.b32.xlu0 %v4227, 104
    %v4236 = vpop.permute.xlu0 %4235
    %v4237 = vsel %vm956, %v4232, %v4234
    %v4238 = vsel %vm956, %v4234, %v4236
    %v4243 = vmul.f32 %v2357, %v4232
    %v4244 = vmul.f32 %v2358, %v4237
    %v4245 = vmul.f32 %v2359, %v4238
    %v4246 = vmul.f32 %v2369, %v4236
    %4251 = vrot.lane.b32.xlu0 %v4243, 24
    %v4252 = vpop.permute.xlu0 %4251
    %4253 = vrot.lane.b32.xlu0 %v4244, 24
    %v4254 = vpop.permute.xlu0 %4253
    %4255 = vrot.lane.b32.xlu0 %v4245, 24
    %v4256 = vpop.permute.xlu0 %4255
    %4257 = vrot.lane.b32.xlu0 %v4246, 24
    %v4258 = vpop.permute.xlu0 %4257
    %v4259 = vsel %vm2728, %v4252, %v4254
    %v4260 = vsel %vm2728, %v4254, %v4256
    %v4261 = vsel %vm2728, %v4256, %v4258
    %v4265 = vadd.f32 %v4222, %v4259
    %v4266 = vadd.f32 %v4223, %v4260
    %v4267 = vadd.f32 %v4224, %v4261
    %v4268 = vld [vmem:[#allocation10 + $0x438] sm:$0xff]
    %v4269 = vld [vmem:[#allocation10 + $0x440] sm:$0xff]
    %v4270 = vld [vmem:[#allocation10 + $0x448] sm:$0xff]
    %4274 = vrot.lane.b32.xlu0 %v4268, 120
    %v4275 = vpop.permute.xlu0 %4274
    %4276 = vrot.lane.b32.xlu0 %v4269, 120
    %v4277 = vpop.permute.xlu0 %4276
    %4278 = vrot.lane.b32.xlu0 %v4270, 120
    %v4279 = vpop.permute.xlu0 %4278
    %v4280 = vsel %vm2706, %v4275, %v4277
    %v4281 = vsel %vm2706, %v4277, %v4279
    %v4286 = vmul.f32 %v2357, %v4275
    %v4287 = vmul.f32 %v2358, %v4280
    %v4288 = vmul.f32 %v2359, %v4281
    %v4289 = vmul.f32 %v2369, %v4279
    %4294 = vrot.lane.b32.xlu0 %v4286, 8
    %v4295 = vpop.permute.xlu0 %4294
    %4296 = vrot.lane.b32.xlu0 %v4287, 8
    %v4297 = vpop.permute.xlu0 %4296
    %4298 = vrot.lane.b32.xlu0 %v4288, 8
    %v4299 = vpop.permute.xlu0 %4298
    %4300 = vrot.lane.b32.xlu0 %v4289, 8
    %v4301 = vpop.permute.xlu0 %4300
    %v4302 = vsel %vm477, %v4295, %v4297
    %v4303 = vsel %vm477, %v4297, %v4299
    %v4304 = vsel %vm477, %v4299, %v4301
    %v4308 = vadd.f32 %v4265, %v4302
    %v4309 = vadd.f32 %v4266, %v4303
    %v4310 = vadd.f32 %v4267, %v4304
    %v4311 = vld [vmem:[#allocation10 + $0x450] sm:$0xff]
    %v4312 = vld [vmem:[#allocation10 + $0x458] sm:$0xff]
    %v4313 = vld [vmem:[#allocation10 + $0x460] sm:$0xff]
    %4317 = vrot.lane.b32.xlu0 %v4311, 121
    %v4318 = vpop.permute.xlu0 %4317
    %4319 = vrot.lane.b32.xlu0 %v4312, 121
    %v4320 = vpop.permute.xlu0 %4319
    %4321 = vrot.lane.b32.xlu0 %v4313, 121
    %v4322 = vpop.permute.xlu0 %4321
    %v4323 = vsel %vm1635, %v4318, %v4320
    %v4324 = vsel %vm1635, %v4320, %v4322
    %v4329 = vmul.f32 %v2357, %v4318
    %v4330 = vmul.f32 %v2358, %v4323
    %v4331 = vmul.f32 %v2359, %v4324
    %v4332 = vmul.f32 %v2369, %v4322
    %4337 = vrot.lane.b32.xlu0 %v4329, 7
    %v4338 = vpop.permute.xlu0 %4337
    %4339 = vrot.lane.b32.xlu0 %v4330, 7
    %v4340 = vpop.permute.xlu0 %4339
    %4341 = vrot.lane.b32.xlu0 %v4331, 7
    %v4342 = vpop.permute.xlu0 %4341
    %4343 = vrot.lane.b32.xlu0 %v4332, 7
    %v4344 = vpop.permute.xlu0 %4343
    %v4345 = vsel %vm1912, %v4338, %v4340
    %v4346 = vsel %vm1912, %v4340, %v4342
    %v4347 = vsel %vm1912, %v4342, %v4344
    %v4351 = vadd.f32 %v4308, %v4345
    %v4352 = vadd.f32 %v4309, %v4346
    %v4353 = vadd.f32 %v4310, %v4347
    %v4354 = vld [vmem:[#allocation10 + $0x468] sm:$0xff]
    %v4355 = vld [vmem:[#allocation10 + $0x470] sm:$0xff]
    %v4356 = vld [vmem:[#allocation10 + $0x478] sm:$0xff]
    %4360 = vrot.lane.b32.xlu0 %v4354, 122
    %v4361 = vpop.permute.xlu0 %4360
    %4362 = vrot.lane.b32.xlu0 %v4355, 122
    %v4363 = vpop.permute.xlu0 %4362
    %4364 = vrot.lane.b32.xlu0 %v4356, 122
    %v4365 = vpop.permute.xlu0 %4364
    %v4366 = vsel %vm922, %v4361, %v4363
    %v4367 = vsel %vm922, %v4363, %v4365
    %v4372 = vmul.f32 %v2357, %v4361
    %v4373 = vmul.f32 %v2358, %v4366
    %v4374 = vmul.f32 %v2359, %v4367
    %v4375 = vmul.f32 %v2369, %v4365
    %4380 = vrot.lane.b32.xlu0 %v4372, 6
    %v4381 = vpop.permute.xlu0 %4380
    %4382 = vrot.lane.b32.xlu0 %v4373, 6
    %v4383 = vpop.permute.xlu0 %4382
    %4384 = vrot.lane.b32.xlu0 %v4374, 6
    %v4385 = vpop.permute.xlu0 %4384
    %4386 = vrot.lane.b32.xlu0 %v4375, 6
    %v4387 = vpop.permute.xlu0 %4386
    %v4388 = vsel %vm1946, %v4381, %v4383
    %v4389 = vsel %vm1946, %v4383, %v4385
    %v4390 = vsel %vm1946, %v4385, %v4387
    %v4394 = vadd.f32 %v4351, %v4388
    %v4395 = vadd.f32 %v4352, %v4389
    %v4396 = vadd.f32 %v4353, %v4390
    %v4397 = vld [vmem:[#allocation10 + $0x480] sm:$0xff]
    %v4398 = vld [vmem:[#allocation10 + $0x488] sm:$0xff]
    %v4399 = vld [vmem:[#allocation10 + $0x490] sm:$0xff]
    %4403 = vrot.lane.b32.xlu0 %v4397, 123
    %v4404 = vpop.permute.xlu0 %4403
    %4405 = vrot.lane.b32.xlu0 %v4398, 123
    %v4406 = vpop.permute.xlu0 %4405
    %4407 = vrot.lane.b32.xlu0 %v4399, 123
    %v4408 = vpop.permute.xlu0 %4407
    %v4409 = vsel %vm888, %v4404, %v4406
    %v4410 = vsel %vm888, %v4406, %v4408
    %v4415 = vmul.f32 %v2357, %v4404
    %v4416 = vmul.f32 %v2358, %v4409
    %v4417 = vmul.f32 %v2359, %v4410
    %v4418 = vmul.f32 %v2369, %v4408
    %4423 = vrot.lane.b32.xlu0 %v4415, 5
    %v4424 = vpop.permute.xlu0 %4423
    %4425 = vrot.lane.b32.xlu0 %v4416, 5
    %v4426 = vpop.permute.xlu0 %4425
    %4427 = vrot.lane.b32.xlu0 %v4417, 5
    %v4428 = vpop.permute.xlu0 %4427
    %4429 = vrot.lane.b32.xlu0 %v4418, 5
    %v4430 = vpop.permute.xlu0 %4429
    %v4431 = vsel %vm1980, %v4424, %v4426
    %v4432 = vsel %vm1980, %v4426, %v4428
    %v4433 = vsel %vm1980, %v4428, %v4430
    %v4437 = vadd.f32 %v4394, %v4431
    %v4438 = vadd.f32 %v4395, %v4432
    %v4439 = vadd.f32 %v4396, %v4433
    %v4440 = vld [vmem:[#allocation10 + $0x498] sm:$0xff]
    %v4441 = vld [vmem:[#allocation10 + $0x4a0] sm:$0xff]
    %v4442 = vld [vmem:[#allocation10 + $0x4a8] sm:$0xff]
    %4446 = vrot.lane.b32.xlu0 %v4440, 124
    %v4447 = vpop.permute.xlu0 %4446
    %4448 = vrot.lane.b32.xlu0 %v4441, 124
    %v4449 = vpop.permute.xlu0 %4448
    %4450 = vrot.lane.b32.xlu0 %v4442, 124
    %v4451 = vpop.permute.xlu0 %4450
    %v4452 = vsel %vm854, %v4447, %v4449
    %v4453 = vsel %vm854, %v4449, %v4451
    %v4458 = vmul.f32 %v2357, %v4447
    %v4459 = vmul.f32 %v2358, %v4452
    %v4460 = vmul.f32 %v2359, %v4453
    %v4461 = vmul.f32 %v2369, %v4451
    %4466 = vrot.lane.b32.xlu0 %v4458, 4
    %v4467 = vpop.permute.xlu0 %4466
    %4468 = vrot.lane.b32.xlu0 %v4459, 4
    %v4469 = vpop.permute.xlu0 %4468
    %4470 = vrot.lane.b32.xlu0 %v4460, 4
    %v4471 = vpop.permute.xlu0 %4470
    %4472 = vrot.lane.b32.xlu0 %v4461, 4
    %v4473 = vpop.permute.xlu0 %4472
    %v4474 = vsel %vm2014, %v4467, %v4469
    %v4475 = vsel %vm2014, %v4469, %v4471
    %v4476 = vsel %vm2014, %v4471, %v4473
    %v4480 = vadd.f32 %v4437, %v4474
    %v4481 = vadd.f32 %v4438, %v4475
    %v4482 = vadd.f32 %v4439, %v4476
    %v4483 = vld [vmem:[#allocation10 + $0x4b0] sm:$0xff]
    %v4484 = vld [vmem:[#allocation10 + $0x4b8] sm:$0xff]
    %v4485 = vld [vmem:[#allocation10 + $0x4c0] sm:$0xff]
    %4489 = vrot.lane.b32.xlu0 %v4483, 125
    %v4490 = vpop.permute.xlu0 %4489
    %4491 = vrot.lane.b32.xlu0 %v4484, 125
    %v4492 = vpop.permute.xlu0 %4491
    %4493 = vrot.lane.b32.xlu0 %v4485, 125
    %v4494 = vpop.permute.xlu0 %4493
    %v4495 = vsel %vm820, %v4490, %v4492
    %v4496 = vsel %vm820, %v4492, %v4494
    %v4501 = vmul.f32 %v2357, %v4490
    %v4502 = vmul.f32 %v2358, %v4495
    %v4503 = vmul.f32 %v2359, %v4496
    %v4504 = vmul.f32 %v2369, %v4494
    %4509 = vrot.lane.b32.xlu0 %v4501, 3
    %v4510 = vpop.permute.xlu0 %4509
    %4511 = vrot.lane.b32.xlu0 %v4502, 3
    %v4512 = vpop.permute.xlu0 %4511
    %4513 = vrot.lane.b32.xlu0 %v4503, 3
    %v4514 = vpop.permute.xlu0 %4513
    %4515 = vrot.lane.b32.xlu0 %v4504, 3
    %v4516 = vpop.permute.xlu0 %4515
    %v4517 = vsel %vm2048, %v4510, %v4512
    %v4518 = vsel %vm2048, %v4512, %v4514
    %v4519 = vsel %vm2048, %v4514, %v4516
    %v4523 = vadd.f32 %v4480, %v4517
    %v4524 = vadd.f32 %v4481, %v4518
    %v4525 = vadd.f32 %v4482, %v4519
    %v4526 = vld [vmem:[#allocation10 + $0x4c8] sm:$0xff]
    %v4527 = vld [vmem:[#allocation10 + $0x4d0] sm:$0xff]
    %v4528 = vld [vmem:[#allocation10 + $0x4d8] sm:$0xff]
    %4532 = vrot.lane.b32.xlu0 %v4526, 126
    %v4533 = vpop.permute.xlu0 %4532
    %4534 = vrot.lane.b32.xlu0 %v4527, 126
    %v4535 = vpop.permute.xlu0 %4534
    %4536 = vrot.lane.b32.xlu0 %v4528, 126
    %v4537 = vpop.permute.xlu0 %4536
    %v4538 = vsel %vm786, %v4533, %v4535
    %v4539 = vsel %vm786, %v4535, %v4537
    %v4544 = vmul.f32 %v2357, %v4533
    %v4545 = vmul.f32 %v2358, %v4538
    %v4546 = vmul.f32 %v2359, %v4539
    %v4547 = vmul.f32 %v2369, %v4537
    %4552 = vrot.lane.b32.xlu0 %v4544, 2
    %v4553 = vpop.permute.xlu0 %4552
    %4554 = vrot.lane.b32.xlu0 %v4545, 2
    %v4555 = vpop.permute.xlu0 %4554
    %4556 = vrot.lane.b32.xlu0 %v4546, 2
    %v4557 = vpop.permute.xlu0 %4556
    %4558 = vrot.lane.b32.xlu0 %v4547, 2
    %v4559 = vpop.permute.xlu0 %4558
    %v4560 = vsel %vm2082, %v4553, %v4555
    %v4561 = vsel %vm2082, %v4555, %v4557
    %v4562 = vsel %vm2082, %v4557, %v4559
    %v4566 = vadd.f32 %v4523, %v4560
    %v4567 = vadd.f32 %v4524, %v4561
    %v4568 = vadd.f32 %v4525, %v4562
    %v4569 = vld [vmem:[#allocation10 + $0x4e0] sm:$0xff]
    %v4570 = vld [vmem:[#allocation10 + $0x4e8] sm:$0xff]
    %v4571 = vld [vmem:[#allocation10 + $0x4f0] sm:$0xff]
    %4575 = vrot.lane.b32.xlu0 %v4569, 127
    %v4576 = vpop.permute.xlu0 %4575
    %4577 = vrot.lane.b32.xlu0 %v4570, 127
    %v4578 = vpop.permute.xlu0 %4577
    %4579 = vrot.lane.b32.xlu0 %v4571, 127
    %v4580 = vpop.permute.xlu0 %4579
    %v4581 = vsel %vm752, %v4576, %v4578
    %v4582 = vsel %vm752, %v4578, %v4580
    %v4587 = vmul.f32 %v2357, %v4576
    %v4588 = vmul.f32 %v2358, %v4581
    %v4589 = vmul.f32 %v2359, %v4582
    %v4590 = vmul.f32 %v2369, %v4580
    %4595 = vrot.lane.b32.xlu0 %v4587, 1
    %v4596 = vpop.permute.xlu0 %4595
    %4597 = vrot.lane.b32.xlu0 %v4588, 1
    %v4598 = vpop.permute.xlu0 %4597
    %4599 = vrot.lane.b32.xlu0 %v4589, 1
    %v4600 = vpop.permute.xlu0 %4599
    %4601 = vrot.lane.b32.xlu0 %v4590, 1
    %v4602 = vpop.permute.xlu0 %4601
    %v4603 = vsel %vm2382, %v4596, %v4598
    %v4604 = vsel %vm2382, %v4598, %v4600
    %v4605 = vsel %vm2382, %v4600, %v4602
    %v4609 = vadd.f32 %v4566, %v4603
    %v4610 = vadd.f32 %v4567, %v4604
    %v4611 = vadd.f32 %v4568, %v4605
    %v4612 = vld [vmem:[#allocation10 + $0x4f8] sm:$0xff]
    %v4613 = vld [vmem:[#allocation10 + $0x500] sm:$0xff]
    %v4614 = vld [vmem:[#allocation10 + $0x508] sm:$0xff]
    %v4615 = vmul.f32 %v2358, %v4612
    %v4616 = vmul.f32 %v2359, %v4613
    %v4617 = vmul.f32 %v2369, %v4614
    %v4618 = vadd.f32 %v4609, %v4615
    %v4619 = vadd.f32 %v4610, %v4616
    %v4620 = vadd.f32 %v4611, %v4617
    %v4621 = vld [vmem:[#allocation3 + $0x8] sm:$0xff]
    %v4622 = vld [vmem:[#allocation3 + $0x10] sm:$0xff]
    %v4623 = vld [vmem:[#allocation3 + $0x18] sm:$0xff]
    %v4624 = vld [vmem:[#allocation3 + $0x20] sm:$0xff]
    %v4625 = vld [vmem:[#allocation10 + $0x510] sm:$0xff]
    %v4626 = vld [vmem:[#allocation10 + $0x518] sm:$0xff]
    %v4627 = vld [vmem:[#allocation10 + $0x520] sm:$0xff]
    %4631 = vrot.lane.b32.xlu0 %v4625, 16
    %v4632 = vpop.permute.xlu0 %4631
    %4633 = vrot.lane.b32.xlu0 %v4626, 16
    %v4634 = vpop.permute.xlu0 %4633
    %4635 = vrot.lane.b32.xlu0 %v4627, 16
    %v4636 = vpop.permute.xlu0 %4635
    %vm4637 = vcmask 130048
    %v4638 = vsel %vm4637, %v4632, %v4634
    %v4639 = vsel %vm4637, %v4634, %v4636
    %v4644 = vmul.f32 %v4621, %v4632
    %v4645 = vmul.f32 %v4622, %v4638
    %v4646 = vmul.f32 %v4623, %v4639
    %v4647 = vmul.f32 %v4624, %v4636
    %4652 = vrot.lane.b32.xlu0 %v4644, 112
    %v4653 = vpop.permute.xlu0 %4652
    %4654 = vrot.lane.b32.xlu0 %v4645, 112
    %v4655 = vpop.permute.xlu0 %4654
    %4656 = vrot.lane.b32.xlu0 %v4646, 112
    %v4657 = vpop.permute.xlu0 %4656
    %4658 = vrot.lane.b32.xlu0 %v4647, 112
    %v4659 = vpop.permute.xlu0 %4658
    %v4660 = vsel %vm2117, %v4653, %v4655
    %v4661 = vsel %vm2117, %v4655, %v4657
    %v4662 = vsel %vm2117, %v4657, %v4659
    %v4666 = vadd.f32 %v4618, %v4660
    %v4667 = vadd.f32 %v4619, %v4661
    %v4668 = vadd.f32 %v4620, %v4662
    %v4669 = vld [vmem:[#allocation10 + $0x528] sm:$0xff]
    %v4670 = vld [vmem:[#allocation10 + $0x530] sm:$0xff]
    %v4671 = vld [vmem:[#allocation10 + $0x538] sm:$0xff]
    %4675 = vrot.lane.b32.xlu0 %v4669, 17
    %v4676 = vpop.permute.xlu0 %4675
    %4677 = vrot.lane.b32.xlu0 %v4670, 17
    %v4678 = vpop.permute.xlu0 %4677
    %4679 = vrot.lane.b32.xlu0 %v4671, 17
    %v4680 = vpop.permute.xlu0 %4679
    %v4681 = vsel %vm1863, %v4676, %v4678
    %v4682 = vsel %vm1863, %v4678, %v4680
    %v4687 = vmul.f32 %v4621, %v4676
    %v4688 = vmul.f32 %v4622, %v4681
    %v4689 = vmul.f32 %v4623, %v4682
    %v4690 = vmul.f32 %v4624, %v4680
    %4695 = vrot.lane.b32.xlu0 %v4687, 111
    %v4696 = vpop.permute.xlu0 %4695
    %4697 = vrot.lane.b32.xlu0 %v4688, 111
    %v4698 = vpop.permute.xlu0 %4697
    %4699 = vrot.lane.b32.xlu0 %v4689, 111
    %v4700 = vpop.permute.xlu0 %4699
    %4701 = vrot.lane.b32.xlu0 %v4690, 111
    %v4702 = vpop.permute.xlu0 %4701
    %v4703 = vsel %vm2151, %v4696, %v4698
    %v4704 = vsel %vm2151, %v4698, %v4700
    %v4705 = vsel %vm2151, %v4700, %v4702
    %v4709 = vadd.f32 %v4666, %v4703
    %v4710 = vadd.f32 %v4667, %v4704
    %v4711 = vadd.f32 %v4668, %v4705
    %v4712 = vld [vmem:[#allocation10 + $0x540] sm:$0xff]
    %v4713 = vld [vmem:[#allocation10 + $0x548] sm:$0xff]
    %v4714 = vld [vmem:[#allocation10 + $0x550] sm:$0xff]
    %4718 = vrot.lane.b32.xlu0 %v4712, 18
    %v4719 = vpop.permute.xlu0 %4718
    %4720 = vrot.lane.b32.xlu0 %v4713, 18
    %v4721 = vpop.permute.xlu0 %4720
    %4722 = vrot.lane.b32.xlu0 %v4714, 18
    %v4723 = vpop.permute.xlu0 %4722
    %v4724 = vsel %vm1896, %v4719, %v4721
    %v4725 = vsel %vm1896, %v4721, %v4723
    %v4730 = vmul.f32 %v4621, %v4719
    %v4731 = vmul.f32 %v4622, %v4724
    %v4732 = vmul.f32 %v4623, %v4725
    %v4733 = vmul.f32 %v4624, %v4723
    %4738 = vrot.lane.b32.xlu0 %v4730, 110
    %v4739 = vpop.permute.xlu0 %4738
    %4740 = vrot.lane.b32.xlu0 %v4731, 110
    %v4741 = vpop.permute.xlu0 %4740
    %4742 = vrot.lane.b32.xlu0 %v4732, 110
    %v4743 = vpop.permute.xlu0 %4742
    %4744 = vrot.lane.b32.xlu0 %v4733, 110
    %v4745 = vpop.permute.xlu0 %4744
    %v4746 = vsel %vm2185, %v4739, %v4741
    %v4747 = vsel %vm2185, %v4741, %v4743
    %v4748 = vsel %vm2185, %v4743, %v4745
    %v4752 = vadd.f32 %v4709, %v4746
    %v4753 = vadd.f32 %v4710, %v4747
    %v4754 = vadd.f32 %v4711, %v4748
    %v4755 = vld [vmem:[#allocation10 + $0x558] sm:$0xff]
    %v4756 = vld [vmem:[#allocation10 + $0x560] sm:$0xff]
    %v4757 = vld [vmem:[#allocation10 + $0x568] sm:$0xff]
    %4761 = vrot.lane.b32.xlu0 %v4755, 19
    %v4762 = vpop.permute.xlu0 %4761
    %4763 = vrot.lane.b32.xlu0 %v4756, 19
    %v4764 = vpop.permute.xlu0 %4763
    %4765 = vrot.lane.b32.xlu0 %v4757, 19
    %v4766 = vpop.permute.xlu0 %4765
    %v4767 = vsel %vm1930, %v4762, %v4764
    %v4768 = vsel %vm1930, %v4764, %v4766
    %v4773 = vmul.f32 %v4621, %v4762
    %v4774 = vmul.f32 %v4622, %v4767
    %v4775 = vmul.f32 %v4623, %v4768
    %v4776 = vmul.f32 %v4624, %v4766
    %4781 = vrot.lane.b32.xlu0 %v4773, 109
    %v4782 = vpop.permute.xlu0 %4781
    %4783 = vrot.lane.b32.xlu0 %v4774, 109
    %v4784 = vpop.permute.xlu0 %4783
    %4785 = vrot.lane.b32.xlu0 %v4775, 109
    %v4786 = vpop.permute.xlu0 %4785
    %4787 = vrot.lane.b32.xlu0 %v4776, 109
    %v4788 = vpop.permute.xlu0 %4787
    %v4789 = vsel %vm2219, %v4782, %v4784
    %v4790 = vsel %vm2219, %v4784, %v4786
    %v4791 = vsel %vm2219, %v4786, %v4788
    %v4795 = vadd.f32 %v4752, %v4789
    %v4796 = vadd.f32 %v4753, %v4790
    %v4797 = vadd.f32 %v4754, %v4791
    %v4798 = vld [vmem:[#allocation10 + $0x570] sm:$0xff]
    %v4799 = vld [vmem:[#allocation10 + $0x578] sm:$0xff]
    %v4800 = vld [vmem:[#allocation10 + $0x580] sm:$0xff]
    %4804 = vrot.lane.b32.xlu0 %v4798, 20
    %v4805 = vpop.permute.xlu0 %4804
    %4806 = vrot.lane.b32.xlu0 %v4799, 20
    %v4807 = vpop.permute.xlu0 %4806
    %4808 = vrot.lane.b32.xlu0 %v4800, 20
    %v4809 = vpop.permute.xlu0 %4808
    %v4810 = vsel %vm1964, %v4805, %v4807
    %v4811 = vsel %vm1964, %v4807, %v4809
    %v4816 = vmul.f32 %v4621, %v4805
    %v4817 = vmul.f32 %v4622, %v4810
    %v4818 = vmul.f32 %v4623, %v4811
    %v4819 = vmul.f32 %v4624, %v4809
    %4824 = vrot.lane.b32.xlu0 %v4816, 108
    %v4825 = vpop.permute.xlu0 %4824
    %4826 = vrot.lane.b32.xlu0 %v4817, 108
    %v4827 = vpop.permute.xlu0 %4826
    %4828 = vrot.lane.b32.xlu0 %v4818, 108
    %v4829 = vpop.permute.xlu0 %4828
    %4830 = vrot.lane.b32.xlu0 %v4819, 108
    %v4831 = vpop.permute.xlu0 %4830
    %v4832 = vsel %vm2253, %v4825, %v4827
    %v4833 = vsel %vm2253, %v4827, %v4829
    %v4834 = vsel %vm2253, %v4829, %v4831
    %v4838 = vadd.f32 %v4795, %v4832
    %v4839 = vadd.f32 %v4796, %v4833
    %v4840 = vadd.f32 %v4797, %v4834
    %v4841 = vld [vmem:[#allocation10 + $0x588] sm:$0xff]
    %v4842 = vld [vmem:[#allocation10 + $0x590] sm:$0xff]
    %v4843 = vld [vmem:[#allocation10 + $0x598] sm:$0xff]
    %4847 = vrot.lane.b32.xlu0 %v4841, 21
    %v4848 = vpop.permute.xlu0 %4847
    %4849 = vrot.lane.b32.xlu0 %v4842, 21
    %v4850 = vpop.permute.xlu0 %4849
    %4851 = vrot.lane.b32.xlu0 %v4843, 21
    %v4852 = vpop.permute.xlu0 %4851
    %v4853 = vsel %vm1998, %v4848, %v4850
    %v4854 = vsel %vm1998, %v4850, %v4852
    %v4859 = vmul.f32 %v4621, %v4848
    %v4860 = vmul.f32 %v4622, %v4853
    %v4861 = vmul.f32 %v4623, %v4854
    %v4862 = vmul.f32 %v4624, %v4852
    %4867 = vrot.lane.b32.xlu0 %v4859, 107
    %v4868 = vpop.permute.xlu0 %4867
    %4869 = vrot.lane.b32.xlu0 %v4860, 107
    %v4870 = vpop.permute.xlu0 %4869
    %4871 = vrot.lane.b32.xlu0 %v4861, 107
    %v4872 = vpop.permute.xlu0 %4871
    %4873 = vrot.lane.b32.xlu0 %v4862, 107
    %v4874 = vpop.permute.xlu0 %4873
    %v4875 = vsel %vm2287, %v4868, %v4870
    %v4876 = vsel %vm2287, %v4870, %v4872
    %v4877 = vsel %vm2287, %v4872, %v4874
    %v4881 = vadd.f32 %v4838, %v4875
    %v4882 = vadd.f32 %v4839, %v4876
    %v4883 = vadd.f32 %v4840, %v4877
    %v4884 = vld [vmem:[#allocation10 + $0x5a0] sm:$0xff]
    %v4885 = vld [vmem:[#allocation10 + $0x5a8] sm:$0xff]
    %v4886 = vld [vmem:[#allocation10 + $0x5b0] sm:$0xff]
    %4890 = vrot.lane.b32.xlu0 %v4884, 22
    %v4891 = vpop.permute.xlu0 %4890
    %4892 = vrot.lane.b32.xlu0 %v4885, 22
    %v4893 = vpop.permute.xlu0 %4892
    %4894 = vrot.lane.b32.xlu0 %v4886, 22
    %v4895 = vpop.permute.xlu0 %4894
    %v4896 = vsel %vm2032, %v4891, %v4893
    %v4897 = vsel %vm2032, %v4893, %v4895
    %v4902 = vmul.f32 %v4621, %v4891
    %v4903 = vmul.f32 %v4622, %v4896
    %v4904 = vmul.f32 %v4623, %v4897
    %v4905 = vmul.f32 %v4624, %v4895
    %4910 = vrot.lane.b32.xlu0 %v4902, 106
    %v4911 = vpop.permute.xlu0 %4910
    %4912 = vrot.lane.b32.xlu0 %v4903, 106
    %v4913 = vpop.permute.xlu0 %4912
    %4914 = vrot.lane.b32.xlu0 %v4904, 106
    %v4915 = vpop.permute.xlu0 %4914
    %4916 = vrot.lane.b32.xlu0 %v4905, 106
    %v4917 = vpop.permute.xlu0 %4916
    %v4918 = vsel %vm2321, %v4911, %v4913
    %v4919 = vsel %vm2321, %v4913, %v4915
    %v4920 = vsel %vm2321, %v4915, %v4917
    %v4924 = vadd.f32 %v4881, %v4918
    %v4925 = vadd.f32 %v4882, %v4919
    %v4926 = vadd.f32 %v4883, %v4920
    %v4927 = vld [vmem:[#allocation10 + $0x5b8] sm:$0xff]
    %v4928 = vld [vmem:[#allocation10 + $0x5c0] sm:$0xff]
    %v4929 = vld [vmem:[#allocation10 + $0x5c8] sm:$0xff]
    %4933 = vrot.lane.b32.xlu0 %v4927, 23
    %v4934 = vpop.permute.xlu0 %4933
    %4935 = vrot.lane.b32.xlu0 %v4928, 23
    %v4936 = vpop.permute.xlu0 %4935
    %4937 = vrot.lane.b32.xlu0 %v4929, 23
    %v4938 = vpop.permute.xlu0 %4937
    %v4939 = vsel %vm2066, %v4934, %v4936
    %v4940 = vsel %vm2066, %v4936, %v4938
    %v4945 = vmul.f32 %v4621, %v4934
    %v4946 = vmul.f32 %v4622, %v4939
    %v4947 = vmul.f32 %v4623, %v4940
    %v4948 = vmul.f32 %v4624, %v4938
    %4953 = vrot.lane.b32.xlu0 %v4945, 105
    %v4954 = vpop.permute.xlu0 %4953
    %4955 = vrot.lane.b32.xlu0 %v4946, 105
    %v4956 = vpop.permute.xlu0 %4955
    %4957 = vrot.lane.b32.xlu0 %v4947, 105
    %v4958 = vpop.permute.xlu0 %4957
    %4959 = vrot.lane.b32.xlu0 %v4948, 105
    %v4960 = vpop.permute.xlu0 %4959
    %vm4961 = vcmask 859136
    %v4962 = vsel %vm4961, %v4954, %v4956
    %v4963 = vsel %vm4961, %v4956, %v4958
    %v4964 = vsel %vm4961, %v4958, %v4960
    %v4968 = vadd.f32 %v4924, %v4962
    %v4969 = vadd.f32 %v4925, %v4963
    %v4970 = vadd.f32 %v4926, %v4964
    %v4971 = vld [vmem:[#allocation10 + $0x5d0] sm:$0xff]
    %v4972 = vld [vmem:[#allocation10 + $0x5d8] sm:$0xff]
    %v4973 = vld [vmem:[#allocation10 + $0x5e0] sm:$0xff]
    %4977 = vrot.lane.b32.xlu0 %v4971, 24
    %v4978 = vpop.permute.xlu0 %4977
    %4979 = vrot.lane.b32.xlu0 %v4972, 24
    %v4980 = vpop.permute.xlu0 %4979
    %4981 = vrot.lane.b32.xlu0 %v4973, 24
    %v4982 = vpop.permute.xlu0 %4981
    %v4983 = vsel %vm2728, %v4978, %v4980
    %v4984 = vsel %vm2728, %v4980, %v4982
    %v4989 = vmul.f32 %v4621, %v4978
    %v4990 = vmul.f32 %v4622, %v4983
    %v4991 = vmul.f32 %v4623, %v4984
    %v4992 = vmul.f32 %v4624, %v4982
    %4997 = vrot.lane.b32.xlu0 %v4989, 104
    %v4998 = vpop.permute.xlu0 %4997
    %4999 = vrot.lane.b32.xlu0 %v4990, 104
    %v5000 = vpop.permute.xlu0 %4999
    %5001 = vrot.lane.b32.xlu0 %v4991, 104
    %v5002 = vpop.permute.xlu0 %5001
    %5003 = vrot.lane.b32.xlu0 %v4992, 104
    %v5004 = vpop.permute.xlu0 %5003
    %v5005 = vsel %vm956, %v4998, %v5000
    %v5006 = vsel %vm956, %v5000, %v5002
    %v5007 = vsel %vm956, %v5002, %v5004
    %v5011 = vadd.f32 %v4968, %v5005
    %v5012 = vadd.f32 %v4969, %v5006
    %v5013 = vadd.f32 %v4970, %v5007
    %v5014 = vld [vmem:[#allocation10 + $0x5e8] sm:$0xff]
    %v5015 = vld [vmem:[#allocation10 + $0x5f0] sm:$0xff]
    %v5016 = vld [vmem:[#allocation10 + $0x5f8] sm:$0xff]
    %5020 = vrot.lane.b32.xlu0 %v5014, 40
    %v5021 = vpop.permute.xlu0 %5020
    %5022 = vrot.lane.b32.xlu0 %v5015, 40
    %v5023 = vpop.permute.xlu0 %5022
    %5024 = vrot.lane.b32.xlu0 %v5016, 40
    %v5025 = vpop.permute.xlu0 %5024
    %vm5026 = vcmask 326656
    %v5027 = vsel %vm5026, %v5021, %v5023
    %v5028 = vsel %vm5026, %v5023, %v5025
    %v5033 = vmul.f32 %v4621, %v5021
    %v5034 = vmul.f32 %v4622, %v5027
    %v5035 = vmul.f32 %v4623, %v5028
    %v5036 = vmul.f32 %v4624, %v5025
    %5041 = vrot.lane.b32.xlu0 %v5033, 88
    %v5042 = vpop.permute.xlu0 %5041
    %5043 = vrot.lane.b32.xlu0 %v5034, 88
    %v5044 = vpop.permute.xlu0 %5043
    %5045 = vrot.lane.b32.xlu0 %v5035, 88
    %v5046 = vpop.permute.xlu0 %5045
    %5047 = vrot.lane.b32.xlu0 %v5036, 88
    %v5048 = vpop.permute.xlu0 %5047
    %vm5049 = vcmask 719872
    %v5050 = vsel %vm5049, %v5042, %v5044
    %v5051 = vsel %vm5049, %v5044, %v5046
    %v5052 = vsel %vm5049, %v5046, %v5048
    %v5056 = vadd.f32 %v5011, %v5050
    %v5057 = vadd.f32 %v5012, %v5051
    %v5058 = vadd.f32 %v5013, %v5052
    %v5059 = vld [vmem:[#allocation10 + $0x600] sm:$0xff]
    %v5060 = vld [vmem:[#allocation10 + $0x608] sm:$0xff]
    %v5061 = vld [vmem:[#allocation10 + $0x610] sm:$0xff]
    %5065 = vrot.lane.b32.xlu0 %v5059, 41
    %v5066 = vpop.permute.xlu0 %5065
    %5067 = vrot.lane.b32.xlu0 %v5060, 41
    %v5068 = vpop.permute.xlu0 %5067
    %5069 = vrot.lane.b32.xlu0 %v5061, 41
    %v5070 = vpop.permute.xlu0 %5069
    %v5071 = vsel %vm2100, %v5066, %v5068
    %v5072 = vsel %vm2100, %v5068, %v5070
    %v5077 = vmul.f32 %v4621, %v5066
    %v5078 = vmul.f32 %v4622, %v5071
    %v5079 = vmul.f32 %v4623, %v5072
    %v5080 = vmul.f32 %v4624, %v5070
    %5085 = vrot.lane.b32.xlu0 %v5077, 87
    %v5086 = vpop.permute.xlu0 %5085
    %5087 = vrot.lane.b32.xlu0 %v5078, 87
    %v5088 = vpop.permute.xlu0 %5087
    %5089 = vrot.lane.b32.xlu0 %v5079, 87
    %v5090 = vpop.permute.xlu0 %5089
    %5091 = vrot.lane.b32.xlu0 %v5080, 87
    %v5092 = vpop.permute.xlu0 %5091
    %vm5093 = vcmask 711680
    %v5094 = vsel %vm5093, %v5086, %v5088
    %v5095 = vsel %vm5093, %v5088, %v5090
    %v5096 = vsel %vm5093, %v5090, %v5092
    %v5100 = vadd.f32 %v5056, %v5094
    %v5101 = vadd.f32 %v5057, %v5095
    %v5102 = vadd.f32 %v5058, %v5096
    %v5103 = vld [vmem:[#allocation10 + $0x618] sm:$0xff]
    %v5104 = vld [vmem:[#allocation10 + $0x620] sm:$0xff]
    %v5105 = vld [vmem:[#allocation10 + $0x628] sm:$0xff]
    %5109 = vrot.lane.b32.xlu0 %v5103, 42
    %v5110 = vpop.permute.xlu0 %5109
    %5111 = vrot.lane.b32.xlu0 %v5104, 42
    %v5112 = vpop.permute.xlu0 %5111
    %5113 = vrot.lane.b32.xlu0 %v5105, 42
    %v5114 = vpop.permute.xlu0 %5113
    %v5115 = vsel %vm2134, %v5110, %v5112
    %v5116 = vsel %vm2134, %v5112, %v5114
    %v5121 = vmul.f32 %v4621, %v5110
    %v5122 = vmul.f32 %v4622, %v5115
    %v5123 = vmul.f32 %v4623, %v5116
    %v5124 = vmul.f32 %v4624, %v5114
    %5129 = vrot.lane.b32.xlu0 %v5121, 86
    %v5130 = vpop.permute.xlu0 %5129
    %5131 = vrot.lane.b32.xlu0 %v5122, 86
    %v5132 = vpop.permute.xlu0 %5131
    %5133 = vrot.lane.b32.xlu0 %v5123, 86
    %v5134 = vpop.permute.xlu0 %5133
    %5135 = vrot.lane.b32.xlu0 %v5124, 86
    %v5136 = vpop.permute.xlu0 %5135
    %vm5137 = vcmask 703488
    %v5138 = vsel %vm5137, %v5130, %v5132
    %v5139 = vsel %vm5137, %v5132, %v5134
    %v5140 = vsel %vm5137, %v5134, %v5136
    %v5144 = vadd.f32 %v5100, %v5138
    %v5145 = vadd.f32 %v5101, %v5139
    %v5146 = vadd.f32 %v5102, %v5140
    %v5147 = vld [vmem:[#allocation10 + $0x630] sm:$0xff]
    %v5148 = vld [vmem:[#allocation10 + $0x638] sm:$0xff]
    %v5149 = vld [vmem:[#allocation10 + $0x640] sm:$0xff]
    %5153 = vrot.lane.b32.xlu0 %v5147, 43
    %v5154 = vpop.permute.xlu0 %5153
    %5155 = vrot.lane.b32.xlu0 %v5148, 43
    %v5156 = vpop.permute.xlu0 %5155
    %5157 = vrot.lane.b32.xlu0 %v5149, 43
    %v5158 = vpop.permute.xlu0 %5157
    %v5159 = vsel %vm2168, %v5154, %v5156
    %v5160 = vsel %vm2168, %v5156, %v5158
    %v5165 = vmul.f32 %v4621, %v5154
    %v5166 = vmul.f32 %v4622, %v5159
    %v5167 = vmul.f32 %v4623, %v5160
    %v5168 = vmul.f32 %v4624, %v5158
    %5173 = vrot.lane.b32.xlu0 %v5165, 85
    %v5174 = vpop.permute.xlu0 %5173
    %5175 = vrot.lane.b32.xlu0 %v5166, 85
    %v5176 = vpop.permute.xlu0 %5175
    %5177 = vrot.lane.b32.xlu0 %v5167, 85
    %v5178 = vpop.permute.xlu0 %5177
    %5179 = vrot.lane.b32.xlu0 %v5168, 85
    %v5180 = vpop.permute.xlu0 %5179
    %vm5181 = vcmask 695296
    %v5182 = vsel %vm5181, %v5174, %v5176
    %v5183 = vsel %vm5181, %v5176, %v5178
    %v5184 = vsel %vm5181, %v5178, %v5180
    %v5188 = vadd.f32 %v5144, %v5182
    %v5189 = vadd.f32 %v5145, %v5183
    %v5190 = vadd.f32 %v5146, %v5184
    %v5191 = vld [vmem:[#allocation10 + $0x648] sm:$0xff]
    %v5192 = vld [vmem:[#allocation10 + $0x650] sm:$0xff]
    %v5193 = vld [vmem:[#allocation10 + $0x658] sm:$0xff]
    %5197 = vrot.lane.b32.xlu0 %v5191, 44
    %v5198 = vpop.permute.xlu0 %5197
    %5199 = vrot.lane.b32.xlu0 %v5192, 44
    %v5200 = vpop.permute.xlu0 %5199
    %5201 = vrot.lane.b32.xlu0 %v5193, 44
    %v5202 = vpop.permute.xlu0 %5201
    %v5203 = vsel %vm2202, %v5198, %v5200
    %v5204 = vsel %vm2202, %v5200, %v5202
    %v5209 = vmul.f32 %v4621, %v5198
    %v5210 = vmul.f32 %v4622, %v5203
    %v5211 = vmul.f32 %v4623, %v5204
    %v5212 = vmul.f32 %v4624, %v5202
    %5217 = vrot.lane.b32.xlu0 %v5209, 84
    %v5218 = vpop.permute.xlu0 %5217
    %5219 = vrot.lane.b32.xlu0 %v5210, 84
    %v5220 = vpop.permute.xlu0 %5219
    %5221 = vrot.lane.b32.xlu0 %v5211, 84
    %v5222 = vpop.permute.xlu0 %5221
    %5223 = vrot.lane.b32.xlu0 %v5212, 84
    %v5224 = vpop.permute.xlu0 %5223
    %vm5225 = vcmask 687104
    %v5226 = vsel %vm5225, %v5218, %v5220
    %v5227 = vsel %vm5225, %v5220, %v5222
    %v5228 = vsel %vm5225, %v5222, %v5224
    %v5232 = vadd.f32 %v5188, %v5226
    %v5233 = vadd.f32 %v5189, %v5227
    %v5234 = vadd.f32 %v5190, %v5228
    %v5235 = vld [vmem:[#allocation10 + $0x660] sm:$0xff]
    %v5236 = vld [vmem:[#allocation10 + $0x668] sm:$0xff]
    %v5237 = vld [vmem:[#allocation10 + $0x670] sm:$0xff]
    %5241 = vrot.lane.b32.xlu0 %v5235, 45
    %v5242 = vpop.permute.xlu0 %5241
    %5243 = vrot.lane.b32.xlu0 %v5236, 45
    %v5244 = vpop.permute.xlu0 %5243
    %5245 = vrot.lane.b32.xlu0 %v5237, 45
    %v5246 = vpop.permute.xlu0 %5245
    %v5247 = vsel %vm2236, %v5242, %v5244
    %v5248 = vsel %vm2236, %v5244, %v5246
    %v5253 = vmul.f32 %v4621, %v5242
    %v5254 = vmul.f32 %v4622, %v5247
    %v5255 = vmul.f32 %v4623, %v5248
    %v5256 = vmul.f32 %v4624, %v5246
    %5261 = vrot.lane.b32.xlu0 %v5253, 83
    %v5262 = vpop.permute.xlu0 %5261
    %5263 = vrot.lane.b32.xlu0 %v5254, 83
    %v5264 = vpop.permute.xlu0 %5263
    %5265 = vrot.lane.b32.xlu0 %v5255, 83
    %v5266 = vpop.permute.xlu0 %5265
    %5267 = vrot.lane.b32.xlu0 %v5256, 83
    %v5268 = vpop.permute.xlu0 %5267
    %vm5269 = vcmask 678912
    %v5270 = vsel %vm5269, %v5262, %v5264
    %v5271 = vsel %vm5269, %v5264, %v5266
    %v5272 = vsel %vm5269, %v5266, %v5268
    %v5276 = vadd.f32 %v5232, %v5270
    %v5277 = vadd.f32 %v5233, %v5271
    %v5278 = vadd.f32 %v5234, %v5272
    %v5279 = vld [vmem:[#allocation10 + $0x678] sm:$0xff]
    %v5280 = vld [vmem:[#allocation10 + $0x680] sm:$0xff]
    %v5281 = vld [vmem:[#allocation10 + $0x688] sm:$0xff]
    %5285 = vrot.lane.b32.xlu0 %v5279, 46
    %v5286 = vpop.permute.xlu0 %5285
    %5287 = vrot.lane.b32.xlu0 %v5280, 46
    %v5288 = vpop.permute.xlu0 %5287
    %5289 = vrot.lane.b32.xlu0 %v5281, 46
    %v5290 = vpop.permute.xlu0 %5289
    %v5291 = vsel %vm2270, %v5286, %v5288
    %v5292 = vsel %vm2270, %v5288, %v5290
    %v5297 = vmul.f32 %v4621, %v5286
    %v5298 = vmul.f32 %v4622, %v5291
    %v5299 = vmul.f32 %v4623, %v5292
    %v5300 = vmul.f32 %v4624, %v5290
    %5305 = vrot.lane.b32.xlu0 %v5297, 82
    %v5306 = vpop.permute.xlu0 %5305
    %5307 = vrot.lane.b32.xlu0 %v5298, 82
    %v5308 = vpop.permute.xlu0 %5307
    %5309 = vrot.lane.b32.xlu0 %v5299, 82
    %v5310 = vpop.permute.xlu0 %5309
    %5311 = vrot.lane.b32.xlu0 %v5300, 82
    %v5312 = vpop.permute.xlu0 %5311
    %vm5313 = vcmask 670720
    %v5314 = vsel %vm5313, %v5306, %v5308
    %v5315 = vsel %vm5313, %v5308, %v5310
    %v5316 = vsel %vm5313, %v5310, %v5312
    %v5320 = vadd.f32 %v5276, %v5314
    %v5321 = vadd.f32 %v5277, %v5315
    %v5322 = vadd.f32 %v5278, %v5316
    %v5323 = vld [vmem:[#allocation10 + $0x690] sm:$0xff]
    %v5324 = vld [vmem:[#allocation10 + $0x698] sm:$0xff]
    %v5325 = vld [vmem:[#allocation10 + $0x6a0] sm:$0xff]
    %5329 = vrot.lane.b32.xlu0 %v5323, 47
    %v5330 = vpop.permute.xlu0 %5329
    %5331 = vrot.lane.b32.xlu0 %v5324, 47
    %v5332 = vpop.permute.xlu0 %5331
    %5333 = vrot.lane.b32.xlu0 %v5325, 47
    %v5334 = vpop.permute.xlu0 %5333
    %v5335 = vsel %vm2304, %v5330, %v5332
    %v5336 = vsel %vm2304, %v5332, %v5334
    %v5341 = vmul.f32 %v4621, %v5330
    %v5342 = vmul.f32 %v4622, %v5335
    %v5343 = vmul.f32 %v4623, %v5336
    %v5344 = vmul.f32 %v4624, %v5334
    %5349 = vrot.lane.b32.xlu0 %v5341, 81
    %v5350 = vpop.permute.xlu0 %5349
    %5351 = vrot.lane.b32.xlu0 %v5342, 81
    %v5352 = vpop.permute.xlu0 %5351
    %5353 = vrot.lane.b32.xlu0 %v5343, 81
    %v5354 = vpop.permute.xlu0 %5353
    %5355 = vrot.lane.b32.xlu0 %v5344, 81
    %v5356 = vpop.permute.xlu0 %5355
    %vm5357 = vcmask 662528
    %v5358 = vsel %vm5357, %v5350, %v5352
    %v5359 = vsel %vm5357, %v5352, %v5354
    %v5360 = vsel %vm5357, %v5354, %v5356
    %v5364 = vadd.f32 %v5320, %v5358
    %v5365 = vadd.f32 %v5321, %v5359
    %v5366 = vadd.f32 %v5322, %v5360
    %v5367 = vld [vmem:[#allocation10 + $0x6a8] sm:$0xff]
    %v5368 = vld [vmem:[#allocation10 + $0x6b0] sm:$0xff]
    %v5369 = vld [vmem:[#allocation10 + $0x6b8] sm:$0xff]
    %5373 = vrot.lane.b32.xlu0 %v5367, 48
    %v5374 = vpop.permute.xlu0 %5373
    %5375 = vrot.lane.b32.xlu0 %v5368, 48
    %v5376 = vpop.permute.xlu0 %5375
    %5377 = vrot.lane.b32.xlu0 %v5369, 48
    %v5378 = vpop.permute.xlu0 %5377
    %v5379 = vsel %vm3117, %v5374, %v5376
    %v5380 = vsel %vm3117, %v5376, %v5378
    %v5385 = vmul.f32 %v4621, %v5374
    %v5386 = vmul.f32 %v4622, %v5379
    %v5387 = vmul.f32 %v4623, %v5380
    %v5388 = vmul.f32 %v4624, %v5378
    %5393 = vrot.lane.b32.xlu0 %v5385, 80
    %v5394 = vpop.permute.xlu0 %5393
    %5395 = vrot.lane.b32.xlu0 %v5386, 80
    %v5396 = vpop.permute.xlu0 %5395
    %5397 = vrot.lane.b32.xlu0 %v5387, 80
    %v5398 = vpop.permute.xlu0 %5397
    %5399 = vrot.lane.b32.xlu0 %v5388, 80
    %v5400 = vpop.permute.xlu0 %5399
    %v5401 = vsel %vm1194, %v5394, %v5396
    %v5402 = vsel %vm1194, %v5396, %v5398
    %v5403 = vsel %vm1194, %v5398, %v5400
    %v5407 = vadd.f32 %v5364, %v5401
    %v5408 = vadd.f32 %v5365, %v5402
    %v5409 = vadd.f32 %v5366, %v5403
    %v5410 = vld [vmem:[#allocation10 + $0x6c0] sm:$0xff]
    %v5411 = vld [vmem:[#allocation10 + $0x6c8] sm:$0xff]
    %v5412 = vld [vmem:[#allocation10 + $0x6d0] sm:$0xff]
    %5416 = vrot.lane.b32.xlu0 %v5410, 64
    %v5417 = vpop.permute.xlu0 %5416
    %5418 = vrot.lane.b32.xlu0 %v5411, 64
    %v5419 = vpop.permute.xlu0 %5418
    %5420 = vrot.lane.b32.xlu0 %v5412, 64
    %v5421 = vpop.permute.xlu0 %5420
    %vm5422 = vcmask 523264
    %v5423 = vsel %vm5422, %v5417, %v5419
    %v5424 = vsel %vm5422, %v5419, %v5421
    %v5429 = vmul.f32 %v4621, %v5417
    %v5430 = vmul.f32 %v4622, %v5423
    %v5431 = vmul.f32 %v4623, %v5424
    %v5432 = vmul.f32 %v4624, %v5421
    %5437 = vrot.lane.b32.xlu0 %v5429, 64
    %v5438 = vpop.permute.xlu0 %5437
    %5439 = vrot.lane.b32.xlu0 %v5430, 64
    %v5440 = vpop.permute.xlu0 %5439
    %5441 = vrot.lane.b32.xlu0 %v5431, 64
    %v5442 = vpop.permute.xlu0 %5441
    %5443 = vrot.lane.b32.xlu0 %v5432, 64
    %v5444 = vpop.permute.xlu0 %5443
    %v5445 = vsel %vm5422, %v5438, %v5440
    %v5446 = vsel %vm5422, %v5440, %v5442
    %v5447 = vsel %vm5422, %v5442, %v5444
    %v5451 = vadd.f32 %v5407, %v5445
    %v5452 = vadd.f32 %v5408, %v5446
    %v5453 = vadd.f32 %v5409, %v5447
    %v5454 = vld [vmem:[#allocation10 + $0x6d8] sm:$0xff]
    %v5455 = vld [vmem:[#allocation10 + $0x6e0] sm:$0xff]
    %v5456 = vld [vmem:[#allocation10 + $0x6e8] sm:$0xff]
    %5460 = vrot.lane.b32.xlu0 %v5454, 65
    %v5461 = vpop.permute.xlu0 %5460
    %5462 = vrot.lane.b32.xlu0 %v5455, 65
    %v5463 = vpop.permute.xlu0 %5462
    %5464 = vrot.lane.b32.xlu0 %v5456, 65
    %v5465 = vpop.permute.xlu0 %5464
    %vm5466 = vcmask 531456
    %v5467 = vsel %vm5466, %v5461, %v5463
    %v5468 = vsel %vm5466, %v5463, %v5465
    %v5473 = vmul.f32 %v4621, %v5461
    %v5474 = vmul.f32 %v4622, %v5467
    %v5475 = vmul.f32 %v4623, %v5468
    %v5476 = vmul.f32 %v4624, %v5465
    %5481 = vrot.lane.b32.xlu0 %v5473, 63
    %v5482 = vpop.permute.xlu0 %5481
    %5483 = vrot.lane.b32.xlu0 %v5474, 63
    %v5484 = vpop.permute.xlu0 %5483
    %5485 = vrot.lane.b32.xlu0 %v5475, 63
    %v5486 = vpop.permute.xlu0 %5485
    %5487 = vrot.lane.b32.xlu0 %v5476, 63
    %v5488 = vpop.permute.xlu0 %5487
    %vm5489 = vcmask 515072
    %v5490 = vsel %vm5489, %v5482, %v5484
    %v5491 = vsel %vm5489, %v5484, %v5486
    %v5492 = vsel %vm5489, %v5486, %v5488
    %v5496 = vadd.f32 %v5451, %v5490
    %v5497 = vadd.f32 %v5452, %v5491
    %v5498 = vadd.f32 %v5453, %v5492
    %v5499 = vld [vmem:[#allocation10 + $0x6f0] sm:$0xff]
    %v5500 = vld [vmem:[#allocation10 + $0x6f8] sm:$0xff]
    %v5501 = vld [vmem:[#allocation10 + $0x700] sm:$0xff]
    %5505 = vrot.lane.b32.xlu0 %v5499, 66
    %v5506 = vpop.permute.xlu0 %5505
    %5507 = vrot.lane.b32.xlu0 %v5500, 66
    %v5508 = vpop.permute.xlu0 %5507
    %5509 = vrot.lane.b32.xlu0 %v5501, 66
    %v5510 = vpop.permute.xlu0 %5509
    %vm5511 = vcmask 539648
    %v5512 = vsel %vm5511, %v5506, %v5508
    %v5513 = vsel %vm5511, %v5508, %v5510
    %v5518 = vmul.f32 %v4621, %v5506
    %v5519 = vmul.f32 %v4622, %v5512
    %v5520 = vmul.f32 %v4623, %v5513
    %v5521 = vmul.f32 %v4624, %v5510
    %5526 = vrot.lane.b32.xlu0 %v5518, 62
    %v5527 = vpop.permute.xlu0 %5526
    %5528 = vrot.lane.b32.xlu0 %v5519, 62
    %v5529 = vpop.permute.xlu0 %5528
    %5530 = vrot.lane.b32.xlu0 %v5520, 62
    %v5531 = vpop.permute.xlu0 %5530
    %5532 = vrot.lane.b32.xlu0 %v5521, 62
    %v5533 = vpop.permute.xlu0 %5532
    %vm5534 = vcmask 506880
    %v5535 = vsel %vm5534, %v5527, %v5529
    %v5536 = vsel %vm5534, %v5529, %v5531
    %v5537 = vsel %vm5534, %v5531, %v5533
    %v5541 = vadd.f32 %v5496, %v5535
    %v5542 = vadd.f32 %v5497, %v5536
    %v5543 = vadd.f32 %v5498, %v5537
    %v5544 = vld [vmem:[#allocation10 + $0x708] sm:$0xff]
    %v5545 = vld [vmem:[#allocation10 + $0x710] sm:$0xff]
    %v5546 = vld [vmem:[#allocation10 + $0x718] sm:$0xff]
    %5550 = vrot.lane.b32.xlu0 %v5544, 67
    %v5551 = vpop.permute.xlu0 %5550
    %5552 = vrot.lane.b32.xlu0 %v5545, 67
    %v5553 = vpop.permute.xlu0 %5552
    %5554 = vrot.lane.b32.xlu0 %v5546, 67
    %v5555 = vpop.permute.xlu0 %5554
    %vm5556 = vcmask 547840
    %v5557 = vsel %vm5556, %v5551, %v5553
    %v5558 = vsel %vm5556, %v5553, %v5555
    %v5563 = vmul.f32 %v4621, %v5551
    %v5564 = vmul.f32 %v4622, %v5557
    %v5565 = vmul.f32 %v4623, %v5558
    %v5566 = vmul.f32 %v4624, %v5555
    %5571 = vrot.lane.b32.xlu0 %v5563, 61
    %v5572 = vpop.permute.xlu0 %5571
    %5573 = vrot.lane.b32.xlu0 %v5564, 61
    %v5574 = vpop.permute.xlu0 %5573
    %5575 = vrot.lane.b32.xlu0 %v5565, 61
    %v5576 = vpop.permute.xlu0 %5575
    %5577 = vrot.lane.b32.xlu0 %v5566, 61
    %v5578 = vpop.permute.xlu0 %5577
    %vm5579 = vcmask 498688
    %v5580 = vsel %vm5579, %v5572, %v5574
    %v5581 = vsel %vm5579, %v5574, %v5576
    %v5582 = vsel %vm5579, %v5576, %v5578
    %v5586 = vadd.f32 %v5541, %v5580
    %v5587 = vadd.f32 %v5542, %v5581
    %v5588 = vadd.f32 %v5543, %v5582
    %v5589 = vld [vmem:[#allocation10 + $0x720] sm:$0xff]
    %v5590 = vld [vmem:[#allocation10 + $0x728] sm:$0xff]
    %v5591 = vld [vmem:[#allocation10 + $0x730] sm:$0xff]
    %5595 = vrot.lane.b32.xlu0 %v5589, 68
    %v5596 = vpop.permute.xlu0 %5595
    %5597 = vrot.lane.b32.xlu0 %v5590, 68
    %v5598 = vpop.permute.xlu0 %5597
    %5599 = vrot.lane.b32.xlu0 %v5591, 68
    %v5600 = vpop.permute.xlu0 %5599
    %vm5601 = vcmask 556032
    %v5602 = vsel %vm5601, %v5596, %v5598
    %v5603 = vsel %vm5601, %v5598, %v5600
    %v5608 = vmul.f32 %v4621, %v5596
    %v5609 = vmul.f32 %v4622, %v5602
    %v5610 = vmul.f32 %v4623, %v5603
    %v5611 = vmul.f32 %v4624, %v5600
    %5616 = vrot.lane.b32.xlu0 %v5608, 60
    %v5617 = vpop.permute.xlu0 %5616
    %5618 = vrot.lane.b32.xlu0 %v5609, 60
    %v5619 = vpop.permute.xlu0 %5618
    %5620 = vrot.lane.b32.xlu0 %v5610, 60
    %v5621 = vpop.permute.xlu0 %5620
    %5622 = vrot.lane.b32.xlu0 %v5611, 60
    %v5623 = vpop.permute.xlu0 %5622
    %vm5624 = vcmask 490496
    %v5625 = vsel %vm5624, %v5617, %v5619
    %v5626 = vsel %vm5624, %v5619, %v5621
    %v5627 = vsel %vm5624, %v5621, %v5623
    %v5631 = vadd.f32 %v5586, %v5625
    %v5632 = vadd.f32 %v5587, %v5626
    %v5633 = vadd.f32 %v5588, %v5627
    %v5634 = vld [vmem:[#allocation10 + $0x738] sm:$0xff]
    %v5635 = vld [vmem:[#allocation10 + $0x740] sm:$0xff]
    %v5636 = vld [vmem:[#allocation10 + $0x748] sm:$0xff]
    %5640 = vrot.lane.b32.xlu0 %v5634, 69
    %v5641 = vpop.permute.xlu0 %5640
    %5642 = vrot.lane.b32.xlu0 %v5635, 69
    %v5643 = vpop.permute.xlu0 %5642
    %5644 = vrot.lane.b32.xlu0 %v5636, 69
    %v5645 = vpop.permute.xlu0 %5644
    %vm5646 = vcmask 564224
    %v5647 = vsel %vm5646, %v5641, %v5643
    %v5648 = vsel %vm5646, %v5643, %v5645
    %v5653 = vmul.f32 %v4621, %v5641
    %v5654 = vmul.f32 %v4622, %v5647
    %v5655 = vmul.f32 %v4623, %v5648
    %v5656 = vmul.f32 %v4624, %v5645
    %5661 = vrot.lane.b32.xlu0 %v5653, 59
    %v5662 = vpop.permute.xlu0 %5661
    %5663 = vrot.lane.b32.xlu0 %v5654, 59
    %v5664 = vpop.permute.xlu0 %5663
    %5665 = vrot.lane.b32.xlu0 %v5655, 59
    %v5666 = vpop.permute.xlu0 %5665
    %5667 = vrot.lane.b32.xlu0 %v5656, 59
    %v5668 = vpop.permute.xlu0 %5667
    %vm5669 = vcmask 482304
    %v5670 = vsel %vm5669, %v5662, %v5664
    %v5671 = vsel %vm5669, %v5664, %v5666
    %v5672 = vsel %vm5669, %v5666, %v5668
    %v5676 = vadd.f32 %v5631, %v5670
    %v5677 = vadd.f32 %v5632, %v5671
    %v5678 = vadd.f32 %v5633, %v5672
    %v5679 = vld [vmem:[#allocation10 + $0x750] sm:$0xff]
    %v5680 = vld [vmem:[#allocation10 + $0x758] sm:$0xff]
    %v5681 = vld [vmem:[#allocation10 + $0x760] sm:$0xff]
    %5685 = vrot.lane.b32.xlu0 %v5679, 70
    %v5686 = vpop.permute.xlu0 %5685
    %5687 = vrot.lane.b32.xlu0 %v5680, 70
    %v5688 = vpop.permute.xlu0 %5687
    %5689 = vrot.lane.b32.xlu0 %v5681, 70
    %v5690 = vpop.permute.xlu0 %5689
    %vm5691 = vcmask 572416
    %v5692 = vsel %vm5691, %v5686, %v5688
    %v5693 = vsel %vm5691, %v5688, %v5690
    %v5698 = vmul.f32 %v4621, %v5686
    %v5699 = vmul.f32 %v4622, %v5692
    %v5700 = vmul.f32 %v4623, %v5693
    %v5701 = vmul.f32 %v4624, %v5690
    %5706 = vrot.lane.b32.xlu0 %v5698, 58
    %v5707 = vpop.permute.xlu0 %5706
    %5708 = vrot.lane.b32.xlu0 %v5699, 58
    %v5709 = vpop.permute.xlu0 %5708
    %5710 = vrot.lane.b32.xlu0 %v5700, 58
    %v5711 = vpop.permute.xlu0 %5710
    %5712 = vrot.lane.b32.xlu0 %v5701, 58
    %v5713 = vpop.permute.xlu0 %5712
    %vm5714 = vcmask 474112
    %v5715 = vsel %vm5714, %v5707, %v5709
    %v5716 = vsel %vm5714, %v5709, %v5711
    %v5717 = vsel %vm5714, %v5711, %v5713
    %v5721 = vadd.f32 %v5676, %v5715
    %v5722 = vadd.f32 %v5677, %v5716
    %v5723 = vadd.f32 %v5678, %v5717
    %v5724 = vld [vmem:[#allocation10 + $0x768] sm:$0xff]
    %v5725 = vld [vmem:[#allocation10 + $0x770] sm:$0xff]
    %v5726 = vld [vmem:[#allocation10 + $0x778] sm:$0xff]
    %5730 = vrot.lane.b32.xlu0 %v5724, 71
    %v5731 = vpop.permute.xlu0 %5730
    %5732 = vrot.lane.b32.xlu0 %v5725, 71
    %v5733 = vpop.permute.xlu0 %5732
    %5734 = vrot.lane.b32.xlu0 %v5726, 71
    %v5735 = vpop.permute.xlu0 %5734
    %vm5736 = vcmask 580608
    %v5737 = vsel %vm5736, %v5731, %v5733
    %v5738 = vsel %vm5736, %v5733, %v5735
    %v5743 = vmul.f32 %v4621, %v5731
    %v5744 = vmul.f32 %v4622, %v5737
    %v5745 = vmul.f32 %v4623, %v5738
    %v5746 = vmul.f32 %v4624, %v5735
    %5751 = vrot.lane.b32.xlu0 %v5743, 57
    %v5752 = vpop.permute.xlu0 %5751
    %5753 = vrot.lane.b32.xlu0 %v5744, 57
    %v5754 = vpop.permute.xlu0 %5753
    %5755 = vrot.lane.b32.xlu0 %v5745, 57
    %v5756 = vpop.permute.xlu0 %5755
    %5757 = vrot.lane.b32.xlu0 %v5746, 57
    %v5758 = vpop.permute.xlu0 %5757
    %vm5759 = vcmask 465920
    %v5760 = vsel %vm5759, %v5752, %v5754
    %v5761 = vsel %vm5759, %v5754, %v5756
    %v5762 = vsel %vm5759, %v5756, %v5758
    %v5766 = vadd.f32 %v5721, %v5760
    %v5767 = vadd.f32 %v5722, %v5761
    %v5768 = vadd.f32 %v5723, %v5762
    %v5769 = vld [vmem:[#allocation10 + $0x780] sm:$0xff]
    %v5770 = vld [vmem:[#allocation10 + $0x788] sm:$0xff]
    %v5771 = vld [vmem:[#allocation10 + $0x790] sm:$0xff]
    %5775 = vrot.lane.b32.xlu0 %v5769, 72
    %v5776 = vpop.permute.xlu0 %5775
    %5777 = vrot.lane.b32.xlu0 %v5770, 72
    %v5778 = vpop.permute.xlu0 %5777
    %5779 = vrot.lane.b32.xlu0 %v5771, 72
    %v5780 = vpop.permute.xlu0 %5779
    %v5781 = vsel %vm3484, %v5776, %v5778
    %v5782 = vsel %vm3484, %v5778, %v5780
    %v5787 = vmul.f32 %v4621, %v5776
    %v5788 = vmul.f32 %v4622, %v5781
    %v5789 = vmul.f32 %v4623, %v5782
    %v5790 = vmul.f32 %v4624, %v5780
    %5795 = vrot.lane.b32.xlu0 %v5787, 56
    %v5796 = vpop.permute.xlu0 %5795
    %5797 = vrot.lane.b32.xlu0 %v5788, 56
    %v5798 = vpop.permute.xlu0 %5797
    %5799 = vrot.lane.b32.xlu0 %v5789, 56
    %v5800 = vpop.permute.xlu0 %5799
    %5801 = vrot.lane.b32.xlu0 %v5790, 56
    %v5802 = vpop.permute.xlu0 %5801
    %v5803 = vsel %vm1426, %v5796, %v5798
    %v5804 = vsel %vm1426, %v5798, %v5800
    %v5805 = vsel %vm1426, %v5800, %v5802
    %v5809 = vadd.f32 %v5766, %v5803
    %v5810 = vadd.f32 %v5767, %v5804
    %v5811 = vadd.f32 %v5768, %v5805
    %v5812 = vmax.f32 %v5809, 0.0
    %v5813 = vmax.f32 %v5810, 0.0
    %v5814 = vmax.f32 %v5811, 0.0
    %v5815 = vxor.u32 %v5812, 2147483648
    %v5816 = vxor.u32 %v5813, 2147483648
    %v5817 = vxor.u32 %v5814, 2147483648
    %v5818 = vmul.f32 %v5815, 1.442695
    %v5819 = vpow.pop %v5818
    %v5820 = vmul.f32 %v5816, 1.442695
    %v5821 = vpow.pop %v5820
    %v5822 = vmul.f32 %v5817, 1.442695
    %v5823 = vpow.pop %v5822
    %v5824 = vadd.f32 %v5819, 1.0
    %v5825 = vadd.f32 %v5821, 1.0
    %v5826 = vadd.f32 %v5823, 1.0
    %v5827 = vrcp.pop %v5824
    %v5828 = vmul.f32 1.0, %v5827
    %v5829 = vrcp.pop %v5825
    %v5830 = vmul.f32 1.0, %v5829
    %v5831 = vrcp.pop %v5826
    %v5832 = vmul.f32 1.0, %v5831
    %v5835 = vlaneseq
    %v5836 = vshrl.u32 %v5835, 7
    %v5837 = vsub.s32 0, %v5836
    %v5838 = vrot.slane %v2351, %v5837
    %v5839 = vlaneseq
    %v5840 = vshrl.u32 %v5839, 7
    %v5841 = vsub.s32 4, %v5840
    %v5842 = vrot.slane %v2351, %v5841
    %v5843 = vlaneseq
    %v5844 = vshrl.u32 %v5843, 7
    %v5845 = vsub.s32 0, %v5844
    %v5846 = vrot.slane %v2353, %v5845
    %v5847 = vlaneseq
    %v5848 = vshrl.u32 %v5847, 7
    %v5849 = vsub.s32 4, %v5848
    %v5850 = vrot.slane %v2353, %v5849
    %v5855 = vlaneseq
    %v5856 = vshrl.u32 %v5855, 7
    %v5857 = vsub.s32 0, %v5856
    %v5858 = vrot.slane %v5838, %v5857
    %v5859 = vlaneseq
    %v5860 = vshrl.u32 %v5859, 7
    %v5861 = vsub.s32 0, %v5860
    %v5862 = vrot.slane %v5842, %v5861
    %v5863 = vlaneseq
    %v5864 = vshrl.u32 %v5863, 7
    %v5865 = vsub.s32 0, %v5864
    %v5866 = vrot.slane %v5846, %v5865
    %v5867 = vlaneseq
    %v5868 = vshrl.u32 %v5867, 7
    %v5869 = vsub.s32 0, %v5868
    %v5870 = vrot.slane %v5850, %v5869
    %5874 = vrot.lane.b32.xlu0 %v5828, 25
    %v5875 = vpop.permute.xlu0 %5874
    %5876 = vrot.lane.b32.xlu0 %v5830, 25
    %v5877 = vpop.permute.xlu0 %5876
    %5878 = vrot.lane.b32.xlu0 %v5832, 25
    %v5879 = vpop.permute.xlu0 %5878
    %v5880 = vsel %vm715, %v5875, %v5877
    %v5881 = vsel %vm715, %v5877, %v5879
    %v5886 = vadd.f32 %v5858, %v5875
    %v5887 = vadd.f32 %v5862, %v5880
    %v5888 = vadd.f32 %v5866, %v5881
    %v5889 = vadd.f32 %v5870, %v5879
    %v5890 = vmul.f32 %v5886, 0.33333334
    %v5891 = vmul.f32 %v5887, 0.33333334
    %v5892 = vmul.f32 %v5888, 0.33333334
    %v5893 = vmul.f32 %v5889, 0.33333334
    %5898 = vrot.lane.b32.xlu0 %v5890, 103
    %v5899 = vpop.permute.xlu0 %5898
    %5900 = vrot.lane.b32.xlu0 %v5891, 103
    %v5901 = vpop.permute.xlu0 %5900
    %5902 = vrot.lane.b32.xlu0 %v5892, 103
    %v5903 = vpop.permute.xlu0 %5902
    %5904 = vrot.lane.b32.xlu0 %v5893, 103
    %v5905 = vpop.permute.xlu0 %5904
    %v5906 = vsel %vm990, %v5899, %v5901
    %v5907 = vsel %vm990, %v5901, %v5903
    %v5908 = vsel %vm990, %v5903, %v5905
    %5912 = vst [vmem:[#allocation16] sm:$0xf] %v5906
    %5913 = vst [vmem:[#allocation16 + $0x8] sm:$0xf] %v5907
    %5914 = vst [vmem:[#allocation16 + $0x10] sm:$0xf] %v5908
    %v5915 = vlaneseq
    %v5916 = vshrl.u32 %v5915, 7
    %v5917 = vsub.s32 1, %v5916
    %v5918 = vrot.slane %v2351, %v5917
    %v5919 = vlaneseq
    %v5920 = vshrl.u32 %v5919, 7
    %v5921 = vsub.s32 5, %v5920
    %v5922 = vrot.slane %v2351, %v5921
    %v5923 = vlaneseq
    %v5924 = vshrl.u32 %v5923, 7
    %v5925 = vsub.s32 1, %v5924
    %v5926 = vrot.slane %v2353, %v5925
    %v5927 = vlaneseq
    %v5928 = vshrl.u32 %v5927, 7
    %v5929 = vsub.s32 5, %v5928
    %v5930 = vrot.slane %v2353, %v5929
    %v5935 = vlaneseq
    %v5936 = vshrl.u32 %v5935, 7
    %v5937 = vsub.s32 1, %v5936
    %v5938 = vrot.slane %v5918, %v5937
    %v5939 = vlaneseq
    %v5940 = vshrl.u32 %v5939, 7
    %v5941 = vsub.s32 1, %v5940
    %v5942 = vrot.slane %v5922, %v5941
    %v5943 = vlaneseq
    %v5944 = vshrl.u32 %v5943, 7
    %v5945 = vsub.s32 1, %v5944
    %v5946 = vrot.slane %v5926, %v5945
    %v5947 = vlaneseq
    %v5948 = vshrl.u32 %v5947, 7
    %v5949 = vsub.s32 1, %v5948
    %v5950 = vrot.slane %v5930, %v5949
    %v5951 = vrot.slane %v5828, 4
    %v5952 = vrot.slane %v5830, 4
    %v5953 = vrot.slane %v5832, 4
    %5954 = vrot.lane.b32.xlu0 %v5951, 25
    %v5955 = vpop.permute.xlu0 %5954
    %5956 = vrot.lane.b32.xlu0 %v5952, 25
    %v5957 = vpop.permute.xlu0 %5956
    %5958 = vrot.lane.b32.xlu0 %v5953, 25
    %v5959 = vpop.permute.xlu0 %5958
    %v5960 = vsel %vm715, %v5955, %v5957
    %v5961 = vsel %vm715, %v5957, %v5959
    %v5966 = vadd.f32 %v5938, %v5955
    %v5967 = vadd.f32 %v5942, %v5960
    %v5968 = vadd.f32 %v5946, %v5961
    %v5969 = vadd.f32 %v5950, %v5959
    %v5970 = vmul.f32 %v5966, 0.33333334
    %v5971 = vmul.f32 %v5967, 0.33333334
    %v5972 = vmul.f32 %v5968, 0.33333334
    %v5973 = vmul.f32 %v5969, 0.33333334
    %v5978 = vrot.slane %v5970, 4
    %v5979 = vrot.slane %v5971, 4
    %v5980 = vrot.slane %v5972, 4
    %v5981 = vrot.slane %v5973, 4
    %5982 = vrot.lane.b32.xlu0 %v5978, 103
    %v5983 = vpop.permute.xlu0 %5982
    %5984 = vrot.lane.b32.xlu0 %v5979, 103
    %v5985 = vpop.permute.xlu0 %5984
    %5986 = vrot.lane.b32.xlu0 %v5980, 103
    %v5987 = vpop.permute.xlu0 %5986
    %5988 = vrot.lane.b32.xlu0 %v5981, 103
    %v5989 = vpop.permute.xlu0 %5988
    %v5990 = vsel %vm990, %v5983, %v5985
    %v5991 = vsel %vm990, %v5985, %v5987
    %v5992 = vsel %vm990, %v5987, %v5989
    %5996 = vst [vmem:[#allocation16] sm:$0xf0] %v5990
    %5997 = vst [vmem:[#allocation16 + $0x8] sm:$0xf0] %v5991
    %5998 = vst [vmem:[#allocation16 + $0x10] sm:$0xf0] %v5992
    // Predicated region
    $region54: #{tpu_custom_call.1} parent=1 // pred_check
      _
    $region55: #{tpu_custom_call.1} parent=1 // pred_check_branch
      %6000 = sbr.rel (0) target = $region57
    $region56: #{tpu_custom_call.1} parent=1 // pred_region
      %s6002 = ssub.s32 384, 384
      %6003 = vsyncadd [#allocation7], %s6002
      %s6005 = sshll.u32 [#allocation16], 4
      %s6006 = int_to_ptr.vmem [resolvable:$true] %s6005
      %6008 = dma.vmem_to_hbm [thread:$0]  %s6006, 384, %s7, [#allocation7]
    $region57: #{tpu_custom_call.1} parent=1 // pred_fallthru
      _
    // Predicated region
    $region58: #{tpu_custom_call.1} parent=1 // pred_check
      _
    $region59: #{tpu_custom_call.1} parent=1 // pred_check_branch
      %6010 = sbr.rel (0) target = $region61
    $region60: #{tpu_custom_call.1} parent=1 // pred_region
      %6011 = dma.done [#allocation7], 384
    $region61: #{tpu_custom_call.1} parent=1 // pred_fallthru
      _
    %6012 = vsyncpa [#allocation6], 1
    %6013 = vsyncpa [#allocation9], 1
    %6014 = vsyncpa [#allocation12], 1
    %6015 = vsyncpa [#allocation15], 1
    %6016 = vsyncpa [#allocation7], 1

</llo_original>
